<compile_context>
chip_gen: v7x
topology: tpu7x:2x2x1
jax: 0.10.0
libtpu: 0.0.40
codegen_flags: <defaults>
</compile_context>

<pallas_src>
import jax
import jax.numpy as jnp
import numpy as np
from jax.experimental import pallas as pl
from jax.experimental.pallas import tpu as pltpu

BN_EPS = 1e-5
K = 5        # conv kernel size
PAD = 1      # conv padding

# ---------------------------------------------------------------------------
# Static geometry for inpt_dims = (2, 3, 16, 16)  (mirrors the torch module)
# ---------------------------------------------------------------------------
N_BATCH, C_IN, H_IN, W_IN = 2, 3, 16, 16


def _conv_out(x):
    return x + 2 * PAD - K + 1


H1, W1 = _conv_out(H_IN), _conv_out(W_IN)      # 14, 14
H2, W2 = _conv_out(H1), _conv_out(W1)          # 12, 12
HPL, WPL = H2 // 2, W2 // 2                    # 6, 6   (after maxpool)
H4, W4 = _conv_out(HPL), _conv_out(WPL)        # 4, 4
H5, W5 = _conv_out(H4), _conv_out(W4)          # 2, 2

# Per conv layer: padded input (Hp, Wp, Cin) -> output (Ho, Wo, Cout)
L1 = dict(Hp=H_IN + 2, Wp=W_IN + 2, Cin=3,  Ho=H1, Wo=W1, Cout=12)
L2 = dict(Hp=H1 + 2,   Wp=W1 + 2,   Cin=12, Ho=H2, Wo=W2, Cout=12)
L4 = dict(Hp=HPL + 2,  Wp=WPL + 2,  Cin=12, Ho=H4, Wo=W4, Cout=24)
L5 = dict(Hp=H4 + 2,   Wp=W4 + 2,   Cin=24, Ho=H5, Wo=W5, Cout=24)


# ---------------------------------------------------------------------------
# Fully fused Pallas kernel (one grid step == one image)
# ---------------------------------------------------------------------------
def _conv_banded(pv, m_ref, s_ref):
    """ReLU(conv(pv) + shift).  pv: (Hp, Wp*Cin) padded activation value.
    m_ref: (K, Wp*Cin, Wo*Cout) banded weights (BN scale folded in).
    s_ref: (1, Wo*Cout) per-position shift (conv bias + BN shift, tiled)."""
    ho = pv.shape[0] - (K - 1)
    acc = jnp.dot(pv[0:ho, :], m_ref[0], preferred_element_type=jnp.float32)
    for kh in range(1, K):
        acc = acc + jnp.dot(pv[kh:kh + ho, :], m_ref[kh],
                            preferred_element_type=jnp.float32)
    return jnp.maximum(acc + s_ref[...], 0.0)


def _network_kernel(x_ref, m1, s1, m2, s2, m4, s4, m5, s5, wfc, bfc,
                    out_ref, pad2, pad4, pad5, ph):
    # Zero padded-activation scratches: the untouched border IS the conv
    # padding (the interiors are fully overwritten below each step).
    pad2[...] = jnp.zeros_like(pad2)
    pad4[...] = jnp.zeros_like(pad4)
    pad5[...] = jnp.zeros_like(pad5)

    # conv1 + bn1 + relu  (x_ref already holds the zero-padded image)
    h1 = _conv_banded(x_ref[...], m1, s1)                            # (14, 168)
    pad2[1:1 + L1["Ho"], L1["Cout"]:(L1["Wo"] + 1) * L1["Cout"]] = h1

    # conv2 + bn2 + relu
    h2 = _conv_banded(pad2[...], m2, s2)                             # (12, 144)

    # maxpool 2x2: reduce H into `ph`, then W straight into conv4's padded input
    C = L2["Cout"]
    for i in range(L2["Ho"] // 2):
        ph[i:i + 1, :] = jnp.maximum(h2[2 * i:2 * i + 1, :],
                                     h2[2 * i + 1:2 * i + 2, :])
    phv = ph[...]                                                    # (6, 144)
    for j in range(L2["Wo"] // 2):
        pad4[1:1 + HPL, (j + 1) * C:(j + 2) * C] = jnp.maximum(
            phv[:, (2 * j) * C:(2 * j + 1) * C],
            phv[:, (2 * j + 1) * C:(2 * j + 2) * C])

    # conv4 + bn4 + relu
    h4 = _conv_banded(pad4[...], m4, s4)                             # (4, 96)
    pad5[1:1 + L4["Ho"], L4["Cout"]:(L4["Wo"] + 1) * L4["Cout"]] = h4

    # conv5 + bn5 + relu
    h5 = _conv_banded(pad5[...], m5, s5)                             # (2, 48)

    # fc1 (weights pre-permuted to this layout -> no runtime transpose)
    fcols = L5["Wo"] * L5["Cout"]                                    # 48
    logits = bfc[...]
    for i in range(L5["Ho"]):
        logits = logits + jnp.dot(h5[i:i + 1, :],
                                  wfc[i * fcols:(i + 1) * fcols, :],
                                  preferred_element_type=jnp.float32)
    out_ref[...] = logits


def _const_spec(arr):
    if arr.ndim == 3:
        return pl.BlockSpec(tuple(arr.shape), lambda i: (0, 0, 0))
    return pl.BlockSpec(tuple(arr.shape), lambda i: (0, 0))


def network_forward(x_nchw, kp):
    n = x_nchw.shape[0]

    # One-time tiny input relayout: NCHW -> zero-padded (N, Hp, Wp*Cin).
    x = jnp.transpose(x_nchw, (0, 2, 3, 1))
    x = jnp.pad(x, ((0, 0), (PAD, PAD), (PAD, PAD), (0, 0)))
    x = x.reshape(n, L1["Hp"], L1["Wp"] * L1["Cin"])

    params = [kp["m1"], kp["s1"], kp["m2"], kp["s2"], kp["m4"], kp["s4"],
              kp["m5"], kp["s5"], kp["wfc"], kp["bfc"]]

    flops = 0
    for L in (L1, L2, L4, L5):
        flops += 2 * K * L["Ho"] * (L["Wp"] * L["Cin"]) * (L["Wo"] * L["Cout"])
    flops += 2 * (H5 * W5 * 24) * 10
    flops *= n
    bytes_accessed = 4 * (int(x.size) + sum(int(p.size) for p in params) + n * 10)

    out = pl.pallas_call(
        _network_kernel,
        out_shape=jax.ShapeDtypeStruct((n, 1, 10), jnp.float32),
        grid_spec=pltpu.PrefetchScalarGridSpec(
            num_scalar_prefetch=0,
            grid=(n,),
            in_specs=[pl.BlockSpec((None, L1["Hp"], L1["Wp"] * L1["Cin"]),
                                   lambda i: (i, 0, 0))] +
                     [_const_spec(p) for p in params],
            out_specs=pl.BlockSpec((None, 1, 10), lambda i: (i, 0, 0)),
            scratch_shapes=[
                pltpu.VMEM((L2["Hp"], L2["Wp"] * L2["Cin"]), jnp.float32),   # pad2
                pltpu.VMEM((L4["Hp"], L4["Wp"] * L4["Cin"]), jnp.float32),   # pad4
                pltpu.VMEM((L5["Hp"], L5["Wp"] * L5["Cin"]), jnp.float32),   # pad5
                pltpu.VMEM((HPL, L2["Wo"] * L2["Cout"]), jnp.float32),       # ph
            ],
        ),
        compiler_params=pltpu.CompilerParams(
            dimension_semantics=("parallel",)),
        cost_estimate=pl.CostEstimate(flops=flops, transcendentals=0,
                                      bytes_accessed=bytes_accessed),
    )(x, *params)
    return out.reshape(n, 10)


# ---------------------------------------------------------------------------
# Parameter preparation (banded conv weights, BN folding, fc permutation)
# ---------------------------------------------------------------------------
def _banded_weights(w_oihw, scale, L):
    """M[kh][wp*Cin+ci, j*Cout+co] = W[co,ci,kh,wp-j]*scale[co] (band), else 0."""
    cout, cin = L["Cout"], L["Cin"]
    Wp, Wo = L["Wp"], L["Wo"]
    M = np.zeros((K, Wp * cin, Wo * cout), np.float32)
    for kh in range(K):
        for j in range(Wo):
            for kw in range(K):
                wp = j + kw
                M[kh, wp * cin:(wp + 1) * cin, j * cout:(j + 1) * cout] = \
                    (w_oihw[:, :, kh, kw] * scale[:, None]).T
    return jnp.asarray(M)


def build_kernel_params(raw):
    kp = {}
    for idx, L in (("1", L1), ("2", L2), ("4", L4), ("5", L5)):
        w, b = raw["conv" + idx]
        gamma, beta, mean, var = raw["bn" + idx]
        w = np.asarray(w); b = np.asarray(b)
        gamma = np.asarray(gamma); beta = np.asarray(beta)
        mean = np.asarray(mean); var = np.asarray(var)
        scale = gamma / np.sqrt(var + BN_EPS)            # folded into weights
        shift = (b - mean) * scale + beta                # remaining epilogue add
        kp["m" + idx] = _banded_weights(w, scale, L)
        kp["s" + idx] = jnp.asarray(np.tile(shift, L["Wo"])[None, :].astype(np.float32))

    # fc1: torch flattens NCHW -> feature index c*(H5*W5) + i*W5 + j.
    # Kernel feature order is (i, j, c): row = i*(W5*24) + j*24 + c.
    wfc, bfc = raw["fc"]
    wfc = np.asarray(wfc)
    wk = np.zeros((H5 * W5 * 24, 10), np.float32)
    for i in range(H5):
        for j in range(W5):
            for c in range(24):
                wk[i * (W5 * 24) + j * 24 + c, :] = wfc[:, c * (H5 * W5) + i * W5 + j]
    kp["wfc"] = jnp.asarray(wk)
    kp["bfc"] = jnp.asarray(np.asarray(bfc)[None, :].astype(np.float32))
    return kp


def init_params(key):
    keys = iter(jax.random.split(key, 32))

    def conv_init(cin, cout):
        fan_in = cin * K * K
        w = jax.random.normal(next(keys), (cout, cin, K, K), jnp.float32) / np.sqrt(fan_in)
        b = 0.1 * jax.random.normal(next(keys), (cout,), jnp.float32)
        return w, b

    def bn_init(c):
        gamma = 1.0 + 0.1 * jax.random.normal(next(keys), (c,), jnp.float32)
        beta = 0.1 * jax.random.normal(next(keys), (c,), jnp.float32)
        return gamma, beta, jnp.zeros((c,), jnp.float32), jnp.ones((c,), jnp.float32)

    raw = {
        "conv1": conv_init(3, 12),  "bn1": bn_init(12),
        "conv2": conv_init(12, 12), "bn2": bn_init(12),
        "conv4": conv_init(12, 24), "bn4": bn_init(24),
        "conv5": conv_init(24, 24), "bn5": bn_init(24),
    }
    fc_in = 24 * H5 * W5
    wfc = jax.random.normal(next(keys), (10, fc_in), jnp.float32) / np.sqrt(fc_in)
    bfc = 0.1 * jax.random.normal(next(keys), (10,), jnp.float32)
    raw["fc"] = (wfc, bfc)

    return raw, build_kernel_params(raw)


# ---------------------------------------------------------------------------
# Pure-JAX reference (NCHW) for verification
# ---------------------------------------------------------------------------
def _ref_conv_bn_relu(x, w, b, gamma, beta, rm, rv):
    y = jax.lax.conv_general_dilated(
        x, w, window_strides=(1, 1), padding=((PAD, PAD), (PAD, PAD)),
        dimension_numbers=("NCHW", "OIHW", "NCHW"))
    y = y + b[None, :, None, None]
    y = (y - rm[None, :, None, None]) / jnp.sqrt(rv[None, :, None, None] + BN_EPS)
    y = y * gamma[None, :, None, None] + beta[None, :, None, None]
    return jnp.maximum(y, 0.0)


def ref_forward(x, raw):
    h = _ref_conv_bn_relu(x, *raw["conv1"], *raw["bn1"])
    h = _ref_conv_bn_relu(h, *raw["conv2"], *raw["bn2"])
    n, c, hh, ww = h.shape
    h = h.reshape(n, c, hh // 2, 2, ww // 2, 2).max(axis=(3, 5))
    h = _ref_conv_bn_relu(h, *raw["conv4"], *raw["bn4"])
    h = _ref_conv_bn_relu(h, *raw["conv5"], *raw["bn5"])
    feat = h.reshape(n, -1)
    wfc, bfc = raw["fc"]
    return feat @ wfc.T + bfc[None, :]


# ---------------------------------------------------------------------------
if __name__ == "__main__":
    key = jax.random.PRNGKey(0)
    k_x, k_p = jax.random.split(key)
    # inpt_dims = (2, 3, 16, 16)  ->  pipeline output spatial 2x2, fc_in = 96
    x = jax.random.uniform(k_x, (N_BATCH, C_IN, H_IN, W_IN), jnp.float32)

    raw_params, kernel_params = init_params(k_p)

    fwd = jax.jit(network_forward)
    out = jax.block_until_ready(fwd(x, kernel_params))
    assert out.shape == (N_BATCH, 10), out.shape

    ref = ref_forward(x, raw_params)
    np.testing.assert_allclose(np.asarray(out), np.asarray(ref), rtol=2e-2, atol=2e-2)

    print("KERNEL_OK")
</pallas_src>

<mosaic_0001>
module attributes {stable_mosaic.version = 11 : i64} {
  func.func @_network_kernel(%arg0: i32, %arg1: memref<1x18x54xf32, #tpu.memory_space<vmem>>, %arg2: memref<5x54x168xf32, #tpu.memory_space<vmem>>, %arg3: memref<1x168xf32, #tpu.memory_space<vmem>>, %arg4: memref<5x192x144xf32, #tpu.memory_space<vmem>>, %arg5: memref<1x144xf32, #tpu.memory_space<vmem>>, %arg6: memref<5x96x96xf32, #tpu.memory_space<vmem>>, %arg7: memref<1x96xf32, #tpu.memory_space<vmem>>, %arg8: memref<5x144x48xf32, #tpu.memory_space<vmem>>, %arg9: memref<1x48xf32, #tpu.memory_space<vmem>>, %arg10: memref<96x10xf32, #tpu.memory_space<vmem>>, %arg11: memref<1x10xf32, #tpu.memory_space<vmem>>, %arg12: memref<1x1x10xf32, #tpu.memory_space<vmem>>, %arg13: memref<16x192xf32, #tpu.memory_space<vmem>>, %arg14: memref<8x96xf32, #tpu.memory_space<vmem>>, %arg15: memref<6x144xf32, #tpu.memory_space<vmem>>, %arg16: memref<6x144xf32, #tpu.memory_space<vmem>>) attributes {dimension_semantics = [#tpu.dimension_semantics<parallel>], iteration_bounds = array<i64: 2>, scalar_prefetch = 0 : i64, scratch_operands = 4 : i64, tpu.core_type = #tpu.core_type<tc>, window_params = [{transform_indices = @transform_0, window_bounds = array<i64: 1, 18, 54>}, {pipeline_mode = #tpu.pipeline_mode<synchronous>, transform_indices = @transform_1, window_bounds = array<i64: 5, 54, 168>}, {pipeline_mode = #tpu.pipeline_mode<synchronous>, transform_indices = @transform_2, window_bounds = array<i64: 1, 168>}, {pipeline_mode = #tpu.pipeline_mode<synchronous>, transform_indices = @transform_3, window_bounds = array<i64: 5, 192, 144>}, {pipeline_mode = #tpu.pipeline_mode<synchronous>, transform_indices = @transform_4, window_bounds = array<i64: 1, 144>}, {pipeline_mode = #tpu.pipeline_mode<synchronous>, transform_indices = @transform_5, window_bounds = array<i64: 5, 96, 96>}, {pipeline_mode = #tpu.pipeline_mode<synchronous>, transform_indices = @transform_6, window_bounds = array<i64: 1, 96>}, {pipeline_mode = #tpu.pipeline_mode<synchronous>, transform_indices = @transform_7, window_bounds = array<i64: 5, 144, 48>}, {pipeline_mode = #tpu.pipeline_mode<synchronous>, transform_indices = @transform_8, window_bounds = array<i64: 1, 48>}, {pipeline_mode = #tpu.pipeline_mode<synchronous>, transform_indices = @transform_9, window_bounds = array<i64: 96, 10>}, {pipeline_mode = #tpu.pipeline_mode<synchronous>, transform_indices = @transform_10, window_bounds = array<i64: 1, 10>}, {transform_indices = @transform_11, window_bounds = array<i64: 1, 1, 10>}]} {
    %cst = arith.constant 0.000000e+00 : f32
    %0 = vector.broadcast %cst : f32 to vector<16x192xf32>
    %c0 = arith.constant 0 : index
    %c0_0 = arith.constant 0 : index
    %1 = vector.load %arg13[%c0, %c0_0] : memref<16x192xf32, #tpu.memory_space<vmem>>, vector<16x192xf32>
    tpu.vector_store %arg13[%c0, %c0_0], %0 {strides = array<i32>} : memref<16x192xf32, #tpu.memory_space<vmem>>, vector<16x192xf32>,
    %cst_1 = arith.constant 0.000000e+00 : f32
    %2 = vector.broadcast %cst_1 : f32 to vector<8x96xf32>
    %c0_2 = arith.constant 0 : index
    %c0_3 = arith.constant 0 : index
    %3 = vector.load %arg14[%c0_2, %c0_3] : memref<8x96xf32, #tpu.memory_space<vmem>>, vector<8x96xf32>
    tpu.vector_store %arg14[%c0_2, %c0_3], %2 {strides = array<i32>} : memref<8x96xf32, #tpu.memory_space<vmem>>, vector<8x96xf32>,
    %cst_4 = arith.constant 0.000000e+00 : f32
    %4 = vector.broadcast %cst_4 : f32 to vector<6x144xf32>
    %c0_5 = arith.constant 0 : index
    %c0_6 = arith.constant 0 : index
    %5 = vector.load %arg15[%c0_5, %c0_6] : memref<6x144xf32, #tpu.memory_space<vmem>>, vector<6x144xf32>
    tpu.vector_store %arg15[%c0_5, %c0_6], %4 {strides = array<i32>} : memref<6x144xf32, #tpu.memory_space<vmem>>, vector<6x144xf32>,
    %c0_7 = arith.constant 0 : index
    %c0_8 = arith.constant 0 : index
    %c0_9 = arith.constant 0 : index
    %6 = vector.load %arg1[%c0_7, %c0_8, %c0_9] : memref<1x18x54xf32, #tpu.memory_space<vmem>>, vector<1x18x54xf32>
    %7 = vector.shape_cast %6 : vector<1x18x54xf32> to vector<18x54xf32>
    %8 = vector.extract_strided_slice %7 {offsets = [0, 0], sizes = [14, 54], strides = [1, 1]} : vector<18x54xf32> to vector<14x54xf32>
    %c0_10 = arith.constant 0 : index
    %c0_11 = arith.constant 0 : index
    %c0_12 = arith.constant 0 : index
    %9 = vector.load %arg2[%c0_10, %c0_11, %c0_12] : memref<5x54x168xf32, #tpu.memory_space<vmem>>, vector<1x54x168xf32>
    %10 = vector.shape_cast %9 : vector<1x54x168xf32> to vector<54x168xf32>
    %cst_13 = arith.constant dense<0.000000e+00> : vector<14x168xf32>
    %11 = tpu.matmul %8, %10, %cst_13 {dimension_numbers = #tpu.dot_dimension_numbers<[1], [0], [0], [1], [0, 0, 1, 1], [], []>} : vector<14x54xf32>, vector<54x168xf32>, vector<14x168xf32> -> vector<14x168xf32>
    %12 = vector.extract_strided_slice %7 {offsets = [1, 0], sizes = [14, 54], strides = [1, 1]} : vector<18x54xf32> to vector<14x54xf32>
    %c1 = arith.constant 1 : index
    %c0_14 = arith.constant 0 : index
    %c0_15 = arith.constant 0 : index
    %13 = vector.load %arg2[%c1, %c0_14, %c0_15] : memref<5x54x168xf32, #tpu.memory_space<vmem>>, vector<1x54x168xf32>
    %14 = vector.shape_cast %13 : vector<1x54x168xf32> to vector<54x168xf32>
    %cst_16 = arith.constant dense<0.000000e+00> : vector<14x168xf32>
    %15 = tpu.matmul %12, %14, %cst_16 {dimension_numbers = #tpu.dot_dimension_numbers<[1], [0], [0], [1], [0, 0, 1, 1], [], []>} : vector<14x54xf32>, vector<54x168xf32>, vector<14x168xf32> -> vector<14x168xf32>
    %16 = arith.addf %11, %15 : vector<14x168xf32>
    %17 = vector.extract_strided_slice %7 {offsets = [2, 0], sizes = [14, 54], strides = [1, 1]} : vector<18x54xf32> to vector<14x54xf32>
    %c2 = arith.constant 2 : index
    %c0_17 = arith.constant 0 : index
    %c0_18 = arith.constant 0 : index
    %18 = vector.load %arg2[%c2, %c0_17, %c0_18] : memref<5x54x168xf32, #tpu.memory_space<vmem>>, vector<1x54x168xf32>
    %19 = vector.shape_cast %18 : vector<1x54x168xf32> to vector<54x168xf32>
    %cst_19 = arith.constant dense<0.000000e+00> : vector<14x168xf32>
    %20 = tpu.matmul %17, %19, %cst_19 {dimension_numbers = #tpu.dot_dimension_numbers<[1], [0], [0], [1], [0, 0, 1, 1], [], []>} : vector<14x54xf32>, vector<54x168xf32>, vector<14x168xf32> -> vector<14x168xf32>
    %21 = arith.addf %16, %20 : vector<14x168xf32>
    %22 = vector.extract_strided_slice %7 {offsets = [3, 0], sizes = [14, 54], strides = [1, 1]} : vector<18x54xf32> to vector<14x54xf32>
    %c3 = arith.constant 3 : index
    %c0_20 = arith.constant 0 : index
    %c0_21 = arith.constant 0 : index
    %23 = vector.load %arg2[%c3, %c0_20, %c0_21] : memref<5x54x168xf32, #tpu.memory_space<vmem>>, vector<1x54x168xf32>
    %24 = vector.shape_cast %23 : vector<1x54x168xf32> to vector<54x168xf32>
    %cst_22 = arith.constant dense<0.000000e+00> : vector<14x168xf32>
    %25 = tpu.matmul %22, %24, %cst_22 {dimension_numbers = #tpu.dot_dimension_numbers<[1], [0], [0], [1], [0, 0, 1, 1], [], []>} : vector<14x54xf32>, vector<54x168xf32>, vector<14x168xf32> -> vector<14x168xf32>
    %26 = arith.addf %21, %25 : vector<14x168xf32>
    %27 = vector.extract_strided_slice %7 {offsets = [4, 0], sizes = [14, 54], strides = [1, 1]} : vector<18x54xf32> to vector<14x54xf32>
    %c4 = arith.constant 4 : index
    %c0_23 = arith.constant 0 : index
    %c0_24 = arith.constant 0 : index
    %28 = vector.load %arg2[%c4, %c0_23, %c0_24] : memref<5x54x168xf32, #tpu.memory_space<vmem>>, vector<1x54x168xf32>
    %29 = vector.shape_cast %28 : vector<1x54x168xf32> to vector<54x168xf32>
    %cst_25 = arith.constant dense<0.000000e+00> : vector<14x168xf32>
    %30 = tpu.matmul %27, %29, %cst_25 {dimension_numbers = #tpu.dot_dimension_numbers<[1], [0], [0], [1], [0, 0, 1, 1], [], []>} : vector<14x54xf32>, vector<54x168xf32>, vector<14x168xf32> -> vector<14x168xf32>
    %31 = arith.addf %26, %30 : vector<14x168xf32>
    %c0_26 = arith.constant 0 : index
    %c0_27 = arith.constant 0 : index
    %32 = vector.load %arg3[%c0_26, %c0_27] : memref<1x168xf32, #tpu.memory_space<vmem>>, vector<1x168xf32>
    %33 = vector.broadcast %32 : vector<1x168xf32> to vector<14x168xf32>
    %34 = arith.addf %31, %33 : vector<14x168xf32>
    %cst_28 = arith.constant 0.000000e+00 : f32
    %35 = vector.broadcast %cst_28 : f32 to vector<14x168xf32>
    %36 = arith.maximumf %34, %35 : vector<14x168xf32>
    %c1_29 = arith.constant 1 : index
    %c12 = arith.constant 12 : index
    %37 = vector.load %arg13[%c1_29, %c12] : memref<16x192xf32, #tpu.memory_space<vmem>>, vector<14x168xf32>
    tpu.vector_store %arg13[%c1_29, %c12], %36 {strides = array<i32>} : memref<16x192xf32, #tpu.memory_space<vmem>>, vector<14x168xf32>,
    %c0_30 = arith.constant 0 : index
    %c0_31 = arith.constant 0 : index
    %38 = vector.load %arg13[%c0_30, %c0_31] : memref<16x192xf32, #tpu.memory_space<vmem>>, vector<16x192xf32>
    %39 = vector.extract_strided_slice %38 {offsets = [0, 0], sizes = [12, 192], strides = [1, 1]} : vector<16x192xf32> to vector<12x192xf32>
    %c0_32 = arith.constant 0 : index
    %c0_33 = arith.constant 0 : index
    %c0_34 = arith.constant 0 : index
    %40 = vector.load %arg4[%c0_32, %c0_33, %c0_34] : memref<5x192x144xf32, #tpu.memory_space<vmem>>, vector<1x192x144xf32>
    %41 = vector.shape_cast %40 : vector<1x192x144xf32> to vector<192x144xf32>
    %cst_35 = arith.constant dense<0.000000e+00> : vector<12x144xf32>
    %42 = tpu.matmul %39, %41, %cst_35 {dimension_numbers = #tpu.dot_dimension_numbers<[1], [0], [0], [1], [0, 0, 1, 1], [], []>} : vector<12x192xf32>, vector<192x144xf32>, vector<12x144xf32> -> vector<12x144xf32>
    %43 = vector.extract_strided_slice %38 {offsets = [1, 0], sizes = [12, 192], strides = [1, 1]} : vector<16x192xf32> to vector<12x192xf32>
    %c1_36 = arith.constant 1 : index
    %c0_37 = arith.constant 0 : index
    %c0_38 = arith.constant 0 : index
    %44 = vector.load %arg4[%c1_36, %c0_37, %c0_38] : memref<5x192x144xf32, #tpu.memory_space<vmem>>, vector<1x192x144xf32>
    %45 = vector.shape_cast %44 : vector<1x192x144xf32> to vector<192x144xf32>
    %cst_39 = arith.constant dense<0.000000e+00> : vector<12x144xf32>
    %46 = tpu.matmul %43, %45, %cst_39 {dimension_numbers = #tpu.dot_dimension_numbers<[1], [0], [0], [1], [0, 0, 1, 1], [], []>} : vector<12x192xf32>, vector<192x144xf32>, vector<12x144xf32> -> vector<12x144xf32>
    %47 = arith.addf %42, %46 : vector<12x144xf32>
    %48 = vector.extract_strided_slice %38 {offsets = [2, 0], sizes = [12, 192], strides = [1, 1]} : vector<16x192xf32> to vector<12x192xf32>
    %c2_40 = arith.constant 2 : index
    %c0_41 = arith.constant 0 : index
    %c0_42 = arith.constant 0 : index
    %49 = vector.load %arg4[%c2_40, %c0_41, %c0_42] : memref<5x192x144xf32, #tpu.memory_space<vmem>>, vector<1x192x144xf32>
    %50 = vector.shape_cast %49 : vector<1x192x144xf32> to vector<192x144xf32>
    %cst_43 = arith.constant dense<0.000000e+00> : vector<12x144xf32>
    %51 = tpu.matmul %48, %50, %cst_43 {dimension_numbers = #tpu.dot_dimension_numbers<[1], [0], [0], [1], [0, 0, 1, 1], [], []>} : vector<12x192xf32>, vector<192x144xf32>, vector<12x144xf32> -> vector<12x144xf32>
    %52 = arith.addf %47, %51 : vector<12x144xf32>
    %53 = vector.extract_strided_slice %38 {offsets = [3, 0], sizes = [12, 192], strides = [1, 1]} : vector<16x192xf32> to vector<12x192xf32>
    %c3_44 = arith.constant 3 : index
    %c0_45 = arith.constant 0 : index
    %c0_46 = arith.constant 0 : index
    %54 = vector.load %arg4[%c3_44, %c0_45, %c0_46] : memref<5x192x144xf32, #tpu.memory_space<vmem>>, vector<1x192x144xf32>
    %55 = vector.shape_cast %54 : vector<1x192x144xf32> to vector<192x144xf32>
    %cst_47 = arith.constant dense<0.000000e+00> : vector<12x144xf32>
    %56 = tpu.matmul %53, %55, %cst_47 {dimension_numbers = #tpu.dot_dimension_numbers<[1], [0], [0], [1], [0, 0, 1, 1], [], []>} : vector<12x192xf32>, vector<192x144xf32>, vector<12x144xf32> -> vector<12x144xf32>
    %57 = arith.addf %52, %56 : vector<12x144xf32>
    %58 = vector.extract_strided_slice %38 {offsets = [4, 0], sizes = [12, 192], strides = [1, 1]} : vector<16x192xf32> to vector<12x192xf32>
    %c4_48 = arith.constant 4 : index
    %c0_49 = arith.constant 0 : index
    %c0_50 = arith.constant 0 : index
    %59 = vector.load %arg4[%c4_48, %c0_49, %c0_50] : memref<5x192x144xf32, #tpu.memory_space<vmem>>, vector<1x192x144xf32>
    %60 = vector.shape_cast %59 : vector<1x192x144xf32> to vector<192x144xf32>
    %cst_51 = arith.constant dense<0.000000e+00> : vector<12x144xf32>
    %61 = tpu.matmul %58, %60, %cst_51 {dimension_numbers = #tpu.dot_dimension_numbers<[1], [0], [0], [1], [0, 0, 1, 1], [], []>} : vector<12x192xf32>, vector<192x144xf32>, vector<12x144xf32> -> vector<12x144xf32>
    %62 = arith.addf %57, %61 : vector<12x144xf32>
    %c0_52 = arith.constant 0 : index
    %c0_53 = arith.constant 0 : index
    %63 = vector.load %arg5[%c0_52, %c0_53] : memref<1x144xf32, #tpu.memory_space<vmem>>, vector<1x144xf32>
    %64 = vector.broadcast %63 : vector<1x144xf32> to vector<12x144xf32>
    %65 = arith.addf %62, %64 : vector<12x144xf32>
    %cst_54 = arith.constant 0.000000e+00 : f32
    %66 = vector.broadcast %cst_54 : f32 to vector<12x144xf32>
    %67 = arith.maximumf %65, %66 : vector<12x144xf32>
    %68 = vector.extract_strided_slice %67 {offsets = [0, 0], sizes = [1, 144], strides = [1, 1]} : vector<12x144xf32> to vector<1x144xf32>
    %69 = vector.extract_strided_slice %67 {offsets = [1, 0], sizes = [1, 144], strides = [1, 1]} : vector<12x144xf32> to vector<1x144xf32>
    %70 = arith.maximumf %68, %69 : vector<1x144xf32>
    %c0_55 = arith.constant 0 : index
    %c0_56 = arith.constant 0 : index
    %71 = vector.load %arg16[%c0_55, %c0_56] : memref<6x144xf32, #tpu.memory_space<vmem>>, vector<1x144xf32>
    tpu.vector_store %arg16[%c0_55, %c0_56], %70 {strides = array<i32>} : memref<6x144xf32, #tpu.memory_space<vmem>>, vector<1x144xf32>,
    %72 = vector.extract_strided_slice %67 {offsets = [2, 0], sizes = [1, 144], strides = [1, 1]} : vector<12x144xf32> to vector<1x144xf32>
    %73 = vector.extract_strided_slice %67 {offsets = [3, 0], sizes = [1, 144], strides = [1, 1]} : vector<12x144xf32> to vector<1x144xf32>
    %74 = arith.maximumf %72, %73 : vector<1x144xf32>
    %c1_57 = arith.constant 1 : index
    %c0_58 = arith.constant 0 : index
    %75 = vector.load %arg16[%c1_57, %c0_58] : memref<6x144xf32, #tpu.memory_space<vmem>>, vector<1x144xf32>
    tpu.vector_store %arg16[%c1_57, %c0_58], %74 {strides = array<i32>} : memref<6x144xf32, #tpu.memory_space<vmem>>, vector<1x144xf32>,
    %76 = vector.extract_strided_slice %67 {offsets = [4, 0], sizes = [1, 144], strides = [1, 1]} : vector<12x144xf32> to vector<1x144xf32>
    %77 = vector.extract_strided_slice %67 {offsets = [5, 0], sizes = [1, 144], strides = [1, 1]} : vector<12x144xf32> to vector<1x144xf32>
    %78 = arith.maximumf %76, %77 : vector<1x144xf32>
    %c2_59 = arith.constant 2 : index
    %c0_60 = arith.constant 0 : index
    %79 = vector.load %arg16[%c2_59, %c0_60] : memref<6x144xf32, #tpu.memory_space<vmem>>, vector<1x144xf32>
    tpu.vector_store %arg16[%c2_59, %c0_60], %78 {strides = array<i32>} : memref<6x144xf32, #tpu.memory_space<vmem>>, vector<1x144xf32>,
    %80 = vector.extract_strided_slice %67 {offsets = [6, 0], sizes = [1, 144], strides = [1, 1]} : vector<12x144xf32> to vector<1x144xf32>
    %81 = vector.extract_strided_slice %67 {offsets = [7, 0], sizes = [1, 144], strides = [1, 1]} : vector<12x144xf32> to vector<1x144xf32>
    %82 = arith.maximumf %80, %81 : vector<1x144xf32>
    %c3_61 = arith.constant 3 : index
    %c0_62 = arith.constant 0 : index
    %83 = vector.load %arg16[%c3_61, %c0_62] : memref<6x144xf32, #tpu.memory_space<vmem>>, vector<1x144xf32>
    tpu.vector_store %arg16[%c3_61, %c0_62], %82 {strides = array<i32>} : memref<6x144xf32, #tpu.memory_space<vmem>>, vector<1x144xf32>,
    %84 = vector.extract_strided_slice %67 {offsets = [8, 0], sizes = [1, 144], strides = [1, 1]} : vector<12x144xf32> to vector<1x144xf32>
    %85 = vector.extract_strided_slice %67 {offsets = [9, 0], sizes = [1, 144], strides = [1, 1]} : vector<12x144xf32> to vector<1x144xf32>
    %86 = arith.maximumf %84, %85 : vector<1x144xf32>
    %c4_63 = arith.constant 4 : index
    %c0_64 = arith.constant 0 : index
    %87 = vector.load %arg16[%c4_63, %c0_64] : memref<6x144xf32, #tpu.memory_space<vmem>>, vector<1x144xf32>
    tpu.vector_store %arg16[%c4_63, %c0_64], %86 {strides = array<i32>} : memref<6x144xf32, #tpu.memory_space<vmem>>, vector<1x144xf32>,
    %88 = vector.extract_strided_slice %67 {offsets = [10, 0], sizes = [1, 144], strides = [1, 1]} : vector<12x144xf32> to vector<1x144xf32>
    %89 = vector.extract_strided_slice %67 {offsets = [11, 0], sizes = [1, 144], strides = [1, 1]} : vector<12x144xf32> to vector<1x144xf32>
    %90 = arith.maximumf %88, %89 : vector<1x144xf32>
    %c5 = arith.constant 5 : index
    %c0_65 = arith.constant 0 : index
    %91 = vector.load %arg16[%c5, %c0_65] : memref<6x144xf32, #tpu.memory_space<vmem>>, vector<1x144xf32>
    tpu.vector_store %arg16[%c5, %c0_65], %90 {strides = array<i32>} : memref<6x144xf32, #tpu.memory_space<vmem>>, vector<1x144xf32>,
    %c0_66 = arith.constant 0 : index
    %c0_67 = arith.constant 0 : index
    %92 = vector.load %arg16[%c0_66, %c0_67] : memref<6x144xf32, #tpu.memory_space<vmem>>, vector<6x144xf32>
    %93 = vector.extract_strided_slice %92 {offsets = [0, 0], sizes = [6, 12], strides = [1, 1]} : vector<6x144xf32> to vector<6x12xf32>
    %94 = vector.extract_strided_slice %92 {offsets = [0, 12], sizes = [6, 12], strides = [1, 1]} : vector<6x144xf32> to vector<6x12xf32>
    %95 = arith.maximumf %93, %94 : vector<6x12xf32>
    %c1_68 = arith.constant 1 : index
    %c12_69 = arith.constant 12 : index
    %96 = vector.load %arg14[%c1_68, %c12_69] : memref<8x96xf32, #tpu.memory_space<vmem>>, vector<6x12xf32>
    tpu.vector_store %arg14[%c1_68, %c12_69], %95 {strides = array<i32>} : memref<8x96xf32, #tpu.memory_space<vmem>>, vector<6x12xf32>,
    %97 = vector.extract_strided_slice %92 {offsets = [0, 24], sizes = [6, 12], strides = [1, 1]} : vector<6x144xf32> to vector<6x12xf32>
    %98 = vector.extract_strided_slice %92 {offsets = [0, 36], sizes = [6, 12], strides = [1, 1]} : vector<6x144xf32> to vector<6x12xf32>
    %99 = arith.maximumf %97, %98 : vector<6x12xf32>
    %c1_70 = arith.constant 1 : index
    %c24 = arith.constant 24 : index
    %100 = vector.load %arg14[%c1_70, %c24] : memref<8x96xf32, #tpu.memory_space<vmem>>, vector<6x12xf32>
    tpu.vector_store %arg14[%c1_70, %c24], %99 {strides = array<i32>} : memref<8x96xf32, #tpu.memory_space<vmem>>, vector<6x12xf32>,
    %101 = vector.extract_strided_slice %92 {offsets = [0, 48], sizes = [6, 12], strides = [1, 1]} : vector<6x144xf32> to vector<6x12xf32>
    %102 = vector.extract_strided_slice %92 {offsets = [0, 60], sizes = [6, 12], strides = [1, 1]} : vector<6x144xf32> to vector<6x12xf32>
    %103 = arith.maximumf %101, %102 : vector<6x12xf32>
    %c1_71 = arith.constant 1 : index
    %c36 = arith.constant 36 : index
    %104 = vector.load %arg14[%c1_71, %c36] : memref<8x96xf32, #tpu.memory_space<vmem>>, vector<6x12xf32>
    tpu.vector_store %arg14[%c1_71, %c36], %103 {strides = array<i32>} : memref<8x96xf32, #tpu.memory_space<vmem>>, vector<6x12xf32>,
    %105 = vector.extract_strided_slice %92 {offsets = [0, 72], sizes = [6, 12], strides = [1, 1]} : vector<6x144xf32> to vector<6x12xf32>
    %106 = vector.extract_strided_slice %92 {offsets = [0, 84], sizes = [6, 12], strides = [1, 1]} : vector<6x144xf32> to vector<6x12xf32>
    %107 = arith.maximumf %105, %106 : vector<6x12xf32>
    %c1_72 = arith.constant 1 : index
    %c48 = arith.constant 48 : index
    %108 = vector.load %arg14[%c1_72, %c48] : memref<8x96xf32, #tpu.memory_space<vmem>>, vector<6x12xf32>
    tpu.vector_store %arg14[%c1_72, %c48], %107 {strides = array<i32>} : memref<8x96xf32, #tpu.memory_space<vmem>>, vector<6x12xf32>,
    %109 = vector.extract_strided_slice %92 {offsets = [0, 96], sizes = [6, 12], strides = [1, 1]} : vector<6x144xf32> to vector<6x12xf32>
    %110 = vector.extract_strided_slice %92 {offsets = [0, 108], sizes = [6, 12], strides = [1, 1]} : vector<6x144xf32> to vector<6x12xf32>
    %111 = arith.maximumf %109, %110 : vector<6x12xf32>
    %c1_73 = arith.constant 1 : index
    %c60 = arith.constant 60 : index
    %112 = vector.load %arg14[%c1_73, %c60] : memref<8x96xf32, #tpu.memory_space<vmem>>, vector<6x12xf32>
    tpu.vector_store %arg14[%c1_73, %c60], %111 {strides = array<i32>} : memref<8x96xf32, #tpu.memory_space<vmem>>, vector<6x12xf32>,
    %113 = vector.extract_strided_slice %92 {offsets = [0, 120], sizes = [6, 12], strides = [1, 1]} : vector<6x144xf32> to vector<6x12xf32>
    %114 = vector.extract_strided_slice %92 {offsets = [0, 132], sizes = [6, 12], strides = [1, 1]} : vector<6x144xf32> to vector<6x12xf32>
    %115 = arith.maximumf %113, %114 : vector<6x12xf32>
    %c1_74 = arith.constant 1 : index
    %c72 = arith.constant 72 : index
    %116 = vector.load %arg14[%c1_74, %c72] : memref<8x96xf32, #tpu.memory_space<vmem>>, vector<6x12xf32>
    tpu.vector_store %arg14[%c1_74, %c72], %115 {strides = array<i32>} : memref<8x96xf32, #tpu.memory_space<vmem>>, vector<6x12xf32>,
    %c0_75 = arith.constant 0 : index
    %c0_76 = arith.constant 0 : index
    %117 = vector.load %arg14[%c0_75, %c0_76] : memref<8x96xf32, #tpu.memory_space<vmem>>, vector<8x96xf32>
    %118 = vector.extract_strided_slice %117 {offsets = [0, 0], sizes = [4, 96], strides = [1, 1]} : vector<8x96xf32> to vector<4x96xf32>
    %c0_77 = arith.constant 0 : index
    %c0_78 = arith.constant 0 : index
    %c0_79 = arith.constant 0 : index
    %119 = vector.load %arg6[%c0_77, %c0_78, %c0_79] : memref<5x96x96xf32, #tpu.memory_space<vmem>>, vector<1x96x96xf32>
    %120 = vector.shape_cast %119 : vector<1x96x96xf32> to vector<96x96xf32>
    %cst_80 = arith.constant dense<0.000000e+00> : vector<4x96xf32>
    %121 = tpu.matmul %118, %120, %cst_80 {dimension_numbers = #tpu.dot_dimension_numbers<[1], [0], [0], [1], [0, 0, 1, 1], [], []>} : vector<4x96xf32>, vector<96x96xf32>, vector<4x96xf32> -> vector<4x96xf32>
    %122 = vector.extract_strided_slice %117 {offsets = [1, 0], sizes = [4, 96], strides = [1, 1]} : vector<8x96xf32> to vector<4x96xf32>
    %c1_81 = arith.constant 1 : index
    %c0_82 = arith.constant 0 : index
    %c0_83 = arith.constant 0 : index
    %123 = vector.load %arg6[%c1_81, %c0_82, %c0_83] : memref<5x96x96xf32, #tpu.memory_space<vmem>>, vector<1x96x96xf32>
    %124 = vector.shape_cast %123 : vector<1x96x96xf32> to vector<96x96xf32>
    %cst_84 = arith.constant dense<0.000000e+00> : vector<4x96xf32>
    %125 = tpu.matmul %122, %124, %cst_84 {dimension_numbers = #tpu.dot_dimension_numbers<[1], [0], [0], [1], [0, 0, 1, 1], [], []>} : vector<4x96xf32>, vector<96x96xf32>, vector<4x96xf32> -> vector<4x96xf32>
    %126 = arith.addf %121, %125 : vector<4x96xf32>
    %127 = vector.extract_strided_slice %117 {offsets = [2, 0], sizes = [4, 96], strides = [1, 1]} : vector<8x96xf32> to vector<4x96xf32>
    %c2_85 = arith.constant 2 : index
    %c0_86 = arith.constant 0 : index
    %c0_87 = arith.constant 0 : index
    %128 = vector.load %arg6[%c2_85, %c0_86, %c0_87] : memref<5x96x96xf32, #tpu.memory_space<vmem>>, vector<1x96x96xf32>
    %129 = vector.shape_cast %128 : vector<1x96x96xf32> to vector<96x96xf32>
    %cst_88 = arith.constant dense<0.000000e+00> : vector<4x96xf32>
    %130 = tpu.matmul %127, %129, %cst_88 {dimension_numbers = #tpu.dot_dimension_numbers<[1], [0], [0], [1], [0, 0, 1, 1], [], []>} : vector<4x96xf32>, vector<96x96xf32>, vector<4x96xf32> -> vector<4x96xf32>
    %131 = arith.addf %126, %130 : vector<4x96xf32>
    %132 = vector.extract_strided_slice %117 {offsets = [3, 0], sizes = [4, 96], strides = [1, 1]} : vector<8x96xf32> to vector<4x96xf32>
    %c3_89 = arith.constant 3 : index
    %c0_90 = arith.constant 0 : index
    %c0_91 = arith.constant 0 : index
    %133 = vector.load %arg6[%c3_89, %c0_90, %c0_91] : memref<5x96x96xf32, #tpu.memory_space<vmem>>, vector<1x96x96xf32>
    %134 = vector.shape_cast %133 : vector<1x96x96xf32> to vector<96x96xf32>
    %cst_92 = arith.constant dense<0.000000e+00> : vector<4x96xf32>
    %135 = tpu.matmul %132, %134, %cst_92 {dimension_numbers = #tpu.dot_dimension_numbers<[1], [0], [0], [1], [0, 0, 1, 1], [], []>} : vector<4x96xf32>, vector<96x96xf32>, vector<4x96xf32> -> vector<4x96xf32>
    %136 = arith.addf %131, %135 : vector<4x96xf32>
    %137 = vector.extract_strided_slice %117 {offsets = [4, 0], sizes = [4, 96], strides = [1, 1]} : vector<8x96xf32> to vector<4x96xf32>
    %c4_93 = arith.constant 4 : index
    %c0_94 = arith.constant 0 : index
    %c0_95 = arith.constant 0 : index
    %138 = vector.load %arg6[%c4_93, %c0_94, %c0_95] : memref<5x96x96xf32, #tpu.memory_space<vmem>>, vector<1x96x96xf32>
    %139 = vector.shape_cast %138 : vector<1x96x96xf32> to vector<96x96xf32>
    %cst_96 = arith.constant dense<0.000000e+00> : vector<4x96xf32>
    %140 = tpu.matmul %137, %139, %cst_96 {dimension_numbers = #tpu.dot_dimension_numbers<[1], [0], [0], [1], [0, 0, 1, 1], [], []>} : vector<4x96xf32>, vector<96x96xf32>, vector<4x96xf32> -> vector<4x96xf32>
    %141 = arith.addf %136, %140 : vector<4x96xf32>
    %c0_97 = arith.constant 0 : index
    %c0_98 = arith.constant 0 : index
    %142 = vector.load %arg7[%c0_97, %c0_98] : memref<1x96xf32, #tpu.memory_space<vmem>>, vector<1x96xf32>
    %143 = vector.broadcast %142 : vector<1x96xf32> to vector<4x96xf32>
    %144 = arith.addf %141, %143 : vector<4x96xf32>
    %cst_99 = arith.constant 0.000000e+00 : f32
    %145 = vector.broadcast %cst_99 : f32 to vector<4x96xf32>
    %146 = arith.maximumf %144, %145 : vector<4x96xf32>
    %c1_100 = arith.constant 1 : index
    %c24_101 = arith.constant 24 : index
    %147 = vector.load %arg15[%c1_100, %c24_101] : memref<6x144xf32, #tpu.memory_space<vmem>>, vector<4x96xf32>
    tpu.vector_store %arg15[%c1_100, %c24_101], %146 {strides = array<i32>} : memref<6x144xf32, #tpu.memory_space<vmem>>, vector<4x96xf32>,
    %c0_102 = arith.constant 0 : index
    %c0_103 = arith.constant 0 : index
    %148 = vector.load %arg15[%c0_102, %c0_103] : memref<6x144xf32, #tpu.memory_space<vmem>>, vector<6x144xf32>
    %149 = vector.extract_strided_slice %148 {offsets = [0, 0], sizes = [2, 144], strides = [1, 1]} : vector<6x144xf32> to vector<2x144xf32>
    %c0_104 = arith.constant 0 : index
    %c0_105 = arith.constant 0 : index
    %c0_106 = arith.constant 0 : index
    %150 = vector.load %arg8[%c0_104, %c0_105, %c0_106] : memref<5x144x48xf32, #tpu.memory_space<vmem>>, vector<1x144x48xf32>
    %151 = vector.shape_cast %150 : vector<1x144x48xf32> to vector<144x48xf32>
    %cst_107 = arith.constant dense<0.000000e+00> : vector<2x48xf32>
    %152 = tpu.matmul %149, %151, %cst_107 {dimension_numbers = #tpu.dot_dimension_numbers<[1], [0], [0], [1], [0, 0, 1, 1], [], []>} : vector<2x144xf32>, vector<144x48xf32>, vector<2x48xf32> -> vector<2x48xf32>
    %153 = vector.extract_strided_slice %148 {offsets = [1, 0], sizes = [2, 144], strides = [1, 1]} : vector<6x144xf32> to vector<2x144xf32>
    %c1_108 = arith.constant 1 : index
    %c0_109 = arith.constant 0 : index
    %c0_110 = arith.constant 0 : index
    %154 = vector.load %arg8[%c1_108, %c0_109, %c0_110] : memref<5x144x48xf32, #tpu.memory_space<vmem>>, vector<1x144x48xf32>
    %155 = vector.shape_cast %154 : vector<1x144x48xf32> to vector<144x48xf32>
    %cst_111 = arith.constant dense<0.000000e+00> : vector<2x48xf32>
    %156 = tpu.matmul %153, %155, %cst_111 {dimension_numbers = #tpu.dot_dimension_numbers<[1], [0], [0], [1], [0, 0, 1, 1], [], []>} : vector<2x144xf32>, vector<144x48xf32>, vector<2x48xf32> -> vector<2x48xf32>
    %157 = arith.addf %152, %156 : vector<2x48xf32>
    %158 = vector.extract_strided_slice %148 {offsets = [2, 0], sizes = [2, 144], strides = [1, 1]} : vector<6x144xf32> to vector<2x144xf32>
    %c2_112 = arith.constant 2 : index
    %c0_113 = arith.constant 0 : index
    %c0_114 = arith.constant 0 : index
    %159 = vector.load %arg8[%c2_112, %c0_113, %c0_114] : memref<5x144x48xf32, #tpu.memory_space<vmem>>, vector<1x144x48xf32>
    %160 = vector.shape_cast %159 : vector<1x144x48xf32> to vector<144x48xf32>
    %cst_115 = arith.constant dense<0.000000e+00> : vector<2x48xf32>
    %161 = tpu.matmul %158, %160, %cst_115 {dimension_numbers = #tpu.dot_dimension_numbers<[1], [0], [0], [1], [0, 0, 1, 1], [], []>} : vector<2x144xf32>, vector<144x48xf32>, vector<2x48xf32> -> vector<2x48xf32>
    %162 = arith.addf %157, %161 : vector<2x48xf32>
    %163 = vector.extract_strided_slice %148 {offsets = [3, 0], sizes = [2, 144], strides = [1, 1]} : vector<6x144xf32> to vector<2x144xf32>
    %c3_116 = arith.constant 3 : index
    %c0_117 = arith.constant 0 : index
    %c0_118 = arith.constant 0 : index
    %164 = vector.load %arg8[%c3_116, %c0_117, %c0_118] : memref<5x144x48xf32, #tpu.memory_space<vmem>>, vector<1x144x48xf32>
    %165 = vector.shape_cast %164 : vector<1x144x48xf32> to vector<144x48xf32>
    %cst_119 = arith.constant dense<0.000000e+00> : vector<2x48xf32>
    %166 = tpu.matmul %163, %165, %cst_119 {dimension_numbers = #tpu.dot_dimension_numbers<[1], [0], [0], [1], [0, 0, 1, 1], [], []>} : vector<2x144xf32>, vector<144x48xf32>, vector<2x48xf32> -> vector<2x48xf32>
    %167 = arith.addf %162, %166 : vector<2x48xf32>
    %168 = vector.extract_strided_slice %148 {offsets = [4, 0], sizes = [2, 144], strides = [1, 1]} : vector<6x144xf32> to vector<2x144xf32>
    %c4_120 = arith.constant 4 : index
    %c0_121 = arith.constant 0 : index
    %c0_122 = arith.constant 0 : index
    %169 = vector.load %arg8[%c4_120, %c0_121, %c0_122] : memref<5x144x48xf32, #tpu.memory_space<vmem>>, vector<1x144x48xf32>
    %170 = vector.shape_cast %169 : vector<1x144x48xf32> to vector<144x48xf32>
    %cst_123 = arith.constant dense<0.000000e+00> : vector<2x48xf32>
    %171 = tpu.matmul %168, %170, %cst_123 {dimension_numbers = #tpu.dot_dimension_numbers<[1], [0], [0], [1], [0, 0, 1, 1], [], []>} : vector<2x144xf32>, vector<144x48xf32>, vector<2x48xf32> -> vector<2x48xf32>
    %172 = arith.addf %167, %171 : vector<2x48xf32>
    %c0_124 = arith.constant 0 : index
    %c0_125 = arith.constant 0 : index
    %173 = vector.load %arg9[%c0_124, %c0_125] : memref<1x48xf32, #tpu.memory_space<vmem>>, vector<1x48xf32>
    %174 = vector.broadcast %173 : vector<1x48xf32> to vector<2x48xf32>
    %175 = arith.addf %172, %174 : vector<2x48xf32>
    %cst_126 = arith.constant 0.000000e+00 : f32
    %176 = vector.broadcast %cst_126 : f32 to vector<2x48xf32>
    %177 = arith.maximumf %175, %176 : vector<2x48xf32>
    %c0_127 = arith.constant 0 : index
    %c0_128 = arith.constant 0 : index
    %178 = vector.load %arg11[%c0_127, %c0_128] : memref<1x10xf32, #tpu.memory_space<vmem>>, vector<1x10xf32>
    %179 = vector.extract_strided_slice %177 {offsets = [0, 0], sizes = [1, 48], strides = [1, 1]} : vector<2x48xf32> to vector<1x48xf32>
    %c0_129 = arith.constant 0 : index
    %c0_130 = arith.constant 0 : index
    %180 = vector.load %arg10[%c0_129, %c0_130] : memref<96x10xf32, #tpu.memory_space<vmem>>, vector<48x10xf32>
    %cst_131 = arith.constant dense<0.000000e+00> : vector<1x10xf32>
    %181 = tpu.matmul %179, %180, %cst_131 {dimension_numbers = #tpu.dot_dimension_numbers<[1], [0], [0], [1], [0, 0, 1, 1], [], []>} : vector<1x48xf32>, vector<48x10xf32>, vector<1x10xf32> -> vector<1x10xf32>
    %182 = arith.addf %178, %181 : vector<1x10xf32>
    %183 = vector.extract_strided_slice %177 {offsets = [1, 0], sizes = [1, 48], strides = [1, 1]} : vector<2x48xf32> to vector<1x48xf32>
    %c48_132 = arith.constant 48 : index
    %c0_133 = arith.constant 0 : index
    %184 = vector.load %arg10[%c48_132, %c0_133] : memref<96x10xf32, #tpu.memory_space<vmem>>, vector<48x10xf32>
    %cst_134 = arith.constant dense<0.000000e+00> : vector<1x10xf32>
    %185 = tpu.matmul %183, %184, %cst_134 {dimension_numbers = #tpu.dot_dimension_numbers<[1], [0], [0], [1], [0, 0, 1, 1], [], []>} : vector<1x48xf32>, vector<48x10xf32>, vector<1x10xf32> -> vector<1x10xf32>
    %186 = arith.addf %182, %185 : vector<1x10xf32>
    %c0_135 = arith.constant 0 : index
    %c0_136 = arith.constant 0 : index
    %c0_137 = arith.constant 0 : index
    %187 = vector.load %arg12[%c0_135, %c0_136, %c0_137] : memref<1x1x10xf32, #tpu.memory_space<vmem>>, vector<1x1x10xf32>
    %188 = vector.shape_cast %187 : vector<1x1x10xf32> to vector<1x10xf32>
    %189 = vector.shape_cast %186 : vector<1x10xf32> to vector<1x1x10xf32>
    tpu.vector_store %arg12[%c0_135, %c0_136, %c0_137], %189 {strides = array<i32>} : memref<1x1x10xf32, #tpu.memory_space<vmem>>, vector<1x1x10xf32>,
    return
  }
  func.func @transform_0(%arg0: i32) -> (i32, i32, i32) {
    %c0_i32 = arith.constant 0 : i32
    %c0_i32_0 = arith.constant 0 : i32
    %c0_i32_1 = arith.constant 0 : i32
    return %arg0, %c0_i32, %c0_i32_0 : i32, i32, i32
  }
  func.func @transform_1(%arg0: i32) -> (i32, i32, i32) {
    %c0_i32 = arith.constant 0 : i32
    %c0_i32_0 = arith.constant 0 : i32
    %c0_i32_1 = arith.constant 0 : i32
    %c0_i32_2 = arith.constant 0 : i32
    return %c0_i32, %c0_i32_0, %c0_i32_1 : i32, i32, i32
  }
  func.func @transform_2(%arg0: i32) -> (i32, i32) {
    %c0_i32 = arith.constant 0 : i32
    %c0_i32_0 = arith.constant 0 : i32
    %c0_i32_1 = arith.constant 0 : i32
    return %c0_i32, %c0_i32_0 : i32, i32
  }
  func.func @transform_3(%arg0: i32) -> (i32, i32, i32) {
    %c0_i32 = arith.constant 0 : i32
    %c0_i32_0 = arith.constant 0 : i32
    %c0_i32_1 = arith.constant 0 : i32
    %c0_i32_2 = arith.constant 0 : i32
    return %c0_i32, %c0_i32_0, %c0_i32_1 : i32, i32, i32
  }
  func.func @transform_4(%arg0: i32) -> (i32, i32) {
    %c0_i32 = arith.constant 0 : i32
    %c0_i32_0 = arith.constant 0 : i32
    %c0_i32_1 = arith.constant 0 : i32
    return %c0_i32, %c0_i32_0 : i32, i32
  }
  func.func @transform_5(%arg0: i32) -> (i32, i32, i32) {
    %c0_i32 = arith.constant 0 : i32
    %c0_i32_0 = arith.constant 0 : i32
    %c0_i32_1 = arith.constant 0 : i32
    %c0_i32_2 = arith.constant 0 : i32
    return %c0_i32, %c0_i32_0, %c0_i32_1 : i32, i32, i32
  }
  func.func @transform_6(%arg0: i32) -> (i32, i32) {
    %c0_i32 = arith.constant 0 : i32
    %c0_i32_0 = arith.constant 0 : i32
    %c0_i32_1 = arith.constant 0 : i32
    return %c0_i32, %c0_i32_0 : i32, i32
  }
  func.func @transform_7(%arg0: i32) -> (i32, i32, i32) {
    %c0_i32 = arith.constant 0 : i32
    %c0_i32_0 = arith.constant 0 : i32
    %c0_i32_1 = arith.constant 0 : i32
    %c0_i32_2 = arith.constant 0 : i32
    return %c0_i32, %c0_i32_0, %c0_i32_1 : i32, i32, i32
  }
  func.func @transform_8(%arg0: i32) -> (i32, i32) {
    %c0_i32 = arith.constant 0 : i32
    %c0_i32_0 = arith.constant 0 : i32
    %c0_i32_1 = arith.constant 0 : i32
    return %c0_i32, %c0_i32_0 : i32, i32
  }
  func.func @transform_9(%arg0: i32) -> (i32, i32) {
    %c0_i32 = arith.constant 0 : i32
    %c0_i32_0 = arith.constant 0 : i32
    %c0_i32_1 = arith.constant 0 : i32
    return %c0_i32, %c0_i32_0 : i32, i32
  }
  func.func @transform_10(%arg0: i32) -> (i32, i32) {
    %c0_i32 = arith.constant 0 : i32
    %c0_i32_0 = arith.constant 0 : i32
    %c0_i32_1 = arith.constant 0 : i32
    return %c0_i32, %c0_i32_0 : i32, i32
  }
  func.func @transform_11(%arg0: i32) -> (i32, i32, i32) {
    %c0_i32 = arith.constant 0 : i32
    %c0_i32_0 = arith.constant 0 : i32
    %c0_i32_1 = arith.constant 0 : i32
    return %arg0, %c0_i32, %c0_i32_0 : i32, i32, i32
  }
}

</mosaic_0001>

<llo_original>
// kernel: network_forward.1
$region0: #{network_forward.1}
  #allocation0 [shape = 'u32[]', space=smem, size = 0x4, offset = 0x4, fixed_abs, tag = 'smem constant byte address 0x4 - core index']
  #allocation1 [shape = 'u32[144,128]{1,0:T(1,128)}', space=vmem, size = 0x12000, scoped, tag = 'internal scratch']
  #allocation2 [shape = 'f32[16,192]{1,0:T(8,128)}', space=vmem, size = 0x4000, scoped, tag = 'scratch operand']
  #allocation3 [shape = 'f32[8,96]{1,0:T(8,128)}', space=vmem, size = 0x1000, scoped, tag = 'scratch operand']
  #allocation4 [shape = 'f32[6,144]{1,0:T(8,128)}', space=vmem, size = 0x2000, scoped, tag = 'scratch operand']
  #allocation5 [shape = 'f32[6,144]{1,0:T(8,128)}', space=vmem, size = 0x2000, scoped, tag = 'scratch operand']
  %s0 = inlined_call_operand.vmem [shape: f32[2,18,54], index: 0, kind: input, shape index: {}]
  %s1 = inlined_call_operand.vmem [shape: f32[5,54,168], index: 1, kind: input, shape index: {}]
  %s2 = inlined_call_operand.vmem [shape: f32[1,168], index: 2, kind: input, shape index: {}]
  %s3 = inlined_call_operand.vmem [shape: f32[5,192,144], index: 3, kind: input, shape index: {}]
  %s4 = inlined_call_operand.vmem [shape: f32[1,144], index: 4, kind: input, shape index: {}]
  %s5 = inlined_call_operand.vmem [shape: f32[5,96,96], index: 5, kind: input, shape index: {}]
  %s6 = inlined_call_operand.vmem [shape: f32[1,96], index: 6, kind: input, shape index: {}]
  %s7 = inlined_call_operand.vmem [shape: f32[5,144,48], index: 7, kind: input, shape index: {}]
  %s8 = inlined_call_operand.vmem [shape: f32[1,48], index: 8, kind: input, shape index: {}]
  %s9 = inlined_call_operand.vmem [shape: f32[96,10], index: 9, kind: input, shape index: {}]
  %s10 = inlined_call_operand.vmem [shape: f32[1,10], index: 10, kind: input, shape index: {}]
  %s11 = inlined_call_operand.hbm [shape: f32[2,1,10], index: 11, kind: output, shape index: {}]
  %s12 = sld [smem:[#allocation0]]
  $region77: #{network_forward.1} parent=0
    _
  %s14 = ssub.s32 1, %s12
  %s15 = scalar_select 0, %s14, %s12
  $region1: #{network_forward.1} parent=0
    #allocation6 [shape = 'u8[1024]{0}', space=vmem, size = 0x400, scoped, tag = 'output window, operand 0']
    #allocation7 [shape = 's32[2]{0}', space=sflag, size = 0x8, scoped, tag = 'scoped memory for network_forward.1']
    %16 = vsyncpa [#allocation7], 0
    %s17 = scalar_lea.sflag [#allocation7], 1
    %18 = vsyncpa %s17, 0
    loop: start=0, step=1, limit=4
    $region2: #{network_forward.1} parent=1 // loop_pre_header
      _
    $region3: #{network_forward.1} parent=1 // loop_header
      %s20 = sphi 0, %s24
      %p21 = scmp.ge.s32.totalorder %s20, 4
      %s30 = sphi 0, %s32
      %s33 = sphi 0, %s30
      %s34 = sphi 0, %s33
      %s50 = sphi 0, %s34
      %s54 = sphi 0, %s54
      %s56 = sphi 0, %s54
      %s57 = sphi 0, %s56
      %s71 = sphi 0, %s57
      %s75 = sphi 0, %s75
      %s77 = sphi 0, %s75
      %s78 = sphi 0, %s77
      %s92 = sphi 0, %s78
      %s96 = sphi 0, %s96
      %s98 = sphi 0, %s96
      %s99 = sphi 0, %s98
      %s113 = sphi 0, %s99
      %s117 = sphi 0, %s117
      %s119 = sphi 0, %s117
      %s120 = sphi 0, %s119
      %s134 = sphi 0, %s120
      %s138 = sphi 0, %s138
      %s140 = sphi 0, %s138
      %s141 = sphi 0, %s140
      %s155 = sphi 0, %s141
      %s159 = sphi 0, %s159
      %s161 = sphi 0, %s159
      %s162 = sphi 0, %s161
      %s176 = sphi 0, %s162
      %s180 = sphi 0, %s180
      %s182 = sphi 0, %s180
      %s183 = sphi 0, %s182
      %s197 = sphi 0, %s183
      %s201 = sphi 0, %s201
      %s203 = sphi 0, %s201
      %s204 = sphi 0, %s203
      %s218 = sphi 0, %s204
      %s222 = sphi 0, %s222
      %s224 = sphi 0, %s222
      %s225 = sphi 0, %s224
      %s239 = sphi 0, %s225
      %s243 = sphi 0, %s243
      %s245 = sphi 0, %s243
      %s246 = sphi 0, %s245
      %s260 = sphi 0, %s246
      %s266 = sphi 0, %s268
      %s269 = sphi 0, %s266
      %s270 = sphi 0, %s269
      %s286 = sphi 0, %s270
    $region4: #{network_forward.1} parent=1 // loop_header_branch
      %23 = sbr.rel (%p21) target = $region8
    $region5: #{network_forward.1} parent=1 // loop_body
      %s25 = ssub.s32 %s20, 1
      %s26 = ssub.s32 %s20, 2
      %s27 = sadd.s32 %s20, 1
      %s28 = ssub.s32 %s20, %s27
      %p29 = scmp.eq.s32.totalorder %s28, 0
      %s31 = sadd.s32 %s30, 1
      %s32 = scalar_select %p29, %s30, %s31
      %p35 = pneg %p29
      %p36 = scmp.eq.s32.totalorder %s20, 1
      %p37 = por %p35, %p36
      %p38 = scmp.ne.s32.totalorder %s30, %s33
      %p39 = scmp.eq.s32.totalorder %s20, 0
      %p40 = por %p38, %p39
      %p41 = scmp.ne.s32.totalorder %s30, %s33
      %p42 = scmp.eq.s32.totalorder %s25, 1
      %p43 = por %p41, %p42
      %p44 = scmp.ne.s32.totalorder %s33, %s34
      %p45 = scmp.eq.s32.totalorder %s25, 0
      %p46 = por %p44, %p45
      %p47 = scmp.ne.s32.totalorder %s33, %s34
      %p48 = scmp.eq.s32.totalorder %s26, 1
      %p49 = por %p47, %p48
      %p51 = scmp.ne.s32.totalorder %s34, %s50
      %p52 = scmp.eq.s32.totalorder %s26, 0
      %p53 = por %p51, %p52
      %s55 = sadd.s32 %s54, 1
      %p58 = scmp.eq.s32.totalorder %s20, 1
      %p59 = scmp.ne.s32.totalorder %s54, %s56
      %p60 = scmp.eq.s32.totalorder %s20, 0
      %p61 = por %p59, %p60
      %p62 = scmp.ne.s32.totalorder %s54, %s56
      %p63 = scmp.eq.s32.totalorder %s25, 1
      %p64 = por %p62, %p63
      %p65 = scmp.ne.s32.totalorder %s56, %s57
      %p66 = scmp.eq.s32.totalorder %s25, 0
      %p67 = por %p65, %p66
      %p68 = scmp.ne.s32.totalorder %s56, %s57
      %p69 = scmp.eq.s32.totalorder %s26, 1
      %p70 = por %p68, %p69
      %p72 = scmp.ne.s32.totalorder %s57, %s71
      %p73 = scmp.eq.s32.totalorder %s26, 0
      %p74 = por %p72, %p73
      %s76 = sadd.s32 %s75, 1
      %p79 = scmp.eq.s32.totalorder %s20, 1
      %p80 = scmp.ne.s32.totalorder %s75, %s77
      %p81 = scmp.eq.s32.totalorder %s20, 0
      %p82 = por %p80, %p81
      %p83 = scmp.ne.s32.totalorder %s75, %s77
      %p84 = scmp.eq.s32.totalorder %s25, 1
      %p85 = por %p83, %p84
      %p86 = scmp.ne.s32.totalorder %s77, %s78
      %p87 = scmp.eq.s32.totalorder %s25, 0
      %p88 = por %p86, %p87
      %p89 = scmp.ne.s32.totalorder %s77, %s78
      %p90 = scmp.eq.s32.totalorder %s26, 1
      %p91 = por %p89, %p90
      %p93 = scmp.ne.s32.totalorder %s78, %s92
      %p94 = scmp.eq.s32.totalorder %s26, 0
      %p95 = por %p93, %p94
      %s97 = sadd.s32 %s96, 1
      %p100 = scmp.eq.s32.totalorder %s20, 1
      %p101 = scmp.ne.s32.totalorder %s96, %s98
      %p102 = scmp.eq.s32.totalorder %s20, 0
      %p103 = por %p101, %p102
      %p104 = scmp.ne.s32.totalorder %s96, %s98
      %p105 = scmp.eq.s32.totalorder %s25, 1
      %p106 = por %p104, %p105
      %p107 = scmp.ne.s32.totalorder %s98, %s99
      %p108 = scmp.eq.s32.totalorder %s25, 0
      %p109 = por %p107, %p108
      %p110 = scmp.ne.s32.totalorder %s98, %s99
      %p111 = scmp.eq.s32.totalorder %s26, 1
      %p112 = por %p110, %p111
      %p114 = scmp.ne.s32.totalorder %s99, %s113
      %p115 = scmp.eq.s32.totalorder %s26, 0
      %p116 = por %p114, %p115
      %s118 = sadd.s32 %s117, 1
      %p121 = scmp.eq.s32.totalorder %s20, 1
      %p122 = scmp.ne.s32.totalorder %s117, %s119
      %p123 = scmp.eq.s32.totalorder %s20, 0
      %p124 = por %p122, %p123
      %p125 = scmp.ne.s32.totalorder %s117, %s119
      %p126 = scmp.eq.s32.totalorder %s25, 1
      %p127 = por %p125, %p126
      %p128 = scmp.ne.s32.totalorder %s119, %s120
      %p129 = scmp.eq.s32.totalorder %s25, 0
      %p130 = por %p128, %p129
      %p131 = scmp.ne.s32.totalorder %s119, %s120
      %p132 = scmp.eq.s32.totalorder %s26, 1
      %p133 = por %p131, %p132
      %p135 = scmp.ne.s32.totalorder %s120, %s134
      %p136 = scmp.eq.s32.totalorder %s26, 0
      %p137 = por %p135, %p136
      %s139 = sadd.s32 %s138, 1
      %p142 = scmp.eq.s32.totalorder %s20, 1
      %p143 = scmp.ne.s32.totalorder %s138, %s140
      %p144 = scmp.eq.s32.totalorder %s20, 0
      %p145 = por %p143, %p144
      %p146 = scmp.ne.s32.totalorder %s138, %s140
      %p147 = scmp.eq.s32.totalorder %s25, 1
      %p148 = por %p146, %p147
      %p149 = scmp.ne.s32.totalorder %s140, %s141
      %p150 = scmp.eq.s32.totalorder %s25, 0
      %p151 = por %p149, %p150
      %p152 = scmp.ne.s32.totalorder %s140, %s141
      %p153 = scmp.eq.s32.totalorder %s26, 1
      %p154 = por %p152, %p153
      %p156 = scmp.ne.s32.totalorder %s141, %s155
      %p157 = scmp.eq.s32.totalorder %s26, 0
      %p158 = por %p156, %p157
      %s160 = sadd.s32 %s159, 1
      %p163 = scmp.eq.s32.totalorder %s20, 1
      %p164 = scmp.ne.s32.totalorder %s159, %s161
      %p165 = scmp.eq.s32.totalorder %s20, 0
      %p166 = por %p164, %p165
      %p167 = scmp.ne.s32.totalorder %s159, %s161
      %p168 = scmp.eq.s32.totalorder %s25, 1
      %p169 = por %p167, %p168
      %p170 = scmp.ne.s32.totalorder %s161, %s162
      %p171 = scmp.eq.s32.totalorder %s25, 0
      %p172 = por %p170, %p171
      %p173 = scmp.ne.s32.totalorder %s161, %s162
      %p174 = scmp.eq.s32.totalorder %s26, 1
      %p175 = por %p173, %p174
      %p177 = scmp.ne.s32.totalorder %s162, %s176
      %p178 = scmp.eq.s32.totalorder %s26, 0
      %p179 = por %p177, %p178
      %s181 = sadd.s32 %s180, 1
      %p184 = scmp.eq.s32.totalorder %s20, 1
      %p185 = scmp.ne.s32.totalorder %s180, %s182
      %p186 = scmp.eq.s32.totalorder %s20, 0
      %p187 = por %p185, %p186
      %p188 = scmp.ne.s32.totalorder %s180, %s182
      %p189 = scmp.eq.s32.totalorder %s25, 1
      %p190 = por %p188, %p189
      %p191 = scmp.ne.s32.totalorder %s182, %s183
      %p192 = scmp.eq.s32.totalorder %s25, 0
      %p193 = por %p191, %p192
      %p194 = scmp.ne.s32.totalorder %s182, %s183
      %p195 = scmp.eq.s32.totalorder %s26, 1
      %p196 = por %p194, %p195
      %p198 = scmp.ne.s32.totalorder %s183, %s197
      %p199 = scmp.eq.s32.totalorder %s26, 0
      %p200 = por %p198, %p199
      %s202 = sadd.s32 %s201, 1
      %p205 = scmp.eq.s32.totalorder %s20, 1
      %p206 = scmp.ne.s32.totalorder %s201, %s203
      %p207 = scmp.eq.s32.totalorder %s20, 0
      %p208 = por %p206, %p207
      %p209 = scmp.ne.s32.totalorder %s201, %s203
      %p210 = scmp.eq.s32.totalorder %s25, 1
      %p211 = por %p209, %p210
      %p212 = scmp.ne.s32.totalorder %s203, %s204
      %p213 = scmp.eq.s32.totalorder %s25, 0
      %p214 = por %p212, %p213
      %p215 = scmp.ne.s32.totalorder %s203, %s204
      %p216 = scmp.eq.s32.totalorder %s26, 1
      %p217 = por %p215, %p216
      %p219 = scmp.ne.s32.totalorder %s204, %s218
      %p220 = scmp.eq.s32.totalorder %s26, 0
      %p221 = por %p219, %p220
      %s223 = sadd.s32 %s222, 1
      %p226 = scmp.eq.s32.totalorder %s20, 1
      %p227 = scmp.ne.s32.totalorder %s222, %s224
      %p228 = scmp.eq.s32.totalorder %s20, 0
      %p229 = por %p227, %p228
      %p230 = scmp.ne.s32.totalorder %s222, %s224
      %p231 = scmp.eq.s32.totalorder %s25, 1
      %p232 = por %p230, %p231
      %p233 = scmp.ne.s32.totalorder %s224, %s225
      %p234 = scmp.eq.s32.totalorder %s25, 0
      %p235 = por %p233, %p234
      %p236 = scmp.ne.s32.totalorder %s224, %s225
      %p237 = scmp.eq.s32.totalorder %s26, 1
      %p238 = por %p236, %p237
      %p240 = scmp.ne.s32.totalorder %s225, %s239
      %p241 = scmp.eq.s32.totalorder %s26, 0
      %p242 = por %p240, %p241
      %s244 = sadd.s32 %s243, 1
      %p247 = scmp.eq.s32.totalorder %s20, 1
      %p248 = scmp.ne.s32.totalorder %s243, %s245
      %p249 = scmp.eq.s32.totalorder %s20, 0
      %p250 = por %p248, %p249
      %p251 = scmp.ne.s32.totalorder %s243, %s245
      %p252 = scmp.eq.s32.totalorder %s25, 1
      %p253 = por %p251, %p252
      %p254 = scmp.ne.s32.totalorder %s245, %s246
      %p255 = scmp.eq.s32.totalorder %s25, 0
      %p256 = por %p254, %p255
      %p257 = scmp.ne.s32.totalorder %s245, %s246
      %p258 = scmp.eq.s32.totalorder %s26, 1
      %p259 = por %p257, %p258
      %p261 = scmp.ne.s32.totalorder %s246, %s260
      %p262 = scmp.eq.s32.totalorder %s26, 0
      %p263 = por %p261, %p262
      %s264 = ssub.s32 %s20, %s27
      %p265 = scmp.eq.s32.totalorder %s264, 0
      %s267 = sadd.s32 %s266, 1
      %s268 = scalar_select %p265, %s266, %s267
      %p271 = pneg %p265
      %p272 = scmp.eq.s32.totalorder %s20, 1
      %p273 = por %p271, %p272
      %p274 = scmp.ne.s32.totalorder %s266, %s269
      %p275 = scmp.eq.s32.totalorder %s20, 0
      %p276 = por %p274, %p275
      %p277 = scmp.ne.s32.totalorder %s266, %s269
      %p278 = scmp.eq.s32.totalorder %s25, 1
      %p279 = por %p277, %p278
      %p280 = scmp.ne.s32.totalorder %s269, %s270
      %p281 = scmp.eq.s32.totalorder %s25, 0
      %p282 = por %p280, %p281
      %p283 = scmp.ne.s32.totalorder %s269, %s270
      %p284 = scmp.eq.s32.totalorder %s26, 1
      %p285 = por %p283, %p284
      %p287 = scmp.ne.s32.totalorder %s270, %s286
      %p288 = scmp.eq.s32.totalorder %s26, 0
      %p289 = por %p287, %p288
      %p290 = scmp.le.s32.totalorder 1, %s20
      %p291 = scmp.lt.s32.totalorder %s20, 3
      %p292 = pnand %p290, %p291
      %p293 = pneg %p292
      // Predicated region
      $region9: #{network_forward.1} parent=5 // pred_check
        _
      $region10: #{network_forward.1} parent=5 // pred_check_branch
        %295 = sbr.rel (%p292) target = $region12
      $region11: #{network_forward.1} parent=5 // pred_region
        %s296 = ssub.s32 %s20, 1
        // Predicated region
        $region13: #{network_forward.1} parent=11 // pred_check
          %p297 = pneg %p67
        $region14: #{network_forward.1} parent=11 // pred_check_branch
          %299 = sbr.rel (%p297) target = $region16
        $region15: #{network_forward.1} parent=11 // pred_region
          _
        $region16: #{network_forward.1} parent=11 // pred_fallthru
          _
        // Predicated region
        $region17: #{network_forward.1} parent=11 // pred_check
          %p300 = pneg %p88
        $region18: #{network_forward.1} parent=11 // pred_check_branch
          %302 = sbr.rel (%p300) target = $region20
        $region19: #{network_forward.1} parent=11 // pred_region
          _
        $region20: #{network_forward.1} parent=11 // pred_fallthru
          _
        // Predicated region
        $region21: #{network_forward.1} parent=11 // pred_check
          %p303 = pneg %p109
        $region22: #{network_forward.1} parent=11 // pred_check_branch
          %305 = sbr.rel (%p303) target = $region24
        $region23: #{network_forward.1} parent=11 // pred_region
          _
        $region24: #{network_forward.1} parent=11 // pred_fallthru
          _
        // Predicated region
        $region25: #{network_forward.1} parent=11 // pred_check
          %p306 = pneg %p130
        $region26: #{network_forward.1} parent=11 // pred_check_branch
          %308 = sbr.rel (%p306) target = $region28
        $region27: #{network_forward.1} parent=11 // pred_region
          _
        $region28: #{network_forward.1} parent=11 // pred_fallthru
          _
        // Predicated region
        $region29: #{network_forward.1} parent=11 // pred_check
          %p309 = pneg %p151
        $region30: #{network_forward.1} parent=11 // pred_check_branch
          %311 = sbr.rel (%p309) target = $region32
        $region31: #{network_forward.1} parent=11 // pred_region
          _
        $region32: #{network_forward.1} parent=11 // pred_fallthru
          _
        // Predicated region
        $region33: #{network_forward.1} parent=11 // pred_check
          %p312 = pneg %p172
        $region34: #{network_forward.1} parent=11 // pred_check_branch
          %314 = sbr.rel (%p312) target = $region36
        $region35: #{network_forward.1} parent=11 // pred_region
          _
        $region36: #{network_forward.1} parent=11 // pred_fallthru
          _
        // Predicated region
        $region37: #{network_forward.1} parent=11 // pred_check
          %p315 = pneg %p193
        $region38: #{network_forward.1} parent=11 // pred_check_branch
          %317 = sbr.rel (%p315) target = $region40
        $region39: #{network_forward.1} parent=11 // pred_region
          _
        $region40: #{network_forward.1} parent=11 // pred_fallthru
          _
        // Predicated region
        $region41: #{network_forward.1} parent=11 // pred_check
          %p318 = pneg %p214
        $region42: #{network_forward.1} parent=11 // pred_check_branch
          %320 = sbr.rel (%p318) target = $region44
        $region43: #{network_forward.1} parent=11 // pred_region
          _
        $region44: #{network_forward.1} parent=11 // pred_fallthru
          _
        // Predicated region
        $region45: #{network_forward.1} parent=11 // pred_check
          %p321 = pneg %p235
        $region46: #{network_forward.1} parent=11 // pred_check_branch
          %323 = sbr.rel (%p321) target = $region48
        $region47: #{network_forward.1} parent=11 // pred_region
          _
        $region48: #{network_forward.1} parent=11 // pred_fallthru
          _
        // Predicated region
        $region49: #{network_forward.1} parent=11 // pred_check
          %p324 = pneg %p256
        $region50: #{network_forward.1} parent=11 // pred_check_branch
          %326 = sbr.rel (%p324) target = $region52
        $region51: #{network_forward.1} parent=11 // pred_region
          _
        $region52: #{network_forward.1} parent=11 // pred_fallthru
          _
      $region12: #{network_forward.1} parent=5 // pred_fallthru
        _
      %p327 = scmp.lt.s32.totalorder %s20, 2
      // Predicated region
      $region53: #{network_forward.1} parent=5 // pred_check
        %p328 = pneg %p327
      $region54: #{network_forward.1} parent=5 // pred_check_branch
        %330 = sbr.rel (%p328) target = $region56
      $region55: #{network_forward.1} parent=5 // pred_region
        // Predicated region
        $region57: #{network_forward.1} parent=55 // pred_check
          %p331 = pneg %p40
        $region58: #{network_forward.1} parent=55 // pred_check_branch
          %333 = sbr.rel (%p331) target = $region60
        $region59: #{network_forward.1} parent=55 // pred_region
          %p334 = scmp.lt.s32.totalorder %s20, 1
          %s335 = scalar_select %p334, %s20, 1
          %s336 = smul.addr %s335, 3
          %s337 = smul.addr %s336, 8
          %s338 = scalar_lea.vmem %s0, %s337
        $region60: #{network_forward.1} parent=55 // pred_fallthru
          _
      $region56: #{network_forward.1} parent=5 // pred_fallthru
        _
      %p339 = scmp.le.s32.totalorder 1, %s20
      %p340 = scmp.lt.s32.totalorder %s20, 3
      %p341 = pnand %p339, %p340
      %p342 = pneg %p341
      // Predicated region
      $region61: #{network_forward.1} parent=5 // pred_check
        _
      $region62: #{network_forward.1} parent=5 // pred_check_branch
        %344 = sbr.rel (%p341) target = $region64
      $region63: #{network_forward.1} parent=5 // pred_region
        %s345 = ssub.s32 %s20, 1
        %p346 = scmp.lt.s32.totalorder %s25, 1
        %s347 = scalar_select %p346, %s25, 1
        %s348 = smul.addr %s347, 3
        %s349 = smul.addr %s348, 8
        %s350 = scalar_lea.vmem %s0, %s349
        %p351 = pneg %p46
        %p352 = pneg %p43
        %p353 = pneg %p67
        %p354 = pneg %p64
        %p355 = pneg %p88
        %p356 = pneg %p85
        %p357 = pneg %p109
        %p358 = pneg %p106
        %p359 = pneg %p130
        %p360 = pneg %p127
        %p361 = pneg %p151
        %p362 = pneg %p148
        %p363 = pneg %p172
        %p364 = pneg %p169
        %p365 = pneg %p193
        %p366 = pneg %p190
        %p367 = pneg %p214
        %p368 = pneg %p211
        %p369 = pneg %p235
        %p370 = pneg %p232
        %p371 = pneg %p256
        %p372 = pneg %p253
        %p373 = pneg %p282
        %p374 = pneg %p279
        %s375 = sand.u32 %s269, 1
        %s376 = scalar_lea.sflag [#allocation7], %s375
        %s377 = sand.u32 %s269, 1
        %s378 = scalar_lea.vmem [#allocation6], %s377
        %p379 = scmp.lt.s32.totalorder %s25, 1
        %s380 = scalar_select %p379, %s25, 1
        %s381 = smul.addr %s380, 3
        %s382 = smul.addr %s381, 8
        %s383 = scalar_lea.vmem %s0, %s382
        %384 = vst [vmem:[#allocation2] sm:$0xff] 0.0
        %vm385 = vcmask 523264
        %386 = vst.msk [vmem:[#allocation2 + $0x8] sm:$0xff] %vm385, 0.0
        %387 = vst [vmem:[#allocation2 + $0x10] sm:$0xff] 0.0
        %388 = vst.msk [vmem:[#allocation2 + $0x18] sm:$0xff] %vm385, 0.0
        %vm389 = vcmask 785408
        %390 = vst.msk [vmem:[#allocation3] sm:$0xff] %vm389, 0.0
        %391 = vst [vmem:[#allocation4] sm:$0x3f] 0.0
        %vm392 = vcmask 128000
        %393 = vst.msk [vmem:[#allocation4 + $0x8] sm:$0x3f] %vm392, 0.0
        %v394 = vld [vmem:[%s383] sm:$0xff]
        %v395 = vld [vmem:[%s383 + $0x8] sm:$0xff]
        %v396 = vld [vmem:[%s383 + $0x10] sm:$0x3]
        %v397 = vld [vmem:[%s1] sm:$0xff]
        %v398 = vld [vmem:[%s1 + $0x8] sm:$0xff]
        %v399 = vld [vmem:[%s1 + $0x10] sm:$0xff]
        %v400 = vld [vmem:[%s1 + $0x18] sm:$0xff]
        %v401 = vld [vmem:[%s1 + $0x20] sm:$0xff]
        %v402 = vld [vmem:[%s1 + $0x28] sm:$0xff]
        %v403 = vld [vmem:[%s1 + $0x30] sm:$0xff]
        %v404 = vld [vmem:[%s1 + $0x38] sm:$0xff]
        %v405 = vld [vmem:[%s1 + $0x40] sm:$0xff]
        %v406 = vld [vmem:[%s1 + $0x48] sm:$0xff]
        %v407 = vld [vmem:[%s1 + $0x50] sm:$0xff]
        %v408 = vld [vmem:[%s1 + $0x58] sm:$0xff]
        %v409 = vld [vmem:[%s1 + $0x60] sm:$0x3f]
        %v410 = vld [vmem:[%s1 + $0x68] sm:$0x3f]
        %s411 = scalar_lea.vmem %s1, 112
        %v412 = vld [vmem:[%s411] sm:$0xff]
        %v413 = vld [vmem:[%s411 + $0x8] sm:$0xff]
        %v414 = vld [vmem:[%s411 + $0x10] sm:$0xff]
        %v415 = vld [vmem:[%s411 + $0x18] sm:$0xff]
        %v416 = vld [vmem:[%s411 + $0x20] sm:$0xff]
        %v417 = vld [vmem:[%s411 + $0x28] sm:$0xff]
        %v418 = vld [vmem:[%s411 + $0x30] sm:$0xff]
        %v419 = vld [vmem:[%s411 + $0x38] sm:$0xff]
        %v420 = vld [vmem:[%s411 + $0x40] sm:$0xff]
        %v421 = vld [vmem:[%s411 + $0x48] sm:$0xff]
        %v422 = vld [vmem:[%s411 + $0x50] sm:$0xff]
        %v423 = vld [vmem:[%s411 + $0x58] sm:$0xff]
        %v424 = vld [vmem:[%s411 + $0x60] sm:$0x3f]
        %v425 = vld [vmem:[%s411 + $0x68] sm:$0x3f]
        %vm428 = vcmask 1046528
        %v429 = vrot.slane %v394, 1
        %v430 = vrot.slane %v395, 1
        %v431 = vsel %vm428, %v429, %v430
        %vm432 = vcmask 441344
        %v433 = vsel %vm432, %v431, 0
        %v435 = vsel %vm432, %v430, 0
        %vm437 = vcmask 1045504
        %v439 = vsel %vm437, %v424, 0
        %v442 = vsel %vm437, %v425, 0
        %444 = vmatprep.subr.mxu0 %v413
        %445 = vmatpush1.msra.mxu0 %v412
        %446 = vmatprep.subr.mxu0 %v415
        %447 = vmatpush1.msra.mxu0 %v414
        %448 = vmatprep.subr.mxu0 %v417
        %449 = vmatpush1.msra.mxu0 %v416
        %450 = vmatprep.subr.mxu0 %v419
        %451 = vmatpush1.msra.mxu0 %v418
        %452 = vmatprep.subr.mxu0 %v421
        %453 = vmatpush1.msra.mxu0 %v420
        %454 = vmatprep.subr.mxu0 %v423
        %455 = vmatpush1.msra.mxu0 %v422
        %456 = vmatprep.subr.mxu0 %v442
        %457 = vmatpush1.msra.mxu0 %v439
        %458 = vmatprep.subr.mxu0 0.0
        %459 = vmatpush1.msra.mxu0 0.0
        %460 = vmatprep.subr.mxu0 0.0
        %461 = vmatpush1.msra.mxu0 0.0
        %462 = vmatprep.subr.mxu0 0.0
        %463 = vmatpush1.msra.mxu0 0.0
        %464 = vmatprep.subr.mxu0 0.0
        %465 = vmatpush1.msra.mxu0 0.0
        %466 = vmatprep.subr.mxu0 0.0
        %467 = vmatpush1.msra.mxu0 0.0
        %468 = vmatprep.subr.mxu0 0.0
        %469 = vmatpush1.msra.mxu0 0.0
        %470 = vmatprep.subr.mxu0 0.0
        %471 = vmatpush1.msra.mxu0 0.0
        %472 = vmatprep.subr.mxu0 0.0
        %473 = vmatpush1.msra.mxu0 0.0
        %474 = vmatprep.subr.mxu0 0.0
        %475 = vmatpush1.msra.mxu0 0.0
        %476 = vmatprep.subr.mxu0 0.0
        %477 = vmatpush1.msra.mxu0 0.0
        %478 = vmatprep.subr.mxu0 0.0
        %479 = vmatpush1.msra.mxu0 0.0
        %480 = vmatprep.subr.mxu0 0.0
        %481 = vmatpush1.msra.mxu0 0.0
        %482 = vmatprep.subr.mxu0 0.0
        %483 = vmatpush1.msra.mxu0 0.0
        %484 = vmatprep.subr.mxu0 0.0
        %485 = vmatpush1.msra.mxu0 0.0
        %486 = vmatprep.subr.mxu0 0.0
        %487 = vmatpush1.msra.mxu0 0.0
        %488 = vmatprep.subr.mxu0 0.0
        %489 = vmatpush1.msra.mxu0 0.0
        %490 = vmatprep.subr.mxu0 0.0
        %491 = vmatpush1.msra.mxu0 0.0
        %492 = vmatprep.subr.mxu0 0.0
        %493 = vmatpush1.msra.mxu0 0.0
        %494 = vmatprep.subr.mxu0 0.0
        %495 = vmatpush1.msra.mxu0 0.0
        %496 = vmatprep.subr.mxu0 0.0
        %497 = vmatpush1.msra.mxu0 0.0
        %498 = vmatprep.subr.mxu0 0.0
        %499 = vmatpush1.msra.mxu0 0.0
        %500 = vmatprep.subr.mxu0 0.0
        %501 = vmatpush1.msra.mxu0 0.0
        %502 = vmatprep.subr.mxu0 0.0
        %503 = vmatpush1.msra.mxu0 0.0
        %504 = vmatprep.subr.mxu0 0.0
        %505 = vmatpush1.msra.mxu0 0.0
        %506 = vmatprep.subr.mxu0 0.0
        %507 = vmatpush1.msra.mxu0 0.0
        %508 = vmatprep.mubr.f32.mxu0 0.0
        %509 = vmatmul.mubr.f32.gmra.mrb[0].mxu0 %v433
        %v510 = vpop.f32.mrb[0].mxu0
        %v511 = vadd.f32 0.0, %v510
        %v512 = vpop.f32.mrb[0].mxu0
        %v513 = vadd.f32 0.0, %v512
        %514 = vmatprep.mubr.f32.mxu0 0.0
        %515 = vmatmul.mubr.f32.gmra.mrb[0].mxu0 %v435
        %v516 = vpop.f32.mrb[0].mxu0
        %v517 = vadd.f32 0.0, %v516
        %v518 = vpop.f32.mrb[0].mxu0
        %v519 = vadd.f32 0.0, %v518
        %520 = vdwg.mxu0
        %v521 = vsel %vm432, %v394, 0
        %v523 = vsel %vm432, %v395, 0
        %v526 = vsel %vm437, %v409, 0
        %v529 = vsel %vm437, %v410, 0
        %531 = vmatprep.subr.mxu0 %v398
        %532 = vmatpush1.msra.mxu0 %v397
        %533 = vmatprep.subr.mxu0 %v400
        %534 = vmatpush1.msra.mxu0 %v399
        %535 = vmatprep.subr.mxu0 %v402
        %536 = vmatpush1.msra.mxu0 %v401
        %537 = vmatprep.subr.mxu0 %v404
        %538 = vmatpush1.msra.mxu0 %v403
        %539 = vmatprep.subr.mxu0 %v406
        %540 = vmatpush1.msra.mxu0 %v405
        %541 = vmatprep.subr.mxu0 %v408
        %542 = vmatpush1.msra.mxu0 %v407
        %543 = vmatprep.subr.mxu0 %v529
        %544 = vmatpush1.msra.mxu0 %v526
        %545 = vmatprep.subr.mxu0 0.0
        %546 = vmatpush1.msra.mxu0 0.0
        %547 = vmatprep.subr.mxu0 0.0
        %548 = vmatpush1.msra.mxu0 0.0
        %549 = vmatprep.subr.mxu0 0.0
        %550 = vmatpush1.msra.mxu0 0.0
        %551 = vmatprep.subr.mxu0 0.0
        %552 = vmatpush1.msra.mxu0 0.0
        %553 = vmatprep.subr.mxu0 0.0
        %554 = vmatpush1.msra.mxu0 0.0
        %555 = vmatprep.subr.mxu0 0.0
        %556 = vmatpush1.msra.mxu0 0.0
        %557 = vmatprep.subr.mxu0 0.0
        %558 = vmatpush1.msra.mxu0 0.0
        %559 = vmatprep.subr.mxu0 0.0
        %560 = vmatpush1.msra.mxu0 0.0
        %561 = vmatprep.subr.mxu0 0.0
        %562 = vmatpush1.msra.mxu0 0.0
        %563 = vmatprep.subr.mxu0 0.0
        %564 = vmatpush1.msra.mxu0 0.0
        %565 = vmatprep.subr.mxu0 0.0
        %566 = vmatpush1.msra.mxu0 0.0
        %567 = vmatprep.subr.mxu0 0.0
        %568 = vmatpush1.msra.mxu0 0.0
        %569 = vmatprep.subr.mxu0 0.0
        %570 = vmatpush1.msra.mxu0 0.0
        %571 = vmatprep.subr.mxu0 0.0
        %572 = vmatpush1.msra.mxu0 0.0
        %573 = vmatprep.subr.mxu0 0.0
        %574 = vmatpush1.msra.mxu0 0.0
        %575 = vmatprep.subr.mxu0 0.0
        %576 = vmatpush1.msra.mxu0 0.0
        %577 = vmatprep.subr.mxu0 0.0
        %578 = vmatpush1.msra.mxu0 0.0
        %579 = vmatprep.subr.mxu0 0.0
        %580 = vmatpush1.msra.mxu0 0.0
        %581 = vmatprep.subr.mxu0 0.0
        %582 = vmatpush1.msra.mxu0 0.0
        %583 = vmatprep.subr.mxu0 0.0
        %584 = vmatpush1.msra.mxu0 0.0
        %585 = vmatprep.subr.mxu0 0.0
        %586 = vmatpush1.msra.mxu0 0.0
        %587 = vmatprep.subr.mxu0 0.0
        %588 = vmatpush1.msra.mxu0 0.0
        %589 = vmatprep.subr.mxu0 0.0
        %590 = vmatpush1.msra.mxu0 0.0
        %591 = vmatprep.subr.mxu0 0.0
        %592 = vmatpush1.msra.mxu0 0.0
        %593 = vmatprep.subr.mxu0 0.0
        %594 = vmatpush1.msra.mxu0 0.0
        %595 = vmatprep.mubr.f32.mxu0 0.0
        %596 = vmatmul.mubr.f32.gmra.mrb[0].mxu0 %v521
        %v597 = vpop.f32.mrb[0].mxu0
        %v598 = vadd.f32 %v511, %v597
        %v599 = vpop.f32.mrb[0].mxu0
        %v600 = vadd.f32 %v513, %v599
        %601 = vmatprep.mubr.f32.mxu0 0.0
        %602 = vmatmul.mubr.f32.gmra.mrb[0].mxu0 %v523
        %v603 = vpop.f32.mrb[0].mxu0
        %v604 = vadd.f32 %v517, %v603
        %v605 = vpop.f32.mrb[0].mxu0
        %v606 = vadd.f32 %v519, %v605
        %607 = vdwg.mxu0
        %s608 = scalar_lea.vmem %s1, 224
        %v609 = vld [vmem:[%s608] sm:$0xff]
        %v610 = vld [vmem:[%s608 + $0x8] sm:$0xff]
        %v611 = vld [vmem:[%s608 + $0x10] sm:$0xff]
        %v612 = vld [vmem:[%s608 + $0x18] sm:$0xff]
        %v613 = vld [vmem:[%s608 + $0x20] sm:$0xff]
        %v614 = vld [vmem:[%s608 + $0x28] sm:$0xff]
        %v615 = vld [vmem:[%s608 + $0x30] sm:$0xff]
        %v616 = vld [vmem:[%s608 + $0x38] sm:$0xff]
        %v617 = vld [vmem:[%s608 + $0x40] sm:$0xff]
        %v618 = vld [vmem:[%s608 + $0x48] sm:$0xff]
        %v619 = vld [vmem:[%s608 + $0x50] sm:$0xff]
        %v620 = vld [vmem:[%s608 + $0x58] sm:$0xff]
        %v621 = vld [vmem:[%s608 + $0x60] sm:$0x3f]
        %v622 = vld [vmem:[%s608 + $0x68] sm:$0x3f]
        %v623 = vrot.slane %v394, 2
        %v624 = vrot.slane %v395, 2
        %v625 = vsel %vm437, %v623, %v624
        %v626 = vsel %vm432, %v625, 0
        %v628 = vsel %vm432, %v624, 0
        %v631 = vsel %vm437, %v621, 0
        %v634 = vsel %vm437, %v622, 0
        %636 = vmatprep.subr.mxu0 %v610
        %637 = vmatpush1.msra.mxu0 %v609
        %638 = vmatprep.subr.mxu0 %v612
        %639 = vmatpush1.msra.mxu0 %v611
        %640 = vmatprep.subr.mxu0 %v614
        %641 = vmatpush1.msra.mxu0 %v613
        %642 = vmatprep.subr.mxu0 %v616
        %643 = vmatpush1.msra.mxu0 %v615
        %644 = vmatprep.subr.mxu0 %v618
        %645 = vmatpush1.msra.mxu0 %v617
        %646 = vmatprep.subr.mxu0 %v620
        %647 = vmatpush1.msra.mxu0 %v619
        %648 = vmatprep.subr.mxu0 %v634
        %649 = vmatpush1.msra.mxu0 %v631
        %650 = vmatprep.subr.mxu0 0.0
        %651 = vmatpush1.msra.mxu0 0.0
        %652 = vmatprep.subr.mxu0 0.0
        %653 = vmatpush1.msra.mxu0 0.0
        %654 = vmatprep.subr.mxu0 0.0
        %655 = vmatpush1.msra.mxu0 0.0
        %656 = vmatprep.subr.mxu0 0.0
        %657 = vmatpush1.msra.mxu0 0.0
        %658 = vmatprep.subr.mxu0 0.0
        %659 = vmatpush1.msra.mxu0 0.0
        %660 = vmatprep.subr.mxu0 0.0
        %661 = vmatpush1.msra.mxu0 0.0
        %662 = vmatprep.subr.mxu0 0.0
        %663 = vmatpush1.msra.mxu0 0.0
        %664 = vmatprep.subr.mxu0 0.0
        %665 = vmatpush1.msra.mxu0 0.0
        %666 = vmatprep.subr.mxu0 0.0
        %667 = vmatpush1.msra.mxu0 0.0
        %668 = vmatprep.subr.mxu0 0.0
        %669 = vmatpush1.msra.mxu0 0.0
        %670 = vmatprep.subr.mxu0 0.0
        %671 = vmatpush1.msra.mxu0 0.0
        %672 = vmatprep.subr.mxu0 0.0
        %673 = vmatpush1.msra.mxu0 0.0
        %674 = vmatprep.subr.mxu0 0.0
        %675 = vmatpush1.msra.mxu0 0.0
        %676 = vmatprep.subr.mxu0 0.0
        %677 = vmatpush1.msra.mxu0 0.0
        %678 = vmatprep.subr.mxu0 0.0
        %679 = vmatpush1.msra.mxu0 0.0
        %680 = vmatprep.subr.mxu0 0.0
        %681 = vmatpush1.msra.mxu0 0.0
        %682 = vmatprep.subr.mxu0 0.0
        %683 = vmatpush1.msra.mxu0 0.0
        %684 = vmatprep.subr.mxu0 0.0
        %685 = vmatpush1.msra.mxu0 0.0
        %686 = vmatprep.subr.mxu0 0.0
        %687 = vmatpush1.msra.mxu0 0.0
        %688 = vmatprep.subr.mxu0 0.0
        %689 = vmatpush1.msra.mxu0 0.0
        %690 = vmatprep.subr.mxu0 0.0
        %691 = vmatpush1.msra.mxu0 0.0
        %692 = vmatprep.subr.mxu0 0.0
        %693 = vmatpush1.msra.mxu0 0.0
        %694 = vmatprep.subr.mxu0 0.0
        %695 = vmatpush1.msra.mxu0 0.0
        %696 = vmatprep.subr.mxu0 0.0
        %697 = vmatpush1.msra.mxu0 0.0
        %698 = vmatprep.subr.mxu0 0.0
        %699 = vmatpush1.msra.mxu0 0.0
        %700 = vmatprep.mubr.f32.mxu0 0.0
        %701 = vmatmul.mubr.f32.gmra.mrb[0].mxu0 %v626
        %v702 = vpop.f32.mrb[0].mxu0
        %v703 = vadd.f32 0.0, %v702
        %v704 = vpop.f32.mrb[0].mxu0
        %v705 = vadd.f32 0.0, %v704
        %706 = vmatprep.mubr.f32.mxu0 0.0
        %707 = vmatmul.mubr.f32.gmra.mrb[0].mxu0 %v628
        %v708 = vpop.f32.mrb[0].mxu0
        %v709 = vadd.f32 0.0, %v708
        %v710 = vpop.f32.mrb[0].mxu0
        %v711 = vadd.f32 0.0, %v710
        %712 = vdwg.mxu0
        %v713 = vadd.f32 %v598, %v703
        %v714 = vadd.f32 %v600, %v705
        %v715 = vadd.f32 %v604, %v709
        %v716 = vadd.f32 %v606, %v711
        %s717 = scalar_lea.vmem %s1, 336
        %v718 = vld [vmem:[%s717] sm:$0xff]
        %v719 = vld [vmem:[%s717 + $0x8] sm:$0xff]
        %v720 = vld [vmem:[%s717 + $0x10] sm:$0xff]
        %v721 = vld [vmem:[%s717 + $0x18] sm:$0xff]
        %v722 = vld [vmem:[%s717 + $0x20] sm:$0xff]
        %v723 = vld [vmem:[%s717 + $0x28] sm:$0xff]
        %v724 = vld [vmem:[%s717 + $0x30] sm:$0xff]
        %v725 = vld [vmem:[%s717 + $0x38] sm:$0xff]
        %v726 = vld [vmem:[%s717 + $0x40] sm:$0xff]
        %v727 = vld [vmem:[%s717 + $0x48] sm:$0xff]
        %v728 = vld [vmem:[%s717 + $0x50] sm:$0xff]
        %v729 = vld [vmem:[%s717 + $0x58] sm:$0xff]
        %v730 = vld [vmem:[%s717 + $0x60] sm:$0x3f]
        %v731 = vld [vmem:[%s717 + $0x68] sm:$0x3f]
        %vm733 = vcmask 1044480
        %v734 = vrot.slane %v394, 3
        %v735 = vrot.slane %v395, 3
        %v736 = vsel %vm733, %v734, %v735
        %v737 = vrot.slane %v396, 3
        %v738 = vsel %vm733, %v735, %v737
        %v739 = vsel %vm432, %v736, 0
        %v741 = vsel %vm432, %v738, 0
        %v744 = vsel %vm437, %v730, 0
        %v747 = vsel %vm437, %v731, 0
        %749 = vmatprep.subr.mxu0 %v719
        %750 = vmatpush1.msra.mxu0 %v718
        %751 = vmatprep.subr.mxu0 %v721
        %752 = vmatpush1.msra.mxu0 %v720
        %753 = vmatprep.subr.mxu0 %v723
        %754 = vmatpush1.msra.mxu0 %v722
        %755 = vmatprep.subr.mxu0 %v725
        %756 = vmatpush1.msra.mxu0 %v724
        %757 = vmatprep.subr.mxu0 %v727
        %758 = vmatpush1.msra.mxu0 %v726
        %759 = vmatprep.subr.mxu0 %v729
        %760 = vmatpush1.msra.mxu0 %v728
        %761 = vmatprep.subr.mxu0 %v747
        %762 = vmatpush1.msra.mxu0 %v744
        %763 = vmatprep.subr.mxu0 0.0
        %764 = vmatpush1.msra.mxu0 0.0
        %765 = vmatprep.subr.mxu0 0.0
        %766 = vmatpush1.msra.mxu0 0.0
        %767 = vmatprep.subr.mxu0 0.0
        %768 = vmatpush1.msra.mxu0 0.0
        %769 = vmatprep.subr.mxu0 0.0
        %770 = vmatpush1.msra.mxu0 0.0
        %771 = vmatprep.subr.mxu0 0.0
        %772 = vmatpush1.msra.mxu0 0.0
        %773 = vmatprep.subr.mxu0 0.0
        %774 = vmatpush1.msra.mxu0 0.0
        %775 = vmatprep.subr.mxu0 0.0
        %776 = vmatpush1.msra.mxu0 0.0
        %777 = vmatprep.subr.mxu0 0.0
        %778 = vmatpush1.msra.mxu0 0.0
        %779 = vmatprep.subr.mxu0 0.0
        %780 = vmatpush1.msra.mxu0 0.0
        %781 = vmatprep.subr.mxu0 0.0
        %782 = vmatpush1.msra.mxu0 0.0
        %783 = vmatprep.subr.mxu0 0.0
        %784 = vmatpush1.msra.mxu0 0.0
        %785 = vmatprep.subr.mxu0 0.0
        %786 = vmatpush1.msra.mxu0 0.0
        %787 = vmatprep.subr.mxu0 0.0
        %788 = vmatpush1.msra.mxu0 0.0
        %789 = vmatprep.subr.mxu0 0.0
        %790 = vmatpush1.msra.mxu0 0.0
        %791 = vmatprep.subr.mxu0 0.0
        %792 = vmatpush1.msra.mxu0 0.0
        %793 = vmatprep.subr.mxu0 0.0
        %794 = vmatpush1.msra.mxu0 0.0
        %795 = vmatprep.subr.mxu0 0.0
        %796 = vmatpush1.msra.mxu0 0.0
        %797 = vmatprep.subr.mxu0 0.0
        %798 = vmatpush1.msra.mxu0 0.0
        %799 = vmatprep.subr.mxu0 0.0
        %800 = vmatpush1.msra.mxu0 0.0
        %801 = vmatprep.subr.mxu0 0.0
        %802 = vmatpush1.msra.mxu0 0.0
        %803 = vmatprep.subr.mxu0 0.0
        %804 = vmatpush1.msra.mxu0 0.0
        %805 = vmatprep.subr.mxu0 0.0
        %806 = vmatpush1.msra.mxu0 0.0
        %807 = vmatprep.subr.mxu0 0.0
        %808 = vmatpush1.msra.mxu0 0.0
        %809 = vmatprep.subr.mxu0 0.0
        %810 = vmatpush1.msra.mxu0 0.0
        %811 = vmatprep.subr.mxu0 0.0
        %812 = vmatpush1.msra.mxu0 0.0
        %813 = vmatprep.mubr.f32.mxu0 0.0
        %814 = vmatmul.mubr.f32.gmra.mrb[0].mxu0 %v739
        %v815 = vpop.f32.mrb[0].mxu0
        %v816 = vadd.f32 0.0, %v815
        %v817 = vpop.f32.mrb[0].mxu0
        %v818 = vadd.f32 0.0, %v817
        %819 = vmatprep.mubr.f32.mxu0 0.0
        %820 = vmatmul.mubr.f32.gmra.mrb[0].mxu0 %v741
        %v821 = vpop.f32.mrb[0].mxu0
        %v822 = vadd.f32 0.0, %v821
        %v823 = vpop.f32.mrb[0].mxu0
        %v824 = vadd.f32 0.0, %v823
        %825 = vdwg.mxu0
        %v826 = vadd.f32 %v713, %v816
        %v827 = vadd.f32 %v714, %v818
        %v828 = vadd.f32 %v715, %v822
        %v829 = vadd.f32 %v716, %v824
        %s830 = scalar_lea.vmem %s1, 448
        %v831 = vld [vmem:[%s830] sm:$0xff]
        %v832 = vld [vmem:[%s830 + $0x8] sm:$0xff]
        %v833 = vld [vmem:[%s830 + $0x10] sm:$0xff]
        %v834 = vld [vmem:[%s830 + $0x18] sm:$0xff]
        %v835 = vld [vmem:[%s830 + $0x20] sm:$0xff]
        %v836 = vld [vmem:[%s830 + $0x28] sm:$0xff]
        %v837 = vld [vmem:[%s830 + $0x30] sm:$0xff]
        %v838 = vld [vmem:[%s830 + $0x38] sm:$0xff]
        %v839 = vld [vmem:[%s830 + $0x40] sm:$0xff]
        %v840 = vld [vmem:[%s830 + $0x48] sm:$0xff]
        %v841 = vld [vmem:[%s830 + $0x50] sm:$0xff]
        %v842 = vld [vmem:[%s830 + $0x58] sm:$0xff]
        %v843 = vld [vmem:[%s830 + $0x60] sm:$0x3f]
        %v844 = vld [vmem:[%s830 + $0x68] sm:$0x3f]
        %vm845 = vcmask 1043456
        %v846 = vrot.slane %v394, 4
        %v847 = vrot.slane %v395, 4
        %v848 = vsel %vm845, %v846, %v847
        %v849 = vrot.slane %v396, 4
        %v850 = vsel %vm845, %v847, %v849
        %v851 = vsel %vm432, %v848, 0
        %v853 = vsel %vm432, %v850, 0
        %v856 = vsel %vm437, %v843, 0
        %v859 = vsel %vm437, %v844, 0
        %861 = vmatprep.subr.mxu0 %v832
        %862 = vmatpush1.msra.mxu0 %v831
        %863 = vmatprep.subr.mxu0 %v834
        %864 = vmatpush1.msra.mxu0 %v833
        %865 = vmatprep.subr.mxu0 %v836
        %866 = vmatpush1.msra.mxu0 %v835
        %867 = vmatprep.subr.mxu0 %v838
        %868 = vmatpush1.msra.mxu0 %v837
        %869 = vmatprep.subr.mxu0 %v840
        %870 = vmatpush1.msra.mxu0 %v839
        %871 = vmatprep.subr.mxu0 %v842
        %872 = vmatpush1.msra.mxu0 %v841
        %873 = vmatprep.subr.mxu0 %v859
        %874 = vmatpush1.msra.mxu0 %v856
        %875 = vmatprep.subr.mxu0 0.0
        %876 = vmatpush1.msra.mxu0 0.0
        %877 = vmatprep.subr.mxu0 0.0
        %878 = vmatpush1.msra.mxu0 0.0
        %879 = vmatprep.subr.mxu0 0.0
        %880 = vmatpush1.msra.mxu0 0.0
        %881 = vmatprep.subr.mxu0 0.0
        %882 = vmatpush1.msra.mxu0 0.0
        %883 = vmatprep.subr.mxu0 0.0
        %884 = vmatpush1.msra.mxu0 0.0
        %885 = vmatprep.subr.mxu0 0.0
        %886 = vmatpush1.msra.mxu0 0.0
        %887 = vmatprep.subr.mxu0 0.0
        %888 = vmatpush1.msra.mxu0 0.0
        %889 = vmatprep.subr.mxu0 0.0
        %890 = vmatpush1.msra.mxu0 0.0
        %891 = vmatprep.subr.mxu0 0.0
        %892 = vmatpush1.msra.mxu0 0.0
        %893 = vmatprep.subr.mxu0 0.0
        %894 = vmatpush1.msra.mxu0 0.0
        %895 = vmatprep.subr.mxu0 0.0
        %896 = vmatpush1.msra.mxu0 0.0
        %897 = vmatprep.subr.mxu0 0.0
        %898 = vmatpush1.msra.mxu0 0.0
        %899 = vmatprep.subr.mxu0 0.0
        %900 = vmatpush1.msra.mxu0 0.0
        %901 = vmatprep.subr.mxu0 0.0
        %902 = vmatpush1.msra.mxu0 0.0
        %903 = vmatprep.subr.mxu0 0.0
        %904 = vmatpush1.msra.mxu0 0.0
        %905 = vmatprep.subr.mxu0 0.0
        %906 = vmatpush1.msra.mxu0 0.0
        %907 = vmatprep.subr.mxu0 0.0
        %908 = vmatpush1.msra.mxu0 0.0
        %909 = vmatprep.subr.mxu0 0.0
        %910 = vmatpush1.msra.mxu0 0.0
        %911 = vmatprep.subr.mxu0 0.0
        %912 = vmatpush1.msra.mxu0 0.0
        %913 = vmatprep.subr.mxu0 0.0
        %914 = vmatpush1.msra.mxu0 0.0
        %915 = vmatprep.subr.mxu0 0.0
        %916 = vmatpush1.msra.mxu0 0.0
        %917 = vmatprep.subr.mxu0 0.0
        %918 = vmatpush1.msra.mxu0 0.0
        %919 = vmatprep.subr.mxu0 0.0
        %920 = vmatpush1.msra.mxu0 0.0
        %921 = vmatprep.subr.mxu0 0.0
        %922 = vmatpush1.msra.mxu0 0.0
        %923 = vmatprep.subr.mxu0 0.0
        %924 = vmatpush1.msra.mxu0 0.0
        %925 = vmatprep.mubr.f32.mxu0 0.0
        %926 = vmatmul.mubr.f32.gmra.mrb[0].mxu0 %v851
        %v927 = vpop.f32.mrb[0].mxu0
        %v928 = vadd.f32 0.0, %v927
        %v929 = vpop.f32.mrb[0].mxu0
        %v930 = vadd.f32 0.0, %v929
        %931 = vmatprep.mubr.f32.mxu0 0.0
        %932 = vmatmul.mubr.f32.gmra.mrb[0].mxu0 %v853
        %v933 = vpop.f32.mrb[0].mxu0
        %v934 = vadd.f32 0.0, %v933
        %v935 = vpop.f32.mrb[0].mxu0
        %v936 = vadd.f32 0.0, %v935
        %937 = vdwg.mxu0
        %v938 = vadd.f32 %v826, %v928
        %v939 = vadd.f32 %v827, %v930
        %v940 = vadd.f32 %v828, %v934
        %v941 = vadd.f32 %v829, %v936
        %v942 = vld [vmem:[%s2] sm:$0x3]
        %v944 = vlaneseq
        %v945 = vshrl.u32 %v944, 7
        %v946 = vsub.s32 0, %v945
        %v947 = vrot.slane %v942, %v946
        %v948 = vlaneseq
        %v949 = vshrl.u32 %v948, 7
        %v950 = vsub.s32 1, %v949
        %v951 = vrot.slane %v942, %v950
        %v954 = vadd.f32 %v938, %v947
        %v955 = vadd.f32 %v939, %v951
        %v956 = vadd.f32 %v940, %v947
        %v957 = vadd.f32 %v941, %v951
        %v958 = vmax.f32 %v954, 0.0
        %v959 = vmax.f32 %v955, 0.0
        %v960 = vmax.f32 %v956, 0.0
        %v961 = vmax.f32 %v957, 0.0
        %vm966 = vcmask 1040384
        %v967 = vrot.slane %v958, 7
        %v968 = vrot.slane %v959, 7
        %v969 = vrot.slane %v960, 7
        %v970 = vsel %vm966, %v967, %v969
        %v971 = vrot.slane %v961, 7
        %v972 = vsel %vm966, %v968, %v971
        %973 = vrot.lane.b32.xlu0 %v967, 12
        %v974 = vpop.permute.xlu0 %973
        %975 = vrot.lane.b32.xlu0 %v968, 12
        %v976 = vpop.permute.xlu0 %975
        %977 = vrot.lane.b32.xlu0 %v970, 12
        %v978 = vpop.permute.xlu0 %977
        %979 = vrot.lane.b32.xlu0 %v972, 12
        %v980 = vpop.permute.xlu0 %979
        %vm981 = vcmask 97280
        %v982 = vsel %vm981, %v974, %v976
        %v983 = vsel %vm981, %v978, %v980
        %vm988 = vcmask 1047649
        %989 = vst.msk [vmem:[#allocation2] sm:$0xfe] %vm988, %v974
        %vm990 = vcmask 424961
        %991 = vst.msk [vmem:[#allocation2 + $0x8] sm:$0xfe] %vm990, %v982
        %vm992 = vcmask 1046624
        %993 = vst.msk [vmem:[#allocation2 + $0x10] sm:$0x7f] %vm992, %v978
        %vm994 = vcmask 423936
        %995 = vst.msk [vmem:[#allocation2 + $0x18] sm:$0x7f] %vm994, %v983
        %v996 = vld [vmem:[#allocation2] sm:$0xff]
        %v997 = vld [vmem:[#allocation2 + $0x8] sm:$0xff]
        %v998 = vld [vmem:[#allocation2 + $0x10] sm:$0xff]
        %v999 = vld [vmem:[#allocation2 + $0x18] sm:$0xff]
        %v1000 = vld [vmem:[%s3] sm:$0xff]
        %v1001 = vld [vmem:[%s3 + $0x8] sm:$0xff]
        %v1002 = vld [vmem:[%s3 + $0x10] sm:$0xff]
        %v1003 = vld [vmem:[%s3 + $0x18] sm:$0xff]
        %v1004 = vld [vmem:[%s3 + $0x20] sm:$0xff]
        %v1005 = vld [vmem:[%s3 + $0x28] sm:$0xff]
        %v1006 = vld [vmem:[%s3 + $0x30] sm:$0xff]
        %v1007 = vld [vmem:[%s3 + $0x38] sm:$0xff]
        %v1008 = vld [vmem:[%s3 + $0x40] sm:$0xff]
        %v1009 = vld [vmem:[%s3 + $0x48] sm:$0xff]
        %v1010 = vld [vmem:[%s3 + $0x50] sm:$0xff]
        %v1011 = vld [vmem:[%s3 + $0x58] sm:$0xff]
        %v1012 = vld [vmem:[%s3 + $0x60] sm:$0xff]
        %v1013 = vld [vmem:[%s3 + $0x68] sm:$0xff]
        %v1014 = vld [vmem:[%s3 + $0x70] sm:$0xff]
        %v1015 = vld [vmem:[%s3 + $0x78] sm:$0xff]
        %v1016 = vld [vmem:[%s3 + $0x80] sm:$0xff]
        %v1017 = vld [vmem:[%s3 + $0x88] sm:$0xff]
        %v1018 = vld [vmem:[%s3 + $0x90] sm:$0xff]
        %v1019 = vld [vmem:[%s3 + $0x98] sm:$0xff]
        %v1020 = vld [vmem:[%s3 + $0xa0] sm:$0xff]
        %v1021 = vld [vmem:[%s3 + $0xa8] sm:$0xff]
        %v1022 = vld [vmem:[%s3 + $0xb0] sm:$0xff]
        %v1023 = vld [vmem:[%s3 + $0xb8] sm:$0xff]
        %v1024 = vld [vmem:[%s3 + $0xc0] sm:$0xff]
        %v1025 = vld [vmem:[%s3 + $0xc8] sm:$0xff]
        %v1026 = vld [vmem:[%s3 + $0xd0] sm:$0xff]
        %v1027 = vld [vmem:[%s3 + $0xd8] sm:$0xff]
        %v1028 = vld [vmem:[%s3 + $0xe0] sm:$0xff]
        %v1029 = vld [vmem:[%s3 + $0xe8] sm:$0xff]
        %v1030 = vld [vmem:[%s3 + $0xf0] sm:$0xff]
        %v1031 = vld [vmem:[%s3 + $0xf8] sm:$0xff]
        %v1032 = vld [vmem:[%s3 + $0x100] sm:$0xff]
        %v1033 = vld [vmem:[%s3 + $0x108] sm:$0xff]
        %v1034 = vld [vmem:[%s3 + $0x110] sm:$0xff]
        %v1035 = vld [vmem:[%s3 + $0x118] sm:$0xff]
        %v1036 = vld [vmem:[%s3 + $0x120] sm:$0xff]
        %v1037 = vld [vmem:[%s3 + $0x128] sm:$0xff]
        %v1038 = vld [vmem:[%s3 + $0x130] sm:$0xff]
        %v1039 = vld [vmem:[%s3 + $0x138] sm:$0xff]
        %v1040 = vld [vmem:[%s3 + $0x140] sm:$0xff]
        %v1041 = vld [vmem:[%s3 + $0x148] sm:$0xff]
        %v1042 = vld [vmem:[%s3 + $0x150] sm:$0xff]
        %v1043 = vld [vmem:[%s3 + $0x158] sm:$0xff]
        %v1044 = vld [vmem:[%s3 + $0x160] sm:$0xff]
        %v1045 = vld [vmem:[%s3 + $0x168] sm:$0xff]
        %v1046 = vld [vmem:[%s3 + $0x170] sm:$0xff]
        %v1047 = vld [vmem:[%s3 + $0x178] sm:$0xff]
        %s1048 = scalar_lea.vmem %s3, 384
        %v1049 = vld [vmem:[%s1048] sm:$0xff]
        %v1050 = vld [vmem:[%s1048 + $0x8] sm:$0xff]
        %v1051 = vld [vmem:[%s1048 + $0x10] sm:$0xff]
        %v1052 = vld [vmem:[%s1048 + $0x18] sm:$0xff]
        %v1053 = vld [vmem:[%s1048 + $0x20] sm:$0xff]
        %v1054 = vld [vmem:[%s1048 + $0x28] sm:$0xff]
        %v1055 = vld [vmem:[%s1048 + $0x30] sm:$0xff]
        %v1056 = vld [vmem:[%s1048 + $0x38] sm:$0xff]
        %v1057 = vld [vmem:[%s1048 + $0x40] sm:$0xff]
        %v1058 = vld [vmem:[%s1048 + $0x48] sm:$0xff]
        %v1059 = vld [vmem:[%s1048 + $0x50] sm:$0xff]
        %v1060 = vld [vmem:[%s1048 + $0x58] sm:$0xff]
        %v1061 = vld [vmem:[%s1048 + $0x60] sm:$0xff]
        %v1062 = vld [vmem:[%s1048 + $0x68] sm:$0xff]
        %v1063 = vld [vmem:[%s1048 + $0x70] sm:$0xff]
        %v1064 = vld [vmem:[%s1048 + $0x78] sm:$0xff]
        %v1065 = vld [vmem:[%s1048 + $0x80] sm:$0xff]
        %v1066 = vld [vmem:[%s1048 + $0x88] sm:$0xff]
        %v1067 = vld [vmem:[%s1048 + $0x90] sm:$0xff]
        %v1068 = vld [vmem:[%s1048 + $0x98] sm:$0xff]
        %v1069 = vld [vmem:[%s1048 + $0xa0] sm:$0xff]
        %v1070 = vld [vmem:[%s1048 + $0xa8] sm:$0xff]
        %v1071 = vld [vmem:[%s1048 + $0xb0] sm:$0xff]
        %v1072 = vld [vmem:[%s1048 + $0xb8] sm:$0xff]
        %v1073 = vld [vmem:[%s1048 + $0xc0] sm:$0xff]
        %v1074 = vld [vmem:[%s1048 + $0xc8] sm:$0xff]
        %v1075 = vld [vmem:[%s1048 + $0xd0] sm:$0xff]
        %v1076 = vld [vmem:[%s1048 + $0xd8] sm:$0xff]
        %v1077 = vld [vmem:[%s1048 + $0xe0] sm:$0xff]
        %v1078 = vld [vmem:[%s1048 + $0xe8] sm:$0xff]
        %v1079 = vld [vmem:[%s1048 + $0xf0] sm:$0xff]
        %v1080 = vld [vmem:[%s1048 + $0xf8] sm:$0xff]
        %v1081 = vld [vmem:[%s1048 + $0x100] sm:$0xff]
        %v1082 = vld [vmem:[%s1048 + $0x108] sm:$0xff]
        %v1083 = vld [vmem:[%s1048 + $0x110] sm:$0xff]
        %v1084 = vld [vmem:[%s1048 + $0x118] sm:$0xff]
        %v1085 = vld [vmem:[%s1048 + $0x120] sm:$0xff]
        %v1086 = vld [vmem:[%s1048 + $0x128] sm:$0xff]
        %v1087 = vld [vmem:[%s1048 + $0x130] sm:$0xff]
        %v1088 = vld [vmem:[%s1048 + $0x138] sm:$0xff]
        %v1089 = vld [vmem:[%s1048 + $0x140] sm:$0xff]
        %v1090 = vld [vmem:[%s1048 + $0x148] sm:$0xff]
        %v1091 = vld [vmem:[%s1048 + $0x150] sm:$0xff]
        %v1092 = vld [vmem:[%s1048 + $0x158] sm:$0xff]
        %v1093 = vld [vmem:[%s1048 + $0x160] sm:$0xff]
        %v1094 = vld [vmem:[%s1048 + $0x168] sm:$0xff]
        %v1095 = vld [vmem:[%s1048 + $0x170] sm:$0xff]
        %v1096 = vld [vmem:[%s1048 + $0x178] sm:$0xff]
        %v1101 = vrot.slane %v996, 1
        %v1102 = vrot.slane %v998, 1
        %v1103 = vsel %vm428, %v1101, %v1102
        %v1104 = vrot.slane %v997, 1
        %v1105 = vrot.slane %v999, 1
        %v1106 = vsel %vm428, %v1104, %v1105
        %v1109 = vsel %vm385, %v1106, 0
        %v1111 = vsel %vm385, %v1105, 0
        %1113 = vmatprep.subr.mxu0 %v1050
        %1114 = vmatpush1.msra.mxu0 %v1049
        %1115 = vmatprep.subr.mxu0 %v1052
        %1116 = vmatpush1.msra.mxu0 %v1051
        %1117 = vmatprep.subr.mxu0 %v1054
        %1118 = vmatpush1.msra.mxu0 %v1053
        %1119 = vmatprep.subr.mxu0 %v1056
        %1120 = vmatpush1.msra.mxu0 %v1055
        %1121 = vmatprep.subr.mxu0 %v1058
        %1122 = vmatpush1.msra.mxu0 %v1057
        %1123 = vmatprep.subr.mxu0 %v1060
        %1124 = vmatpush1.msra.mxu0 %v1059
        %1125 = vmatprep.subr.mxu0 %v1062
        %1126 = vmatpush1.msra.mxu0 %v1061
        %1127 = vmatprep.subr.mxu0 %v1064
        %1128 = vmatpush1.msra.mxu0 %v1063
        %1129 = vmatprep.subr.mxu0 %v1066
        %1130 = vmatpush1.msra.mxu0 %v1065
        %1131 = vmatprep.subr.mxu0 %v1068
        %1132 = vmatpush1.msra.mxu0 %v1067
        %1133 = vmatprep.subr.mxu0 %v1070
        %1134 = vmatpush1.msra.mxu0 %v1069
        %1135 = vmatprep.subr.mxu0 %v1072
        %1136 = vmatpush1.msra.mxu0 %v1071
        %1137 = vmatprep.subr.mxu0 %v1074
        %1138 = vmatpush1.msra.mxu0 %v1073
        %1139 = vmatprep.subr.mxu0 %v1076
        %1140 = vmatpush1.msra.mxu0 %v1075
        %1141 = vmatprep.subr.mxu0 %v1078
        %1142 = vmatpush1.msra.mxu0 %v1077
        %1143 = vmatprep.subr.mxu0 %v1080
        %1144 = vmatpush1.msra.mxu0 %v1079
        %1145 = vmatprep.subr.mxu0 %v1082
        %1146 = vmatpush1.msra.mxu0 %v1081
        %1147 = vmatprep.subr.mxu0 %v1084
        %1148 = vmatpush1.msra.mxu0 %v1083
        %1149 = vmatprep.subr.mxu0 %v1086
        %1150 = vmatpush1.msra.mxu0 %v1085
        %1151 = vmatprep.subr.mxu0 %v1088
        %1152 = vmatpush1.msra.mxu0 %v1087
        %1153 = vmatprep.subr.mxu0 %v1090
        %1154 = vmatpush1.msra.mxu0 %v1089
        %1155 = vmatprep.subr.mxu0 %v1092
        %1156 = vmatpush1.msra.mxu0 %v1091
        %1157 = vmatprep.subr.mxu0 %v1094
        %1158 = vmatpush1.msra.mxu0 %v1093
        %1159 = vmatprep.subr.mxu0 %v1096
        %1160 = vmatpush1.msra.mxu0 %v1095
        %1161 = vmatprep.subr.mxu0 0.0
        %1162 = vmatpush1.msra.mxu0 0.0
        %1163 = vmatprep.subr.mxu0 0.0
        %1164 = vmatpush1.msra.mxu0 0.0
        %1165 = vmatprep.subr.mxu0 0.0
        %1166 = vmatpush1.msra.mxu0 0.0
        %1167 = vmatprep.subr.mxu0 0.0
        %1168 = vmatpush1.msra.mxu0 0.0
        %1169 = vmatprep.subr.mxu0 0.0
        %1170 = vmatpush1.msra.mxu0 0.0
        %1171 = vmatprep.subr.mxu0 0.0
        %1172 = vmatpush1.msra.mxu0 0.0
        %1173 = vmatprep.subr.mxu0 0.0
        %1174 = vmatpush1.msra.mxu0 0.0
        %1175 = vmatprep.subr.mxu0 0.0
        %1176 = vmatpush1.msra.mxu0 0.0
        %1177 = vmatprep.mubr.f32.mxu0 %v1109
        %1178 = vmatmul.mubr.f32.gmra.mrb[0].mxu0 %v1103
        %v1179 = vpop.f32.mrb[0].mxu0
        %v1180 = vadd.f32 0.0, %v1179
        %v1181 = vpop.f32.mrb[0].mxu0
        %v1182 = vadd.f32 0.0, %v1181
        %1183 = vmatprep.mubr.f32.mxu0 %v1111
        %1184 = vmatmul.mubr.f32.gmra.mrb[0].mxu0 %v1102
        %v1185 = vpop.f32.mrb[0].mxu0
        %v1186 = vadd.f32 0.0, %v1185
        %v1187 = vpop.f32.mrb[0].mxu0
        %v1188 = vadd.f32 0.0, %v1187
        %1189 = vdwg.mxu0
        %v1190 = vsel %vm385, %v997, 0
        %v1192 = vsel %vm385, %v999, 0
        %1194 = vmatprep.subr.mxu0 %v1001
        %1195 = vmatpush1.msra.mxu0 %v1000
        %1196 = vmatprep.subr.mxu0 %v1003
        %1197 = vmatpush1.msra.mxu0 %v1002
        %1198 = vmatprep.subr.mxu0 %v1005
        %1199 = vmatpush1.msra.mxu0 %v1004
        %1200 = vmatprep.subr.mxu0 %v1007
        %1201 = vmatpush1.msra.mxu0 %v1006
        %1202 = vmatprep.subr.mxu0 %v1009
        %1203 = vmatpush1.msra.mxu0 %v1008
        %1204 = vmatprep.subr.mxu0 %v1011
        %1205 = vmatpush1.msra.mxu0 %v1010
        %1206 = vmatprep.subr.mxu0 %v1013
        %1207 = vmatpush1.msra.mxu0 %v1012
        %1208 = vmatprep.subr.mxu0 %v1015
        %1209 = vmatpush1.msra.mxu0 %v1014
        %1210 = vmatprep.subr.mxu0 %v1017
        %1211 = vmatpush1.msra.mxu0 %v1016
        %1212 = vmatprep.subr.mxu0 %v1019
        %1213 = vmatpush1.msra.mxu0 %v1018
        %1214 = vmatprep.subr.mxu0 %v1021
        %1215 = vmatpush1.msra.mxu0 %v1020
        %1216 = vmatprep.subr.mxu0 %v1023
        %1217 = vmatpush1.msra.mxu0 %v1022
        %1218 = vmatprep.subr.mxu0 %v1025
        %1219 = vmatpush1.msra.mxu0 %v1024
        %1220 = vmatprep.subr.mxu0 %v1027
        %1221 = vmatpush1.msra.mxu0 %v1026
        %1222 = vmatprep.subr.mxu0 %v1029
        %1223 = vmatpush1.msra.mxu0 %v1028
        %1224 = vmatprep.subr.mxu0 %v1031
        %1225 = vmatpush1.msra.mxu0 %v1030
        %1226 = vmatprep.subr.mxu0 %v1033
        %1227 = vmatpush1.msra.mxu0 %v1032
        %1228 = vmatprep.subr.mxu0 %v1035
        %1229 = vmatpush1.msra.mxu0 %v1034
        %1230 = vmatprep.subr.mxu0 %v1037
        %1231 = vmatpush1.msra.mxu0 %v1036
        %1232 = vmatprep.subr.mxu0 %v1039
        %1233 = vmatpush1.msra.mxu0 %v1038
        %1234 = vmatprep.subr.mxu0 %v1041
        %1235 = vmatpush1.msra.mxu0 %v1040
        %1236 = vmatprep.subr.mxu0 %v1043
        %1237 = vmatpush1.msra.mxu0 %v1042
        %1238 = vmatprep.subr.mxu0 %v1045
        %1239 = vmatpush1.msra.mxu0 %v1044
        %1240 = vmatprep.subr.mxu0 %v1047
        %1241 = vmatpush1.msra.mxu0 %v1046
        %1242 = vmatprep.subr.mxu0 0.0
        %1243 = vmatpush1.msra.mxu0 0.0
        %1244 = vmatprep.subr.mxu0 0.0
        %1245 = vmatpush1.msra.mxu0 0.0
        %1246 = vmatprep.subr.mxu0 0.0
        %1247 = vmatpush1.msra.mxu0 0.0
        %1248 = vmatprep.subr.mxu0 0.0
        %1249 = vmatpush1.msra.mxu0 0.0
        %1250 = vmatprep.subr.mxu0 0.0
        %1251 = vmatpush1.msra.mxu0 0.0
        %1252 = vmatprep.subr.mxu0 0.0
        %1253 = vmatpush1.msra.mxu0 0.0
        %1254 = vmatprep.subr.mxu0 0.0
        %1255 = vmatpush1.msra.mxu0 0.0
        %1256 = vmatprep.subr.mxu0 0.0
        %1257 = vmatpush1.msra.mxu0 0.0
        %1258 = vmatprep.mubr.f32.mxu0 %v1190
        %1259 = vmatmul.mubr.f32.gmra.mrb[0].mxu0 %v996
        %v1260 = vpop.f32.mrb[0].mxu0
        %v1261 = vadd.f32 %v1180, %v1260
        %v1262 = vpop.f32.mrb[0].mxu0
        %v1263 = vadd.f32 %v1182, %v1262
        %1264 = vmatprep.mubr.f32.mxu0 %v1192
        %1265 = vmatmul.mubr.f32.gmra.mrb[0].mxu0 %v998
        %v1266 = vpop.f32.mrb[0].mxu0
        %v1267 = vadd.f32 %v1186, %v1266
        %v1268 = vpop.f32.mrb[0].mxu0
        %v1269 = vadd.f32 %v1188, %v1268
        %1270 = vdwg.mxu0
        %s1271 = scalar_lea.vmem %s3, 768
        %v1272 = vld [vmem:[%s1271] sm:$0xff]
        %v1273 = vld [vmem:[%s1271 + $0x8] sm:$0xff]
        %v1274 = vld [vmem:[%s1271 + $0x10] sm:$0xff]
        %v1275 = vld [vmem:[%s1271 + $0x18] sm:$0xff]
        %v1276 = vld [vmem:[%s1271 + $0x20] sm:$0xff]
        %v1277 = vld [vmem:[%s1271 + $0x28] sm:$0xff]
        %v1278 = vld [vmem:[%s1271 + $0x30] sm:$0xff]
        %v1279 = vld [vmem:[%s1271 + $0x38] sm:$0xff]
        %v1280 = vld [vmem:[%s1271 + $0x40] sm:$0xff]
        %v1281 = vld [vmem:[%s1271 + $0x48] sm:$0xff]
        %v1282 = vld [vmem:[%s1271 + $0x50] sm:$0xff]
        %v1283 = vld [vmem:[%s1271 + $0x58] sm:$0xff]
        %v1284 = vld [vmem:[%s1271 + $0x60] sm:$0xff]
        %v1285 = vld [vmem:[%s1271 + $0x68] sm:$0xff]
        %v1286 = vld [vmem:[%s1271 + $0x70] sm:$0xff]
        %v1287 = vld [vmem:[%s1271 + $0x78] sm:$0xff]
        %v1288 = vld [vmem:[%s1271 + $0x80] sm:$0xff]
        %v1289 = vld [vmem:[%s1271 + $0x88] sm:$0xff]
        %v1290 = vld [vmem:[%s1271 + $0x90] sm:$0xff]
        %v1291 = vld [vmem:[%s1271 + $0x98] sm:$0xff]
        %v1292 = vld [vmem:[%s1271 + $0xa0] sm:$0xff]
        %v1293 = vld [vmem:[%s1271 + $0xa8] sm:$0xff]
        %v1294 = vld [vmem:[%s1271 + $0xb0] sm:$0xff]
        %v1295 = vld [vmem:[%s1271 + $0xb8] sm:$0xff]
        %v1296 = vld [vmem:[%s1271 + $0xc0] sm:$0xff]
        %v1297 = vld [vmem:[%s1271 + $0xc8] sm:$0xff]
        %v1298 = vld [vmem:[%s1271 + $0xd0] sm:$0xff]
        %v1299 = vld [vmem:[%s1271 + $0xd8] sm:$0xff]
        %v1300 = vld [vmem:[%s1271 + $0xe0] sm:$0xff]
        %v1301 = vld [vmem:[%s1271 + $0xe8] sm:$0xff]
        %v1302 = vld [vmem:[%s1271 + $0xf0] sm:$0xff]
        %v1303 = vld [vmem:[%s1271 + $0xf8] sm:$0xff]
        %v1304 = vld [vmem:[%s1271 + $0x100] sm:$0xff]
        %v1305 = vld [vmem:[%s1271 + $0x108] sm:$0xff]
        %v1306 = vld [vmem:[%s1271 + $0x110] sm:$0xff]
        %v1307 = vld [vmem:[%s1271 + $0x118] sm:$0xff]
        %v1308 = vld [vmem:[%s1271 + $0x120] sm:$0xff]
        %v1309 = vld [vmem:[%s1271 + $0x128] sm:$0xff]
        %v1310 = vld [vmem:[%s1271 + $0x130] sm:$0xff]
        %v1311 = vld [vmem:[%s1271 + $0x138] sm:$0xff]
        %v1312 = vld [vmem:[%s1271 + $0x140] sm:$0xff]
        %v1313 = vld [vmem:[%s1271 + $0x148] sm:$0xff]
        %v1314 = vld [vmem:[%s1271 + $0x150] sm:$0xff]
        %v1315 = vld [vmem:[%s1271 + $0x158] sm:$0xff]
        %v1316 = vld [vmem:[%s1271 + $0x160] sm:$0xff]
        %v1317 = vld [vmem:[%s1271 + $0x168] sm:$0xff]
        %v1318 = vld [vmem:[%s1271 + $0x170] sm:$0xff]
        %v1319 = vld [vmem:[%s1271 + $0x178] sm:$0xff]
        %v1320 = vrot.slane %v996, 2
        %v1321 = vrot.slane %v998, 2
        %v1322 = vsel %vm437, %v1320, %v1321
        %v1323 = vrot.slane %v997, 2
        %v1324 = vrot.slane %v999, 2
        %v1325 = vsel %vm437, %v1323, %v1324
        %v1328 = vsel %vm385, %v1325, 0
        %v1330 = vsel %vm385, %v1324, 0
        %1332 = vmatprep.subr.mxu0 %v1273
        %1333 = vmatpush1.msra.mxu0 %v1272
        %1334 = vmatprep.subr.mxu0 %v1275
        %1335 = vmatpush1.msra.mxu0 %v1274
        %1336 = vmatprep.subr.mxu0 %v1277
        %1337 = vmatpush1.msra.mxu0 %v1276
        %1338 = vmatprep.subr.mxu0 %v1279
        %1339 = vmatpush1.msra.mxu0 %v1278
        %1340 = vmatprep.subr.mxu0 %v1281
        %1341 = vmatpush1.msra.mxu0 %v1280
        %1342 = vmatprep.subr.mxu0 %v1283
        %1343 = vmatpush1.msra.mxu0 %v1282
        %1344 = vmatprep.subr.mxu0 %v1285
        %1345 = vmatpush1.msra.mxu0 %v1284
        %1346 = vmatprep.subr.mxu0 %v1287
        %1347 = vmatpush1.msra.mxu0 %v1286
        %1348 = vmatprep.subr.mxu0 %v1289
        %1349 = vmatpush1.msra.mxu0 %v1288
        %1350 = vmatprep.subr.mxu0 %v1291
        %1351 = vmatpush1.msra.mxu0 %v1290
        %1352 = vmatprep.subr.mxu0 %v1293
        %1353 = vmatpush1.msra.mxu0 %v1292
        %1354 = vmatprep.subr.mxu0 %v1295
        %1355 = vmatpush1.msra.mxu0 %v1294
        %1356 = vmatprep.subr.mxu0 %v1297
        %1357 = vmatpush1.msra.mxu0 %v1296
        %1358 = vmatprep.subr.mxu0 %v1299
        %1359 = vmatpush1.msra.mxu0 %v1298
        %1360 = vmatprep.subr.mxu0 %v1301
        %1361 = vmatpush1.msra.mxu0 %v1300
        %1362 = vmatprep.subr.mxu0 %v1303
        %1363 = vmatpush1.msra.mxu0 %v1302
        %1364 = vmatprep.subr.mxu0 %v1305
        %1365 = vmatpush1.msra.mxu0 %v1304
        %1366 = vmatprep.subr.mxu0 %v1307
        %1367 = vmatpush1.msra.mxu0 %v1306
        %1368 = vmatprep.subr.mxu0 %v1309
        %1369 = vmatpush1.msra.mxu0 %v1308
        %1370 = vmatprep.subr.mxu0 %v1311
        %1371 = vmatpush1.msra.mxu0 %v1310
        %1372 = vmatprep.subr.mxu0 %v1313
        %1373 = vmatpush1.msra.mxu0 %v1312
        %1374 = vmatprep.subr.mxu0 %v1315
        %1375 = vmatpush1.msra.mxu0 %v1314
        %1376 = vmatprep.subr.mxu0 %v1317
        %1377 = vmatpush1.msra.mxu0 %v1316
        %1378 = vmatprep.subr.mxu0 %v1319
        %1379 = vmatpush1.msra.mxu0 %v1318
        %1380 = vmatprep.subr.mxu0 0.0
        %1381 = vmatpush1.msra.mxu0 0.0
        %1382 = vmatprep.subr.mxu0 0.0
        %1383 = vmatpush1.msra.mxu0 0.0
        %1384 = vmatprep.subr.mxu0 0.0
        %1385 = vmatpush1.msra.mxu0 0.0
        %1386 = vmatprep.subr.mxu0 0.0
        %1387 = vmatpush1.msra.mxu0 0.0
        %1388 = vmatprep.subr.mxu0 0.0
        %1389 = vmatpush1.msra.mxu0 0.0
        %1390 = vmatprep.subr.mxu0 0.0
        %1391 = vmatpush1.msra.mxu0 0.0
        %1392 = vmatprep.subr.mxu0 0.0
        %1393 = vmatpush1.msra.mxu0 0.0
        %1394 = vmatprep.subr.mxu0 0.0
        %1395 = vmatpush1.msra.mxu0 0.0
        %1396 = vmatprep.mubr.f32.mxu0 %v1328
        %1397 = vmatmul.mubr.f32.gmra.mrb[0].mxu0 %v1322
        %v1398 = vpop.f32.mrb[0].mxu0
        %v1399 = vadd.f32 0.0, %v1398
        %v1400 = vpop.f32.mrb[0].mxu0
        %v1401 = vadd.f32 0.0, %v1400
        %1402 = vmatprep.mubr.f32.mxu0 %v1330
        %1403 = vmatmul.mubr.f32.gmra.mrb[0].mxu0 %v1321
        %v1404 = vpop.f32.mrb[0].mxu0
        %v1405 = vadd.f32 0.0, %v1404
        %v1406 = vpop.f32.mrb[0].mxu0
        %v1407 = vadd.f32 0.0, %v1406
        %1408 = vdwg.mxu0
        %v1409 = vadd.f32 %v1261, %v1399
        %v1410 = vadd.f32 %v1263, %v1401
        %v1411 = vadd.f32 %v1267, %v1405
        %v1412 = vadd.f32 %v1269, %v1407
        %s1413 = scalar_lea.vmem %s3, 1152
        %v1414 = vld [vmem:[%s1413] sm:$0xff]
        %v1415 = vld [vmem:[%s1413 + $0x8] sm:$0xff]
        %v1416 = vld [vmem:[%s1413 + $0x10] sm:$0xff]
        %v1417 = vld [vmem:[%s1413 + $0x18] sm:$0xff]
        %v1418 = vld [vmem:[%s1413 + $0x20] sm:$0xff]
        %v1419 = vld [vmem:[%s1413 + $0x28] sm:$0xff]
        %v1420 = vld [vmem:[%s1413 + $0x30] sm:$0xff]
        %v1421 = vld [vmem:[%s1413 + $0x38] sm:$0xff]
        %v1422 = vld [vmem:[%s1413 + $0x40] sm:$0xff]
        %v1423 = vld [vmem:[%s1413 + $0x48] sm:$0xff]
        %v1424 = vld [vmem:[%s1413 + $0x50] sm:$0xff]
        %v1425 = vld [vmem:[%s1413 + $0x58] sm:$0xff]
        %v1426 = vld [vmem:[%s1413 + $0x60] sm:$0xff]
        %v1427 = vld [vmem:[%s1413 + $0x68] sm:$0xff]
        %v1428 = vld [vmem:[%s1413 + $0x70] sm:$0xff]
        %v1429 = vld [vmem:[%s1413 + $0x78] sm:$0xff]
        %v1430 = vld [vmem:[%s1413 + $0x80] sm:$0xff]
        %v1431 = vld [vmem:[%s1413 + $0x88] sm:$0xff]
        %v1432 = vld [vmem:[%s1413 + $0x90] sm:$0xff]
        %v1433 = vld [vmem:[%s1413 + $0x98] sm:$0xff]
        %v1434 = vld [vmem:[%s1413 + $0xa0] sm:$0xff]
        %v1435 = vld [vmem:[%s1413 + $0xa8] sm:$0xff]
        %v1436 = vld [vmem:[%s1413 + $0xb0] sm:$0xff]
        %v1437 = vld [vmem:[%s1413 + $0xb8] sm:$0xff]
        %v1438 = vld [vmem:[%s1413 + $0xc0] sm:$0xff]
        %v1439 = vld [vmem:[%s1413 + $0xc8] sm:$0xff]
        %v1440 = vld [vmem:[%s1413 + $0xd0] sm:$0xff]
        %v1441 = vld [vmem:[%s1413 + $0xd8] sm:$0xff]
        %v1442 = vld [vmem:[%s1413 + $0xe0] sm:$0xff]
        %v1443 = vld [vmem:[%s1413 + $0xe8] sm:$0xff]
        %v1444 = vld [vmem:[%s1413 + $0xf0] sm:$0xff]
        %v1445 = vld [vmem:[%s1413 + $0xf8] sm:$0xff]
        %v1446 = vld [vmem:[%s1413 + $0x100] sm:$0xff]
        %v1447 = vld [vmem:[%s1413 + $0x108] sm:$0xff]
        %v1448 = vld [vmem:[%s1413 + $0x110] sm:$0xff]
        %v1449 = vld [vmem:[%s1413 + $0x118] sm:$0xff]
        %v1450 = vld [vmem:[%s1413 + $0x120] sm:$0xff]
        %v1451 = vld [vmem:[%s1413 + $0x128] sm:$0xff]
        %v1452 = vld [vmem:[%s1413 + $0x130] sm:$0xff]
        %v1453 = vld [vmem:[%s1413 + $0x138] sm:$0xff]
        %v1454 = vld [vmem:[%s1413 + $0x140] sm:$0xff]
        %v1455 = vld [vmem:[%s1413 + $0x148] sm:$0xff]
        %v1456 = vld [vmem:[%s1413 + $0x150] sm:$0xff]
        %v1457 = vld [vmem:[%s1413 + $0x158] sm:$0xff]
        %v1458 = vld [vmem:[%s1413 + $0x160] sm:$0xff]
        %v1459 = vld [vmem:[%s1413 + $0x168] sm:$0xff]
        %v1460 = vld [vmem:[%s1413 + $0x170] sm:$0xff]
        %v1461 = vld [vmem:[%s1413 + $0x178] sm:$0xff]
        %v1462 = vrot.slane %v996, 3
        %v1463 = vrot.slane %v998, 3
        %v1464 = vsel %vm733, %v1462, %v1463
        %v1465 = vrot.slane %v997, 3
        %v1466 = vrot.slane %v999, 3
        %v1467 = vsel %vm733, %v1465, %v1466
        %v1470 = vsel %vm385, %v1467, 0
        %v1472 = vsel %vm385, %v1466, 0
        %1474 = vmatprep.subr.mxu0 %v1415
        %1475 = vmatpush1.msra.mxu0 %v1414
        %1476 = vmatprep.subr.mxu0 %v1417
        %1477 = vmatpush1.msra.mxu0 %v1416
        %1478 = vmatprep.subr.mxu0 %v1419
        %1479 = vmatpush1.msra.mxu0 %v1418
        %1480 = vmatprep.subr.mxu0 %v1421
        %1481 = vmatpush1.msra.mxu0 %v1420
        %1482 = vmatprep.subr.mxu0 %v1423
        %1483 = vmatpush1.msra.mxu0 %v1422
        %1484 = vmatprep.subr.mxu0 %v1425
        %1485 = vmatpush1.msra.mxu0 %v1424
        %1486 = vmatprep.subr.mxu0 %v1427
        %1487 = vmatpush1.msra.mxu0 %v1426
        %1488 = vmatprep.subr.mxu0 %v1429
        %1489 = vmatpush1.msra.mxu0 %v1428
        %1490 = vmatprep.subr.mxu0 %v1431
        %1491 = vmatpush1.msra.mxu0 %v1430
        %1492 = vmatprep.subr.mxu0 %v1433
        %1493 = vmatpush1.msra.mxu0 %v1432
        %1494 = vmatprep.subr.mxu0 %v1435
        %1495 = vmatpush1.msra.mxu0 %v1434
        %1496 = vmatprep.subr.mxu0 %v1437
        %1497 = vmatpush1.msra.mxu0 %v1436
        %1498 = vmatprep.subr.mxu0 %v1439
        %1499 = vmatpush1.msra.mxu0 %v1438
        %1500 = vmatprep.subr.mxu0 %v1441
        %1501 = vmatpush1.msra.mxu0 %v1440
        %1502 = vmatprep.subr.mxu0 %v1443
        %1503 = vmatpush1.msra.mxu0 %v1442
        %1504 = vmatprep.subr.mxu0 %v1445
        %1505 = vmatpush1.msra.mxu0 %v1444
        %1506 = vmatprep.subr.mxu0 %v1447
        %1507 = vmatpush1.msra.mxu0 %v1446
        %1508 = vmatprep.subr.mxu0 %v1449
        %1509 = vmatpush1.msra.mxu0 %v1448
        %1510 = vmatprep.subr.mxu0 %v1451
        %1511 = vmatpush1.msra.mxu0 %v1450
        %1512 = vmatprep.subr.mxu0 %v1453
        %1513 = vmatpush1.msra.mxu0 %v1452
        %1514 = vmatprep.subr.mxu0 %v1455
        %1515 = vmatpush1.msra.mxu0 %v1454
        %1516 = vmatprep.subr.mxu0 %v1457
        %1517 = vmatpush1.msra.mxu0 %v1456
        %1518 = vmatprep.subr.mxu0 %v1459
        %1519 = vmatpush1.msra.mxu0 %v1458
        %1520 = vmatprep.subr.mxu0 %v1461
        %1521 = vmatpush1.msra.mxu0 %v1460
        %1522 = vmatprep.subr.mxu0 0.0
        %1523 = vmatpush1.msra.mxu0 0.0
        %1524 = vmatprep.subr.mxu0 0.0
        %1525 = vmatpush1.msra.mxu0 0.0
        %1526 = vmatprep.subr.mxu0 0.0
        %1527 = vmatpush1.msra.mxu0 0.0
        %1528 = vmatprep.subr.mxu0 0.0
        %1529 = vmatpush1.msra.mxu0 0.0
        %1530 = vmatprep.subr.mxu0 0.0
        %1531 = vmatpush1.msra.mxu0 0.0
        %1532 = vmatprep.subr.mxu0 0.0
        %1533 = vmatpush1.msra.mxu0 0.0
        %1534 = vmatprep.subr.mxu0 0.0
        %1535 = vmatpush1.msra.mxu0 0.0
        %1536 = vmatprep.subr.mxu0 0.0
        %1537 = vmatpush1.msra.mxu0 0.0
        %1538 = vmatprep.mubr.f32.mxu0 %v1470
        %1539 = vmatmul.mubr.f32.gmra.mrb[0].mxu0 %v1464
        %v1540 = vpop.f32.mrb[0].mxu0
        %v1541 = vadd.f32 0.0, %v1540
        %v1542 = vpop.f32.mrb[0].mxu0
        %v1543 = vadd.f32 0.0, %v1542
        %1544 = vmatprep.mubr.f32.mxu0 %v1472
        %1545 = vmatmul.mubr.f32.gmra.mrb[0].mxu0 %v1463
        %v1546 = vpop.f32.mrb[0].mxu0
        %v1547 = vadd.f32 0.0, %v1546
        %v1548 = vpop.f32.mrb[0].mxu0
        %v1549 = vadd.f32 0.0, %v1548
        %1550 = vdwg.mxu0
        %v1551 = vadd.f32 %v1409, %v1541
        %v1552 = vadd.f32 %v1410, %v1543
        %v1553 = vadd.f32 %v1411, %v1547
        %v1554 = vadd.f32 %v1412, %v1549
        %s1555 = scalar_lea.vmem %s3, 1536
        %v1556 = vld [vmem:[%s1555] sm:$0xff]
        %v1557 = vld [vmem:[%s1555 + $0x8] sm:$0xff]
        %v1558 = vld [vmem:[%s1555 + $0x10] sm:$0xff]
        %v1559 = vld [vmem:[%s1555 + $0x18] sm:$0xff]
        %v1560 = vld [vmem:[%s1555 + $0x20] sm:$0xff]
        %v1561 = vld [vmem:[%s1555 + $0x28] sm:$0xff]
        %v1562 = vld [vmem:[%s1555 + $0x30] sm:$0xff]
        %v1563 = vld [vmem:[%s1555 + $0x38] sm:$0xff]
        %v1564 = vld [vmem:[%s1555 + $0x40] sm:$0xff]
        %v1565 = vld [vmem:[%s1555 + $0x48] sm:$0xff]
        %v1566 = vld [vmem:[%s1555 + $0x50] sm:$0xff]
        %v1567 = vld [vmem:[%s1555 + $0x58] sm:$0xff]
        %v1568 = vld [vmem:[%s1555 + $0x60] sm:$0xff]
        %v1569 = vld [vmem:[%s1555 + $0x68] sm:$0xff]
        %v1570 = vld [vmem:[%s1555 + $0x70] sm:$0xff]
        %v1571 = vld [vmem:[%s1555 + $0x78] sm:$0xff]
        %v1572 = vld [vmem:[%s1555 + $0x80] sm:$0xff]
        %v1573 = vld [vmem:[%s1555 + $0x88] sm:$0xff]
        %v1574 = vld [vmem:[%s1555 + $0x90] sm:$0xff]
        %v1575 = vld [vmem:[%s1555 + $0x98] sm:$0xff]
        %v1576 = vld [vmem:[%s1555 + $0xa0] sm:$0xff]
        %v1577 = vld [vmem:[%s1555 + $0xa8] sm:$0xff]
        %v1578 = vld [vmem:[%s1555 + $0xb0] sm:$0xff]
        %v1579 = vld [vmem:[%s1555 + $0xb8] sm:$0xff]
        %v1580 = vld [vmem:[%s1555 + $0xc0] sm:$0xff]
        %v1581 = vld [vmem:[%s1555 + $0xc8] sm:$0xff]
        %v1582 = vld [vmem:[%s1555 + $0xd0] sm:$0xff]
        %v1583 = vld [vmem:[%s1555 + $0xd8] sm:$0xff]
        %v1584 = vld [vmem:[%s1555 + $0xe0] sm:$0xff]
        %v1585 = vld [vmem:[%s1555 + $0xe8] sm:$0xff]
        %v1586 = vld [vmem:[%s1555 + $0xf0] sm:$0xff]
        %v1587 = vld [vmem:[%s1555 + $0xf8] sm:$0xff]
        %v1588 = vld [vmem:[%s1555 + $0x100] sm:$0xff]
        %v1589 = vld [vmem:[%s1555 + $0x108] sm:$0xff]
        %v1590 = vld [vmem:[%s1555 + $0x110] sm:$0xff]
        %v1591 = vld [vmem:[%s1555 + $0x118] sm:$0xff]
        %v1592 = vld [vmem:[%s1555 + $0x120] sm:$0xff]
        %v1593 = vld [vmem:[%s1555 + $0x128] sm:$0xff]
        %v1594 = vld [vmem:[%s1555 + $0x130] sm:$0xff]
        %v1595 = vld [vmem:[%s1555 + $0x138] sm:$0xff]
        %v1596 = vld [vmem:[%s1555 + $0x140] sm:$0xff]
        %v1597 = vld [vmem:[%s1555 + $0x148] sm:$0xff]
        %v1598 = vld [vmem:[%s1555 + $0x150] sm:$0xff]
        %v1599 = vld [vmem:[%s1555 + $0x158] sm:$0xff]
        %v1600 = vld [vmem:[%s1555 + $0x160] sm:$0xff]
        %v1601 = vld [vmem:[%s1555 + $0x168] sm:$0xff]
        %v1602 = vld [vmem:[%s1555 + $0x170] sm:$0xff]
        %v1603 = vld [vmem:[%s1555 + $0x178] sm:$0xff]
        %v1604 = vrot.slane %v996, 4
        %v1605 = vrot.slane %v998, 4
        %v1606 = vsel %vm845, %v1604, %v1605
        %v1607 = vrot.slane %v997, 4
        %v1608 = vrot.slane %v999, 4
        %v1609 = vsel %vm845, %v1607, %v1608
        %v1612 = vsel %vm385, %v1609, 0
        %v1614 = vsel %vm385, %v1608, 0
        %1616 = vmatprep.subr.mxu0 %v1557
        %1617 = vmatpush1.msra.mxu0 %v1556
        %1618 = vmatprep.subr.mxu0 %v1559
        %1619 = vmatpush1.msra.mxu0 %v1558
        %1620 = vmatprep.subr.mxu0 %v1561
        %1621 = vmatpush1.msra.mxu0 %v1560
        %1622 = vmatprep.subr.mxu0 %v1563
        %1623 = vmatpush1.msra.mxu0 %v1562
        %1624 = vmatprep.subr.mxu0 %v1565
        %1625 = vmatpush1.msra.mxu0 %v1564
        %1626 = vmatprep.subr.mxu0 %v1567
        %1627 = vmatpush1.msra.mxu0 %v1566
        %1628 = vmatprep.subr.mxu0 %v1569
        %1629 = vmatpush1.msra.mxu0 %v1568
        %1630 = vmatprep.subr.mxu0 %v1571
        %1631 = vmatpush1.msra.mxu0 %v1570
        %1632 = vmatprep.subr.mxu0 %v1573
        %1633 = vmatpush1.msra.mxu0 %v1572
        %1634 = vmatprep.subr.mxu0 %v1575
        %1635 = vmatpush1.msra.mxu0 %v1574
        %1636 = vmatprep.subr.mxu0 %v1577
        %1637 = vmatpush1.msra.mxu0 %v1576
        %1638 = vmatprep.subr.mxu0 %v1579
        %1639 = vmatpush1.msra.mxu0 %v1578
        %1640 = vmatprep.subr.mxu0 %v1581
        %1641 = vmatpush1.msra.mxu0 %v1580
        %1642 = vmatprep.subr.mxu0 %v1583
        %1643 = vmatpush1.msra.mxu0 %v1582
        %1644 = vmatprep.subr.mxu0 %v1585
        %1645 = vmatpush1.msra.mxu0 %v1584
        %1646 = vmatprep.subr.mxu0 %v1587
        %1647 = vmatpush1.msra.mxu0 %v1586
        %1648 = vmatprep.subr.mxu0 %v1589
        %1649 = vmatpush1.msra.mxu0 %v1588
        %1650 = vmatprep.subr.mxu0 %v1591
        %1651 = vmatpush1.msra.mxu0 %v1590
        %1652 = vmatprep.subr.mxu0 %v1593
        %1653 = vmatpush1.msra.mxu0 %v1592
        %1654 = vmatprep.subr.mxu0 %v1595
        %1655 = vmatpush1.msra.mxu0 %v1594
        %1656 = vmatprep.subr.mxu0 %v1597
        %1657 = vmatpush1.msra.mxu0 %v1596
        %1658 = vmatprep.subr.mxu0 %v1599
        %1659 = vmatpush1.msra.mxu0 %v1598
        %1660 = vmatprep.subr.mxu0 %v1601
        %1661 = vmatpush1.msra.mxu0 %v1600
        %1662 = vmatprep.subr.mxu0 %v1603
        %1663 = vmatpush1.msra.mxu0 %v1602
        %1664 = vmatprep.subr.mxu0 0.0
        %1665 = vmatpush1.msra.mxu0 0.0
        %1666 = vmatprep.subr.mxu0 0.0
        %1667 = vmatpush1.msra.mxu0 0.0
        %1668 = vmatprep.subr.mxu0 0.0
        %1669 = vmatpush1.msra.mxu0 0.0
        %1670 = vmatprep.subr.mxu0 0.0
        %1671 = vmatpush1.msra.mxu0 0.0
        %1672 = vmatprep.subr.mxu0 0.0
        %1673 = vmatpush1.msra.mxu0 0.0
        %1674 = vmatprep.subr.mxu0 0.0
        %1675 = vmatpush1.msra.mxu0 0.0
        %1676 = vmatprep.subr.mxu0 0.0
        %1677 = vmatpush1.msra.mxu0 0.0
        %1678 = vmatprep.subr.mxu0 0.0
        %1679 = vmatpush1.msra.mxu0 0.0
        %1680 = vmatprep.mubr.f32.mxu0 %v1612
        %1681 = vmatmul.mubr.f32.gmra.mrb[0].mxu0 %v1606
        %v1682 = vpop.f32.mrb[0].mxu0
        %v1683 = vadd.f32 0.0, %v1682
        %v1684 = vpop.f32.mrb[0].mxu0
        %v1685 = vadd.f32 0.0, %v1684
        %1686 = vmatprep.mubr.f32.mxu0 %v1614
        %1687 = vmatmul.mubr.f32.gmra.mrb[0].mxu0 %v1605
        %v1688 = vpop.f32.mrb[0].mxu0
        %v1689 = vadd.f32 0.0, %v1688
        %v1690 = vpop.f32.mrb[0].mxu0
        %v1691 = vadd.f32 0.0, %v1690
        %1692 = vdwg.mxu0
        %v1693 = vadd.f32 %v1551, %v1683
        %v1694 = vadd.f32 %v1552, %v1685
        %v1695 = vadd.f32 %v1553, %v1689
        %v1696 = vadd.f32 %v1554, %v1691
        %v1697 = vld [vmem:[%s4] sm:$0x3]
        %v1699 = vlaneseq
        %v1700 = vshrl.u32 %v1699, 7
        %v1701 = vsub.s32 0, %v1700
        %v1702 = vrot.slane %v1697, %v1701
        %v1703 = vlaneseq
        %v1704 = vshrl.u32 %v1703, 7
        %v1705 = vsub.s32 1, %v1704
        %v1706 = vrot.slane %v1697, %v1705
        %v1709 = vadd.f32 %v1693, %v1702
        %v1710 = vadd.f32 %v1694, %v1706
        %v1711 = vadd.f32 %v1695, %v1702
        %v1712 = vadd.f32 %v1696, %v1706
        %v1713 = vmax.f32 %v1709, 0.0
        %v1714 = vmax.f32 %v1710, 0.0
        %v1715 = vmax.f32 %v1711, 0.0
        %v1716 = vmax.f32 %v1712, 0.0
        %v1719 = vrot.slane %v1713, 1
        %v1720 = vrot.slane %v1714, 1
        %v1723 = vmax.f32 %v1713, %v1719
        %v1724 = vmax.f32 %v1714, %v1720
        %v1727 = vcombine.low %v1723, %v1724
        %v1729 = vunpack.c.l.s4 1966171168
        %v1730 = vunpack.c.0.s8 %v1729
        %v1731 = vlaneseq
        %v1732 = vshrl.u32 %v1731, 7
        %v1733 = vsub.s32 %v1730, %v1732
        %v1734 = vrot.slane %v1727, %v1733
        %v1736 = vunpack.c.l.s4 1966171168
        %v1737 = vunpack.c.0.s8 %v1736
        %v1738 = vlaneseq
        %v1739 = vshrl.u32 %v1738, 7
        %v1740 = vsub.s32 %v1737, %v1739
        %v1741 = vrot.slane %v1734, %v1740
        %v1743 = vlaneseq
        %vm1744 = vcmp.ge.s32.totalorder %v1743, 0
        %vm1745 = vcmp.lt.s32.totalorder %v1743, 144
        %vm1746 = vmand %vm1744, %vm1745
        %1747 = vst.msk [vmem:[#allocation5] ss:$8 sm:$0x3] %vm1746, %v1741
        %1748 = vst.msk [vmem:[#allocation5] ss:$8 sm:$0x0] %vm1746, %v1741
        %v1749 = vcombine.high %v1741, %v1741
        %s1751 = scalar_lea.vmem [#allocation5], 1
        %1752 = vst.msk [vmem:[%s1751] ss:$8 sm:$0x3] %vm1746, %v1749
        %1753 = vst.msk [vmem:[%s1751] ss:$8 sm:$0x0] %vm1746, %v1749
        %v1754 = vcombine.high %v1723, %v1724
        %v1756 = vunpack.c.l.s4 1966171168
        %v1757 = vunpack.c.0.s8 %v1756
        %v1758 = vlaneseq
        %v1759 = vshrl.u32 %v1758, 7
        %v1760 = vsub.s32 %v1757, %v1759
        %v1761 = vrot.slane %v1754, %v1760
        %v1763 = vunpack.c.l.s4 1966171168
        %v1764 = vunpack.c.0.s8 %v1763
        %v1765 = vlaneseq
        %v1766 = vshrl.u32 %v1765, 7
        %v1767 = vsub.s32 %v1764, %v1766
        %v1768 = vrot.slane %v1761, %v1767
        %s1770 = scalar_lea.vmem [#allocation5], 2
        %1771 = vst.msk [vmem:[%s1770] ss:$8 sm:$0x3] %vm1746, %v1768
        %1772 = vst.msk [vmem:[%s1770] ss:$8 sm:$0x0] %vm1746, %v1768
        %v1773 = vcombine.high %v1768, %v1768
        %s1775 = scalar_lea.vmem [#allocation5], 3
        %1776 = vst.msk [vmem:[%s1775] ss:$8 sm:$0x3] %vm1746, %v1773
        %1777 = vst.msk [vmem:[%s1775] ss:$8 sm:$0x0] %vm1746, %v1773
        %v1780 = vrot.slane %v1715, 1
        %v1781 = vrot.slane %v1716, 1
        %v1784 = vmax.f32 %v1715, %v1780
        %v1785 = vmax.f32 %v1716, %v1781
        %v1788 = vcombine.low %v1784, %v1785
        %v1790 = vunpack.c.l.s4 1966171168
        %v1791 = vunpack.c.0.s8 %v1790
        %v1792 = vlaneseq
        %v1793 = vshrl.u32 %v1792, 7
        %v1794 = vsub.s32 %v1791, %v1793
        %v1795 = vrot.slane %v1788, %v1794
        %v1797 = vunpack.c.l.s4 1966171168
        %v1798 = vunpack.c.0.s8 %v1797
        %v1799 = vlaneseq
        %v1800 = vshrl.u32 %v1799, 7
        %v1801 = vsub.s32 %v1798, %v1800
        %v1802 = vrot.slane %v1795, %v1801
        %s1804 = scalar_lea.vmem [#allocation5], 4
        %1805 = vst.msk [vmem:[%s1804] ss:$8 sm:$0x3] %vm1746, %v1802
        %1806 = vst.msk [vmem:[%s1804] ss:$8 sm:$0x0] %vm1746, %v1802
        %v1807 = vcombine.high %v1802, %v1802
        %s1809 = scalar_lea.vmem [#allocation5], 5
        %1810 = vst.msk [vmem:[%s1809] ss:$8 sm:$0x3] %vm1746, %v1807
        %1811 = vst.msk [vmem:[%s1809] ss:$8 sm:$0x0] %vm1746, %v1807
        %v1812 = vld [vmem:[#allocation5] sm:$0x3f]
        %v1813 = vld [vmem:[#allocation5 + $0x8] sm:$0x3f]
        %1815 = vrot.lane.b32.xlu0 %v1812, 116
        %v1816 = vpop.permute.xlu0 %1815
        %v1818 = vmax.f32 %v1812, %v1816
        %1820 = vrot.lane.b32.xlu0 %v1818, 12
        %v1821 = vpop.permute.xlu0 %1820
        %vm1823 = vcmask 193632
        %1824 = vst.msk [vmem:[#allocation3 + $0x1] sm:$0x3f] %vm1823, %v1821
        %vm1825 = vcmask 292032
        %1826 = vst.msk [vmem:[#allocation3 + $0x1] sm:$0x3f] %vm1825, %v1818
        %1827 = vrot.lane.b32.xlu0 %v1818, 116
        %v1828 = vpop.permute.xlu0 %1827
        %vm1830 = vcmask 390432
        %1831 = vst.msk [vmem:[#allocation3 + $0x1] sm:$0x3f] %vm1830, %v1828
        %1832 = vrot.lane.b32.xlu0 %v1818, 104
        %v1833 = vpop.permute.xlu0 %1832
        %vm1835 = vcmask 488832
        %1836 = vst.msk [vmem:[#allocation3 + $0x1] sm:$0x3f] %vm1835, %v1833
        %1837 = vrot.lane.b32.xlu0 %v1818, 92
        %v1838 = vpop.permute.xlu0 %1837
        %vm1840 = vcmask 587232
        %1841 = vst.msk [vmem:[#allocation3 + $0x1] sm:$0x3f] %vm1840, %v1838
        %1843 = vrot.lane.b32.xlu0 %v1813, 116
        %v1844 = vpop.permute.xlu0 %1843
        %v1846 = vmax.f32 %v1812, %v1844
        %v1847 = vmax.f32 %v1813, %v1844
        %1850 = vrot.lane.b32.xlu0 %v1846, 80
        %v1851 = vpop.permute.xlu0 %1850
        %1852 = vrot.lane.b32.xlu0 %v1847, 80
        %v1853 = vpop.permute.xlu0 %1852
        %vm1854 = vcmask 654336
        %v1855 = vsel %vm1854, %v1851, %v1853
        %vm1857 = vcmask 685632
        %1858 = vst.msk [vmem:[#allocation3 + $0x1] sm:$0x3f] %vm1857, %v1855
        %v1859 = vld [vmem:[#allocation3] sm:$0xff]
        %v1860 = vld [vmem:[%s5] sm:$0xff]
        %v1861 = vld [vmem:[%s5 + $0x8] sm:$0xff]
        %v1862 = vld [vmem:[%s5 + $0x10] sm:$0xff]
        %v1863 = vld [vmem:[%s5 + $0x18] sm:$0xff]
        %v1864 = vld [vmem:[%s5 + $0x20] sm:$0xff]
        %v1865 = vld [vmem:[%s5 + $0x28] sm:$0xff]
        %v1866 = vld [vmem:[%s5 + $0x30] sm:$0xff]
        %v1867 = vld [vmem:[%s5 + $0x38] sm:$0xff]
        %v1868 = vld [vmem:[%s5 + $0x40] sm:$0xff]
        %v1869 = vld [vmem:[%s5 + $0x48] sm:$0xff]
        %v1870 = vld [vmem:[%s5 + $0x50] sm:$0xff]
        %v1871 = vld [vmem:[%s5 + $0x58] sm:$0xff]
        %s1872 = scalar_lea.vmem %s5, 96
        %v1873 = vld [vmem:[%s1872] sm:$0xff]
        %v1874 = vld [vmem:[%s1872 + $0x8] sm:$0xff]
        %v1875 = vld [vmem:[%s1872 + $0x10] sm:$0xff]
        %v1876 = vld [vmem:[%s1872 + $0x18] sm:$0xff]
        %v1877 = vld [vmem:[%s1872 + $0x20] sm:$0xff]
        %v1878 = vld [vmem:[%s1872 + $0x28] sm:$0xff]
        %v1879 = vld [vmem:[%s1872 + $0x30] sm:$0xff]
        %v1880 = vld [vmem:[%s1872 + $0x38] sm:$0xff]
        %v1881 = vld [vmem:[%s1872 + $0x40] sm:$0xff]
        %v1882 = vld [vmem:[%s1872 + $0x48] sm:$0xff]
        %v1883 = vld [vmem:[%s1872 + $0x50] sm:$0xff]
        %v1884 = vld [vmem:[%s1872 + $0x58] sm:$0xff]
        %v1886 = vrot.slane %v1859, 1
        %v1887 = vsel %vm389, %v1886, 0
        %1889 = vmatprep.subr.mxu0 0.0
        %1890 = vmatpush1.msra.mxu0 %v1873
        %1891 = vmatprep.subr.mxu0 0.0
        %1892 = vmatpush1.msra.mxu0 %v1874
        %1893 = vmatprep.subr.mxu0 0.0
        %1894 = vmatpush1.msra.mxu0 %v1875
        %1895 = vmatprep.subr.mxu0 0.0
        %1896 = vmatpush1.msra.mxu0 %v1876
        %1897 = vmatprep.subr.mxu0 0.0
        %1898 = vmatpush1.msra.mxu0 %v1877
        %1899 = vmatprep.subr.mxu0 0.0
        %1900 = vmatpush1.msra.mxu0 %v1878
        %1901 = vmatprep.subr.mxu0 0.0
        %1902 = vmatpush1.msra.mxu0 %v1879
        %1903 = vmatprep.subr.mxu0 0.0
        %1904 = vmatpush1.msra.mxu0 %v1880
        %1905 = vmatprep.subr.mxu0 0.0
        %1906 = vmatpush1.msra.mxu0 %v1881
        %1907 = vmatprep.subr.mxu0 0.0
        %1908 = vmatpush1.msra.mxu0 %v1882
        %1909 = vmatprep.subr.mxu0 0.0
        %1910 = vmatpush1.msra.mxu0 %v1883
        %1911 = vmatprep.subr.mxu0 0.0
        %1912 = vmatpush1.msra.mxu0 %v1884
        %1913 = vmatprep.subr.mxu0 0.0
        %1914 = vmatpush1.msra.mxu0 0.0
        %1915 = vmatprep.subr.mxu0 0.0
        %1916 = vmatpush1.msra.mxu0 0.0
        %1917 = vmatprep.subr.mxu0 0.0
        %1918 = vmatpush1.msra.mxu0 0.0
        %1919 = vmatprep.subr.mxu0 0.0
        %1920 = vmatpush1.msra.mxu0 0.0
        %1921 = vmatprep.subr.mxu0 0.0
        %1922 = vmatpush1.msra.mxu0 0.0
        %1923 = vmatprep.subr.mxu0 0.0
        %1924 = vmatpush1.msra.mxu0 0.0
        %1925 = vmatprep.subr.mxu0 0.0
        %1926 = vmatpush1.msra.mxu0 0.0
        %1927 = vmatprep.subr.mxu0 0.0
        %1928 = vmatpush1.msra.mxu0 0.0
        %1929 = vmatprep.subr.mxu0 0.0
        %1930 = vmatpush1.msra.mxu0 0.0
        %1931 = vmatprep.subr.mxu0 0.0
        %1932 = vmatpush1.msra.mxu0 0.0
        %1933 = vmatprep.subr.mxu0 0.0
        %1934 = vmatpush1.msra.mxu0 0.0
        %1935 = vmatprep.subr.mxu0 0.0
        %1936 = vmatpush1.msra.mxu0 0.0
        %1937 = vmatprep.subr.mxu0 0.0
        %1938 = vmatpush1.msra.mxu0 0.0
        %1939 = vmatprep.subr.mxu0 0.0
        %1940 = vmatpush1.msra.mxu0 0.0
        %1941 = vmatprep.subr.mxu0 0.0
        %1942 = vmatpush1.msra.mxu0 0.0
        %1943 = vmatprep.subr.mxu0 0.0
        %1944 = vmatpush1.msra.mxu0 0.0
        %1945 = vmatprep.subr.mxu0 0.0
        %1946 = vmatpush1.msra.mxu0 0.0
        %1947 = vmatprep.subr.mxu0 0.0
        %1948 = vmatpush1.msra.mxu0 0.0
        %1949 = vmatprep.subr.mxu0 0.0
        %1950 = vmatpush1.msra.mxu0 0.0
        %1951 = vmatprep.subr.mxu0 0.0
        %1952 = vmatpush1.msra.mxu0 0.0
        %1953 = vmatprep.mubr.f32.mxu0 0.0
        %1954 = vmatmul.mubr.f32.gmra.mrb[0].mxu0 %v1887
        %v1955 = vpop.f32.mrb[0].mxu0
        %v1956 = vadd.f32 0.0, %v1955
        %v1957 = vpop.f32.mrb[0].mxu0
        %1958 = vdwg.mxu0
        %v1959 = vsel %vm389, %v1859, 0
        %1961 = vmatprep.subr.mxu0 0.0
        %1962 = vmatpush1.msra.mxu0 %v1860
        %1963 = vmatprep.subr.mxu0 0.0
        %1964 = vmatpush1.msra.mxu0 %v1861
        %1965 = vmatprep.subr.mxu0 0.0
        %1966 = vmatpush1.msra.mxu0 %v1862
        %1967 = vmatprep.subr.mxu0 0.0
        %1968 = vmatpush1.msra.mxu0 %v1863
        %1969 = vmatprep.subr.mxu0 0.0
        %1970 = vmatpush1.msra.mxu0 %v1864
        %1971 = vmatprep.subr.mxu0 0.0
        %1972 = vmatpush1.msra.mxu0 %v1865
        %1973 = vmatprep.subr.mxu0 0.0
        %1974 = vmatpush1.msra.mxu0 %v1866
        %1975 = vmatprep.subr.mxu0 0.0
        %1976 = vmatpush1.msra.mxu0 %v1867
        %1977 = vmatprep.subr.mxu0 0.0
        %1978 = vmatpush1.msra.mxu0 %v1868
        %1979 = vmatprep.subr.mxu0 0.0
        %1980 = vmatpush1.msra.mxu0 %v1869
        %1981 = vmatprep.subr.mxu0 0.0
        %1982 = vmatpush1.msra.mxu0 %v1870
        %1983 = vmatprep.subr.mxu0 0.0
        %1984 = vmatpush1.msra.mxu0 %v1871
        %1985 = vmatprep.subr.mxu0 0.0
        %1986 = vmatpush1.msra.mxu0 0.0
        %1987 = vmatprep.subr.mxu0 0.0
        %1988 = vmatpush1.msra.mxu0 0.0
        %1989 = vmatprep.subr.mxu0 0.0
        %1990 = vmatpush1.msra.mxu0 0.0
        %1991 = vmatprep.subr.mxu0 0.0
        %1992 = vmatpush1.msra.mxu0 0.0
        %1993 = vmatprep.subr.mxu0 0.0
        %1994 = vmatpush1.msra.mxu0 0.0
        %1995 = vmatprep.subr.mxu0 0.0
        %1996 = vmatpush1.msra.mxu0 0.0
        %1997 = vmatprep.subr.mxu0 0.0
        %1998 = vmatpush1.msra.mxu0 0.0
        %1999 = vmatprep.subr.mxu0 0.0
        %2000 = vmatpush1.msra.mxu0 0.0
        %2001 = vmatprep.subr.mxu0 0.0
        %2002 = vmatpush1.msra.mxu0 0.0
        %2003 = vmatprep.subr.mxu0 0.0
        %2004 = vmatpush1.msra.mxu0 0.0
        %2005 = vmatprep.subr.mxu0 0.0
        %2006 = vmatpush1.msra.mxu0 0.0
        %2007 = vmatprep.subr.mxu0 0.0
        %2008 = vmatpush1.msra.mxu0 0.0
        %2009 = vmatprep.subr.mxu0 0.0
        %2010 = vmatpush1.msra.mxu0 0.0
        %2011 = vmatprep.subr.mxu0 0.0
        %2012 = vmatpush1.msra.mxu0 0.0
        %2013 = vmatprep.subr.mxu0 0.0
        %2014 = vmatpush1.msra.mxu0 0.0
        %2015 = vmatprep.subr.mxu0 0.0
        %2016 = vmatpush1.msra.mxu0 0.0
        %2017 = vmatprep.subr.mxu0 0.0
        %2018 = vmatpush1.msra.mxu0 0.0
        %2019 = vmatprep.subr.mxu0 0.0
        %2020 = vmatpush1.msra.mxu0 0.0
        %2021 = vmatprep.subr.mxu0 0.0
        %2022 = vmatpush1.msra.mxu0 0.0
        %2023 = vmatprep.subr.mxu0 0.0
        %2024 = vmatpush1.msra.mxu0 0.0
        %2025 = vmatprep.mubr.f32.mxu0 0.0
        %2026 = vmatmul.mubr.f32.gmra.mrb[0].mxu0 %v1959
        %v2027 = vpop.f32.mrb[0].mxu0
        %v2028 = vadd.f32 %v1956, %v2027
        %v2029 = vpop.f32.mrb[0].mxu0
        %2030 = vdwg.mxu0
        %s2031 = scalar_lea.vmem %s5, 192
        %v2032 = vld [vmem:[%s2031] sm:$0xff]
        %v2033 = vld [vmem:[%s2031 + $0x8] sm:$0xff]
        %v2034 = vld [vmem:[%s2031 + $0x10] sm:$0xff]
        %v2035 = vld [vmem:[%s2031 + $0x18] sm:$0xff]
        %v2036 = vld [vmem:[%s2031 + $0x20] sm:$0xff]
        %v2037 = vld [vmem:[%s2031 + $0x28] sm:$0xff]
        %v2038 = vld [vmem:[%s2031 + $0x30] sm:$0xff]
        %v2039 = vld [vmem:[%s2031 + $0x38] sm:$0xff]
        %v2040 = vld [vmem:[%s2031 + $0x40] sm:$0xff]
        %v2041 = vld [vmem:[%s2031 + $0x48] sm:$0xff]
        %v2042 = vld [vmem:[%s2031 + $0x50] sm:$0xff]
        %v2043 = vld [vmem:[%s2031 + $0x58] sm:$0xff]
        %v2044 = vrot.slane %v1859, 2
        %v2045 = vsel %vm389, %v2044, 0
        %2047 = vmatprep.subr.mxu0 0.0
        %2048 = vmatpush1.msra.mxu0 %v2032
        %2049 = vmatprep.subr.mxu0 0.0
        %2050 = vmatpush1.msra.mxu0 %v2033
        %2051 = vmatprep.subr.mxu0 0.0
        %2052 = vmatpush1.msra.mxu0 %v2034
        %2053 = vmatprep.subr.mxu0 0.0
        %2054 = vmatpush1.msra.mxu0 %v2035
        %2055 = vmatprep.subr.mxu0 0.0
        %2056 = vmatpush1.msra.mxu0 %v2036
        %2057 = vmatprep.subr.mxu0 0.0
        %2058 = vmatpush1.msra.mxu0 %v2037
        %2059 = vmatprep.subr.mxu0 0.0
        %2060 = vmatpush1.msra.mxu0 %v2038
        %2061 = vmatprep.subr.mxu0 0.0
        %2062 = vmatpush1.msra.mxu0 %v2039
        %2063 = vmatprep.subr.mxu0 0.0
        %2064 = vmatpush1.msra.mxu0 %v2040
        %2065 = vmatprep.subr.mxu0 0.0
        %2066 = vmatpush1.msra.mxu0 %v2041
        %2067 = vmatprep.subr.mxu0 0.0
        %2068 = vmatpush1.msra.mxu0 %v2042
        %2069 = vmatprep.subr.mxu0 0.0
        %2070 = vmatpush1.msra.mxu0 %v2043
        %2071 = vmatprep.subr.mxu0 0.0
        %2072 = vmatpush1.msra.mxu0 0.0
        %2073 = vmatprep.subr.mxu0 0.0
        %2074 = vmatpush1.msra.mxu0 0.0
        %2075 = vmatprep.subr.mxu0 0.0
        %2076 = vmatpush1.msra.mxu0 0.0
        %2077 = vmatprep.subr.mxu0 0.0
        %2078 = vmatpush1.msra.mxu0 0.0
        %2079 = vmatprep.subr.mxu0 0.0
        %2080 = vmatpush1.msra.mxu0 0.0
        %2081 = vmatprep.subr.mxu0 0.0
        %2082 = vmatpush1.msra.mxu0 0.0
        %2083 = vmatprep.subr.mxu0 0.0
        %2084 = vmatpush1.msra.mxu0 0.0
        %2085 = vmatprep.subr.mxu0 0.0
        %2086 = vmatpush1.msra.mxu0 0.0
        %2087 = vmatprep.subr.mxu0 0.0
        %2088 = vmatpush1.msra.mxu0 0.0
        %2089 = vmatprep.subr.mxu0 0.0
        %2090 = vmatpush1.msra.mxu0 0.0
        %2091 = vmatprep.subr.mxu0 0.0
        %2092 = vmatpush1.msra.mxu0 0.0
        %2093 = vmatprep.subr.mxu0 0.0
        %2094 = vmatpush1.msra.mxu0 0.0
        %2095 = vmatprep.subr.mxu0 0.0
        %2096 = vmatpush1.msra.mxu0 0.0
        %2097 = vmatprep.subr.mxu0 0.0
        %2098 = vmatpush1.msra.mxu0 0.0
        %2099 = vmatprep.subr.mxu0 0.0
        %2100 = vmatpush1.msra.mxu0 0.0
        %2101 = vmatprep.subr.mxu0 0.0
        %2102 = vmatpush1.msra.mxu0 0.0
        %2103 = vmatprep.subr.mxu0 0.0
        %2104 = vmatpush1.msra.mxu0 0.0
        %2105 = vmatprep.subr.mxu0 0.0
        %2106 = vmatpush1.msra.mxu0 0.0
        %2107 = vmatprep.subr.mxu0 0.0
        %2108 = vmatpush1.msra.mxu0 0.0
        %2109 = vmatprep.subr.mxu0 0.0
        %2110 = vmatpush1.msra.mxu0 0.0
        %2111 = vmatprep.mubr.f32.mxu0 0.0
        %2112 = vmatmul.mubr.f32.gmra.mrb[0].mxu0 %v2045
        %v2113 = vpop.f32.mrb[0].mxu0
        %v2114 = vadd.f32 0.0, %v2113
        %v2115 = vpop.f32.mrb[0].mxu0
        %2116 = vdwg.mxu0
        %v2117 = vadd.f32 %v2028, %v2114
        %s2118 = scalar_lea.vmem %s5, 288
        %v2119 = vld [vmem:[%s2118] sm:$0xff]
        %v2120 = vld [vmem:[%s2118 + $0x8] sm:$0xff]
        %v2121 = vld [vmem:[%s2118 + $0x10] sm:$0xff]
        %v2122 = vld [vmem:[%s2118 + $0x18] sm:$0xff]
        %v2123 = vld [vmem:[%s2118 + $0x20] sm:$0xff]
        %v2124 = vld [vmem:[%s2118 + $0x28] sm:$0xff]
        %v2125 = vld [vmem:[%s2118 + $0x30] sm:$0xff]
        %v2126 = vld [vmem:[%s2118 + $0x38] sm:$0xff]
        %v2127 = vld [vmem:[%s2118 + $0x40] sm:$0xff]
        %v2128 = vld [vmem:[%s2118 + $0x48] sm:$0xff]
        %v2129 = vld [vmem:[%s2118 + $0x50] sm:$0xff]
        %v2130 = vld [vmem:[%s2118 + $0x58] sm:$0xff]
        %v2131 = vrot.slane %v1859, 3
        %v2132 = vsel %vm389, %v2131, 0
        %2134 = vmatprep.subr.mxu0 0.0
        %2135 = vmatpush1.msra.mxu0 %v2119
        %2136 = vmatprep.subr.mxu0 0.0
        %2137 = vmatpush1.msra.mxu0 %v2120
        %2138 = vmatprep.subr.mxu0 0.0
        %2139 = vmatpush1.msra.mxu0 %v2121
        %2140 = vmatprep.subr.mxu0 0.0
        %2141 = vmatpush1.msra.mxu0 %v2122
        %2142 = vmatprep.subr.mxu0 0.0
        %2143 = vmatpush1.msra.mxu0 %v2123
        %2144 = vmatprep.subr.mxu0 0.0
        %2145 = vmatpush1.msra.mxu0 %v2124
        %2146 = vmatprep.subr.mxu0 0.0
        %2147 = vmatpush1.msra.mxu0 %v2125
        %2148 = vmatprep.subr.mxu0 0.0
        %2149 = vmatpush1.msra.mxu0 %v2126
        %2150 = vmatprep.subr.mxu0 0.0
        %2151 = vmatpush1.msra.mxu0 %v2127
        %2152 = vmatprep.subr.mxu0 0.0
        %2153 = vmatpush1.msra.mxu0 %v2128
        %2154 = vmatprep.subr.mxu0 0.0
        %2155 = vmatpush1.msra.mxu0 %v2129
        %2156 = vmatprep.subr.mxu0 0.0
        %2157 = vmatpush1.msra.mxu0 %v2130
        %2158 = vmatprep.subr.mxu0 0.0
        %2159 = vmatpush1.msra.mxu0 0.0
        %2160 = vmatprep.subr.mxu0 0.0
        %2161 = vmatpush1.msra.mxu0 0.0
        %2162 = vmatprep.subr.mxu0 0.0
        %2163 = vmatpush1.msra.mxu0 0.0
        %2164 = vmatprep.subr.mxu0 0.0
        %2165 = vmatpush1.msra.mxu0 0.0
        %2166 = vmatprep.subr.mxu0 0.0
        %2167 = vmatpush1.msra.mxu0 0.0
        %2168 = vmatprep.subr.mxu0 0.0
        %2169 = vmatpush1.msra.mxu0 0.0
        %2170 = vmatprep.subr.mxu0 0.0
        %2171 = vmatpush1.msra.mxu0 0.0
        %2172 = vmatprep.subr.mxu0 0.0
        %2173 = vmatpush1.msra.mxu0 0.0
        %2174 = vmatprep.subr.mxu0 0.0
        %2175 = vmatpush1.msra.mxu0 0.0
        %2176 = vmatprep.subr.mxu0 0.0
        %2177 = vmatpush1.msra.mxu0 0.0
        %2178 = vmatprep.subr.mxu0 0.0
        %2179 = vmatpush1.msra.mxu0 0.0
        %2180 = vmatprep.subr.mxu0 0.0
        %2181 = vmatpush1.msra.mxu0 0.0
        %2182 = vmatprep.subr.mxu0 0.0
        %2183 = vmatpush1.msra.mxu0 0.0
        %2184 = vmatprep.subr.mxu0 0.0
        %2185 = vmatpush1.msra.mxu0 0.0
        %2186 = vmatprep.subr.mxu0 0.0
        %2187 = vmatpush1.msra.mxu0 0.0
        %2188 = vmatprep.subr.mxu0 0.0
        %2189 = vmatpush1.msra.mxu0 0.0
        %2190 = vmatprep.subr.mxu0 0.0
        %2191 = vmatpush1.msra.mxu0 0.0
        %2192 = vmatprep.subr.mxu0 0.0
        %2193 = vmatpush1.msra.mxu0 0.0
        %2194 = vmatprep.subr.mxu0 0.0
        %2195 = vmatpush1.msra.mxu0 0.0
        %2196 = vmatprep.subr.mxu0 0.0
        %2197 = vmatpush1.msra.mxu0 0.0
        %2198 = vmatprep.mubr.f32.mxu0 0.0
        %2199 = vmatmul.mubr.f32.gmra.mrb[0].mxu0 %v2132
        %v2200 = vpop.f32.mrb[0].mxu0
        %v2201 = vadd.f32 0.0, %v2200
        %v2202 = vpop.f32.mrb[0].mxu0
        %2203 = vdwg.mxu0
        %v2204 = vadd.f32 %v2117, %v2201
        %s2205 = scalar_lea.vmem %s5, 384
        %v2206 = vld [vmem:[%s2205] sm:$0xff]
        %v2207 = vld [vmem:[%s2205 + $0x8] sm:$0xff]
        %v2208 = vld [vmem:[%s2205 + $0x10] sm:$0xff]
        %v2209 = vld [vmem:[%s2205 + $0x18] sm:$0xff]
        %v2210 = vld [vmem:[%s2205 + $0x20] sm:$0xff]
        %v2211 = vld [vmem:[%s2205 + $0x28] sm:$0xff]
        %v2212 = vld [vmem:[%s2205 + $0x30] sm:$0xff]
        %v2213 = vld [vmem:[%s2205 + $0x38] sm:$0xff]
        %v2214 = vld [vmem:[%s2205 + $0x40] sm:$0xff]
        %v2215 = vld [vmem:[%s2205 + $0x48] sm:$0xff]
        %v2216 = vld [vmem:[%s2205 + $0x50] sm:$0xff]
        %v2217 = vld [vmem:[%s2205 + $0x58] sm:$0xff]
        %v2218 = vrot.slane %v1859, 4
        %v2219 = vsel %vm389, %v2218, 0
        %2221 = vmatprep.subr.mxu0 0.0
        %2222 = vmatpush1.msra.mxu0 %v2206
        %2223 = vmatprep.subr.mxu0 0.0
        %2224 = vmatpush1.msra.mxu0 %v2207
        %2225 = vmatprep.subr.mxu0 0.0
        %2226 = vmatpush1.msra.mxu0 %v2208
        %2227 = vmatprep.subr.mxu0 0.0
        %2228 = vmatpush1.msra.mxu0 %v2209
        %2229 = vmatprep.subr.mxu0 0.0
        %2230 = vmatpush1.msra.mxu0 %v2210
        %2231 = vmatprep.subr.mxu0 0.0
        %2232 = vmatpush1.msra.mxu0 %v2211
        %2233 = vmatprep.subr.mxu0 0.0
        %2234 = vmatpush1.msra.mxu0 %v2212
        %2235 = vmatprep.subr.mxu0 0.0
        %2236 = vmatpush1.msra.mxu0 %v2213
        %2237 = vmatprep.subr.mxu0 0.0
        %2238 = vmatpush1.msra.mxu0 %v2214
        %2239 = vmatprep.subr.mxu0 0.0
        %2240 = vmatpush1.msra.mxu0 %v2215
        %2241 = vmatprep.subr.mxu0 0.0
        %2242 = vmatpush1.msra.mxu0 %v2216
        %2243 = vmatprep.subr.mxu0 0.0
        %2244 = vmatpush1.msra.mxu0 %v2217
        %2245 = vmatprep.subr.mxu0 0.0
        %2246 = vmatpush1.msra.mxu0 0.0
        %2247 = vmatprep.subr.mxu0 0.0
        %2248 = vmatpush1.msra.mxu0 0.0
        %2249 = vmatprep.subr.mxu0 0.0
        %2250 = vmatpush1.msra.mxu0 0.0
        %2251 = vmatprep.subr.mxu0 0.0
        %2252 = vmatpush1.msra.mxu0 0.0
        %2253 = vmatprep.subr.mxu0 0.0
        %2254 = vmatpush1.msra.mxu0 0.0
        %2255 = vmatprep.subr.mxu0 0.0
        %2256 = vmatpush1.msra.mxu0 0.0
        %2257 = vmatprep.subr.mxu0 0.0
        %2258 = vmatpush1.msra.mxu0 0.0
        %2259 = vmatprep.subr.mxu0 0.0
        %2260 = vmatpush1.msra.mxu0 0.0
        %2261 = vmatprep.subr.mxu0 0.0
        %2262 = vmatpush1.msra.mxu0 0.0
        %2263 = vmatprep.subr.mxu0 0.0
        %2264 = vmatpush1.msra.mxu0 0.0
        %2265 = vmatprep.subr.mxu0 0.0
        %2266 = vmatpush1.msra.mxu0 0.0
        %2267 = vmatprep.subr.mxu0 0.0
        %2268 = vmatpush1.msra.mxu0 0.0
        %2269 = vmatprep.subr.mxu0 0.0
        %2270 = vmatpush1.msra.mxu0 0.0
        %2271 = vmatprep.subr.mxu0 0.0
        %2272 = vmatpush1.msra.mxu0 0.0
        %2273 = vmatprep.subr.mxu0 0.0
        %2274 = vmatpush1.msra.mxu0 0.0
        %2275 = vmatprep.subr.mxu0 0.0
        %2276 = vmatpush1.msra.mxu0 0.0
        %2277 = vmatprep.subr.mxu0 0.0
        %2278 = vmatpush1.msra.mxu0 0.0
        %2279 = vmatprep.subr.mxu0 0.0
        %2280 = vmatpush1.msra.mxu0 0.0
        %2281 = vmatprep.subr.mxu0 0.0
        %2282 = vmatpush1.msra.mxu0 0.0
        %2283 = vmatprep.subr.mxu0 0.0
        %2284 = vmatpush1.msra.mxu0 0.0
        %2285 = vmatprep.mubr.f32.mxu0 0.0
        %2286 = vmatmul.mubr.f32.gmra.mrb[0].mxu0 %v2219
        %v2287 = vpop.f32.mrb[0].mxu0
        %v2288 = vadd.f32 0.0, %v2287
        %v2289 = vpop.f32.mrb[0].mxu0
        %2290 = vdwg.mxu0
        %v2291 = vadd.f32 %v2204, %v2288
        %v2292 = vld [vmem:[%s6] sm:$0x1]
        %v2294 = vlaneseq
        %v2295 = vshrl.u32 %v2294, 7
        %v2296 = vsub.s32 0, %v2295
        %v2297 = vrot.slane %v2292, %v2296
        %v2299 = vadd.f32 %v2291, %v2297
        %v2300 = vmax.f32 %v2299, 0.0
        %v2302 = vrot.slane %v2300, 7
        %2303 = vrot.lane.b32.xlu0 %v2302, 24
        %v2304 = vpop.permute.xlu0 %2303
        %vm2306 = vcmask 979137
        %2307 = vst.msk [vmem:[#allocation4] sm:$0x1e] %vm2306, %v2304
        %v2308 = vld [vmem:[#allocation4] sm:$0x3f]
        %v2309 = vld [vmem:[#allocation4 + $0x8] sm:$0x3f]
        %v2310 = vld [vmem:[%s7] sm:$0xff]
        %v2311 = vld [vmem:[%s7 + $0x8] sm:$0xff]
        %v2312 = vld [vmem:[%s7 + $0x10] sm:$0xff]
        %v2313 = vld [vmem:[%s7 + $0x18] sm:$0xff]
        %v2314 = vld [vmem:[%s7 + $0x20] sm:$0xff]
        %v2315 = vld [vmem:[%s7 + $0x28] sm:$0xff]
        %v2316 = vld [vmem:[%s7 + $0x30] sm:$0xff]
        %v2317 = vld [vmem:[%s7 + $0x38] sm:$0xff]
        %v2318 = vld [vmem:[%s7 + $0x40] sm:$0xff]
        %v2319 = vld [vmem:[%s7 + $0x48] sm:$0xff]
        %v2320 = vld [vmem:[%s7 + $0x50] sm:$0xff]
        %v2321 = vld [vmem:[%s7 + $0x58] sm:$0xff]
        %v2322 = vld [vmem:[%s7 + $0x60] sm:$0xff]
        %v2323 = vld [vmem:[%s7 + $0x68] sm:$0xff]
        %v2324 = vld [vmem:[%s7 + $0x70] sm:$0xff]
        %v2325 = vld [vmem:[%s7 + $0x78] sm:$0xff]
        %v2326 = vld [vmem:[%s7 + $0x80] sm:$0xff]
        %v2327 = vld [vmem:[%s7 + $0x88] sm:$0xff]
        %s2328 = scalar_lea.vmem %s7, 144
        %v2329 = vld [vmem:[%s2328] sm:$0xff]
        %v2330 = vld [vmem:[%s2328 + $0x8] sm:$0xff]
        %v2331 = vld [vmem:[%s2328 + $0x10] sm:$0xff]
        %v2332 = vld [vmem:[%s2328 + $0x18] sm:$0xff]
        %v2333 = vld [vmem:[%s2328 + $0x20] sm:$0xff]
        %v2334 = vld [vmem:[%s2328 + $0x28] sm:$0xff]
        %v2335 = vld [vmem:[%s2328 + $0x30] sm:$0xff]
        %v2336 = vld [vmem:[%s2328 + $0x38] sm:$0xff]
        %v2337 = vld [vmem:[%s2328 + $0x40] sm:$0xff]
        %v2338 = vld [vmem:[%s2328 + $0x48] sm:$0xff]
        %v2339 = vld [vmem:[%s2328 + $0x50] sm:$0xff]
        %v2340 = vld [vmem:[%s2328 + $0x58] sm:$0xff]
        %v2341 = vld [vmem:[%s2328 + $0x60] sm:$0xff]
        %v2342 = vld [vmem:[%s2328 + $0x68] sm:$0xff]
        %v2343 = vld [vmem:[%s2328 + $0x70] sm:$0xff]
        %v2344 = vld [vmem:[%s2328 + $0x78] sm:$0xff]
        %v2345 = vld [vmem:[%s2328 + $0x80] sm:$0xff]
        %v2346 = vld [vmem:[%s2328 + $0x88] sm:$0xff]
        %v2349 = vrot.slane %v2308, 1
        %v2350 = vrot.slane %v2309, 1
        %vm2352 = vcmask 130048
        %v2353 = vsel %vm2352, %v2350, 0
        %2355 = vmatprep.subr.mxu0 0.0
        %2356 = vmatpush1.msra.mxu0 %v2329
        %2357 = vmatprep.subr.mxu0 0.0
        %2358 = vmatpush1.msra.mxu0 %v2330
        %2359 = vmatprep.subr.mxu0 0.0
        %2360 = vmatpush1.msra.mxu0 %v2331
        %2361 = vmatprep.subr.mxu0 0.0
        %2362 = vmatpush1.msra.mxu0 %v2332
        %2363 = vmatprep.subr.mxu0 0.0
        %2364 = vmatpush1.msra.mxu0 %v2333
        %2365 = vmatprep.subr.mxu0 0.0
        %2366 = vmatpush1.msra.mxu0 %v2334
        %2367 = vmatprep.subr.mxu0 0.0
        %2368 = vmatpush1.msra.mxu0 %v2335
        %2369 = vmatprep.subr.mxu0 0.0
        %2370 = vmatpush1.msra.mxu0 %v2336
        %2371 = vmatprep.subr.mxu0 0.0
        %2372 = vmatpush1.msra.mxu0 %v2337
        %2373 = vmatprep.subr.mxu0 0.0
        %2374 = vmatpush1.msra.mxu0 %v2338
        %2375 = vmatprep.subr.mxu0 0.0
        %2376 = vmatpush1.msra.mxu0 %v2339
        %2377 = vmatprep.subr.mxu0 0.0
        %2378 = vmatpush1.msra.mxu0 %v2340
        %2379 = vmatprep.subr.mxu0 0.0
        %2380 = vmatpush1.msra.mxu0 %v2341
        %2381 = vmatprep.subr.mxu0 0.0
        %2382 = vmatpush1.msra.mxu0 %v2342
        %2383 = vmatprep.subr.mxu0 0.0
        %2384 = vmatpush1.msra.mxu0 %v2343
        %2385 = vmatprep.subr.mxu0 0.0
        %2386 = vmatpush1.msra.mxu0 %v2344
        %2387 = vmatprep.subr.mxu0 0.0
        %2388 = vmatpush1.msra.mxu0 %v2345
        %2389 = vmatprep.subr.mxu0 0.0
        %2390 = vmatpush1.msra.mxu0 %v2346
        %2391 = vmatprep.subr.mxu0 0.0
        %2392 = vmatpush1.msra.mxu0 0.0
        %2393 = vmatprep.subr.mxu0 0.0
        %2394 = vmatpush1.msra.mxu0 0.0
        %2395 = vmatprep.subr.mxu0 0.0
        %2396 = vmatpush1.msra.mxu0 0.0
        %2397 = vmatprep.subr.mxu0 0.0
        %2398 = vmatpush1.msra.mxu0 0.0
        %2399 = vmatprep.subr.mxu0 0.0
        %2400 = vmatpush1.msra.mxu0 0.0
        %2401 = vmatprep.subr.mxu0 0.0
        %2402 = vmatpush1.msra.mxu0 0.0
        %2403 = vmatprep.subr.mxu0 0.0
        %2404 = vmatpush1.msra.mxu0 0.0
        %2405 = vmatprep.subr.mxu0 0.0
        %2406 = vmatpush1.msra.mxu0 0.0
        %2407 = vmatprep.subr.mxu0 0.0
        %2408 = vmatpush1.msra.mxu0 0.0
        %2409 = vmatprep.subr.mxu0 0.0
        %2410 = vmatpush1.msra.mxu0 0.0
        %2411 = vmatprep.subr.mxu0 0.0
        %2412 = vmatpush1.msra.mxu0 0.0
        %2413 = vmatprep.subr.mxu0 0.0
        %2414 = vmatpush1.msra.mxu0 0.0
        %2415 = vmatprep.subr.mxu0 0.0
        %2416 = vmatpush1.msra.mxu0 0.0
        %2417 = vmatprep.subr.mxu0 0.0
        %2418 = vmatpush1.msra.mxu0 0.0
        %2419 = vmatprep.mubr.f32.mxu0 %v2353
        %2420 = vmatmul.mubr.f32.gmra.mrb[0].mxu0 %v2349
        %v2421 = vpop.f32.mrb[0].mxu0
        %v2422 = vadd.f32 0.0, %v2421
        %v2423 = vpop.f32.mrb[0].mxu0
        %2424 = vdwg.mxu0
        %v2425 = vsel %vm2352, %v2309, 0
        %2427 = vmatprep.subr.mxu0 0.0
        %2428 = vmatpush1.msra.mxu0 %v2310
        %2429 = vmatprep.subr.mxu0 0.0
        %2430 = vmatpush1.msra.mxu0 %v2311
        %2431 = vmatprep.subr.mxu0 0.0
        %2432 = vmatpush1.msra.mxu0 %v2312
        %2433 = vmatprep.subr.mxu0 0.0
        %2434 = vmatpush1.msra.mxu0 %v2313
        %2435 = vmatprep.subr.mxu0 0.0
        %2436 = vmatpush1.msra.mxu0 %v2314
        %2437 = vmatprep.subr.mxu0 0.0
        %2438 = vmatpush1.msra.mxu0 %v2315
        %2439 = vmatprep.subr.mxu0 0.0
        %2440 = vmatpush1.msra.mxu0 %v2316
        %2441 = vmatprep.subr.mxu0 0.0
        %2442 = vmatpush1.msra.mxu0 %v2317
        %2443 = vmatprep.subr.mxu0 0.0
        %2444 = vmatpush1.msra.mxu0 %v2318
        %2445 = vmatprep.subr.mxu0 0.0
        %2446 = vmatpush1.msra.mxu0 %v2319
        %2447 = vmatprep.subr.mxu0 0.0
        %2448 = vmatpush1.msra.mxu0 %v2320
        %2449 = vmatprep.subr.mxu0 0.0
        %2450 = vmatpush1.msra.mxu0 %v2321
        %2451 = vmatprep.subr.mxu0 0.0
        %2452 = vmatpush1.msra.mxu0 %v2322
        %2453 = vmatprep.subr.mxu0 0.0
        %2454 = vmatpush1.msra.mxu0 %v2323
        %2455 = vmatprep.subr.mxu0 0.0
        %2456 = vmatpush1.msra.mxu0 %v2324
        %2457 = vmatprep.subr.mxu0 0.0
        %2458 = vmatpush1.msra.mxu0 %v2325
        %2459 = vmatprep.subr.mxu0 0.0
        %2460 = vmatpush1.msra.mxu0 %v2326
        %2461 = vmatprep.subr.mxu0 0.0
        %2462 = vmatpush1.msra.mxu0 %v2327
        %2463 = vmatprep.subr.mxu0 0.0
        %2464 = vmatpush1.msra.mxu0 0.0
        %2465 = vmatprep.subr.mxu0 0.0
        %2466 = vmatpush1.msra.mxu0 0.0
        %2467 = vmatprep.subr.mxu0 0.0
        %2468 = vmatpush1.msra.mxu0 0.0
        %2469 = vmatprep.subr.mxu0 0.0
        %2470 = vmatpush1.msra.mxu0 0.0
        %2471 = vmatprep.subr.mxu0 0.0
        %2472 = vmatpush1.msra.mxu0 0.0
        %2473 = vmatprep.subr.mxu0 0.0
        %2474 = vmatpush1.msra.mxu0 0.0
        %2475 = vmatprep.subr.mxu0 0.0
        %2476 = vmatpush1.msra.mxu0 0.0
        %2477 = vmatprep.subr.mxu0 0.0
        %2478 = vmatpush1.msra.mxu0 0.0
        %2479 = vmatprep.subr.mxu0 0.0
        %2480 = vmatpush1.msra.mxu0 0.0
        %2481 = vmatprep.subr.mxu0 0.0
        %2482 = vmatpush1.msra.mxu0 0.0
        %2483 = vmatprep.subr.mxu0 0.0
        %2484 = vmatpush1.msra.mxu0 0.0
        %2485 = vmatprep.subr.mxu0 0.0
        %2486 = vmatpush1.msra.mxu0 0.0
        %2487 = vmatprep.subr.mxu0 0.0
        %2488 = vmatpush1.msra.mxu0 0.0
        %2489 = vmatprep.subr.mxu0 0.0
        %2490 = vmatpush1.msra.mxu0 0.0
        %2491 = vmatprep.mubr.f32.mxu0 %v2425
        %2492 = vmatmul.mubr.f32.gmra.mrb[0].mxu0 %v2308
        %v2493 = vpop.f32.mrb[0].mxu0
        %v2494 = vadd.f32 %v2422, %v2493
        %v2495 = vpop.f32.mrb[0].mxu0
        %2496 = vdwg.mxu0
        %s2497 = scalar_lea.vmem %s7, 288
        %v2498 = vld [vmem:[%s2497] sm:$0xff]
        %v2499 = vld [vmem:[%s2497 + $0x8] sm:$0xff]
        %v2500 = vld [vmem:[%s2497 + $0x10] sm:$0xff]
        %v2501 = vld [vmem:[%s2497 + $0x18] sm:$0xff]
        %v2502 = vld [vmem:[%s2497 + $0x20] sm:$0xff]
        %v2503 = vld [vmem:[%s2497 + $0x28] sm:$0xff]
        %v2504 = vld [vmem:[%s2497 + $0x30] sm:$0xff]
        %v2505 = vld [vmem:[%s2497 + $0x38] sm:$0xff]
        %v2506 = vld [vmem:[%s2497 + $0x40] sm:$0xff]
        %v2507 = vld [vmem:[%s2497 + $0x48] sm:$0xff]
        %v2508 = vld [vmem:[%s2497 + $0x50] sm:$0xff]
        %v2509 = vld [vmem:[%s2497 + $0x58] sm:$0xff]
        %v2510 = vld [vmem:[%s2497 + $0x60] sm:$0xff]
        %v2511 = vld [vmem:[%s2497 + $0x68] sm:$0xff]
        %v2512 = vld [vmem:[%s2497 + $0x70] sm:$0xff]
        %v2513 = vld [vmem:[%s2497 + $0x78] sm:$0xff]
        %v2514 = vld [vmem:[%s2497 + $0x80] sm:$0xff]
        %v2515 = vld [vmem:[%s2497 + $0x88] sm:$0xff]
        %v2516 = vrot.slane %v2308, 2
        %v2517 = vrot.slane %v2309, 2
        %v2519 = vsel %vm2352, %v2517, 0
        %2521 = vmatprep.subr.mxu0 0.0
        %2522 = vmatpush1.msra.mxu0 %v2498
        %2523 = vmatprep.subr.mxu0 0.0
        %2524 = vmatpush1.msra.mxu0 %v2499
        %2525 = vmatprep.subr.mxu0 0.0
        %2526 = vmatpush1.msra.mxu0 %v2500
        %2527 = vmatprep.subr.mxu0 0.0
        %2528 = vmatpush1.msra.mxu0 %v2501
        %2529 = vmatprep.subr.mxu0 0.0
        %2530 = vmatpush1.msra.mxu0 %v2502
        %2531 = vmatprep.subr.mxu0 0.0
        %2532 = vmatpush1.msra.mxu0 %v2503
        %2533 = vmatprep.subr.mxu0 0.0
        %2534 = vmatpush1.msra.mxu0 %v2504
        %2535 = vmatprep.subr.mxu0 0.0
        %2536 = vmatpush1.msra.mxu0 %v2505
        %2537 = vmatprep.subr.mxu0 0.0
        %2538 = vmatpush1.msra.mxu0 %v2506
        %2539 = vmatprep.subr.mxu0 0.0
        %2540 = vmatpush1.msra.mxu0 %v2507
        %2541 = vmatprep.subr.mxu0 0.0
        %2542 = vmatpush1.msra.mxu0 %v2508
        %2543 = vmatprep.subr.mxu0 0.0
        %2544 = vmatpush1.msra.mxu0 %v2509
        %2545 = vmatprep.subr.mxu0 0.0
        %2546 = vmatpush1.msra.mxu0 %v2510
        %2547 = vmatprep.subr.mxu0 0.0
        %2548 = vmatpush1.msra.mxu0 %v2511
        %2549 = vmatprep.subr.mxu0 0.0
        %2550 = vmatpush1.msra.mxu0 %v2512
        %2551 = vmatprep.subr.mxu0 0.0
        %2552 = vmatpush1.msra.mxu0 %v2513
        %2553 = vmatprep.subr.mxu0 0.0
        %2554 = vmatpush1.msra.mxu0 %v2514
        %2555 = vmatprep.subr.mxu0 0.0
        %2556 = vmatpush1.msra.mxu0 %v2515
        %2557 = vmatprep.subr.mxu0 0.0
        %2558 = vmatpush1.msra.mxu0 0.0
        %2559 = vmatprep.subr.mxu0 0.0
        %2560 = vmatpush1.msra.mxu0 0.0
        %2561 = vmatprep.subr.mxu0 0.0
        %2562 = vmatpush1.msra.mxu0 0.0
        %2563 = vmatprep.subr.mxu0 0.0
        %2564 = vmatpush1.msra.mxu0 0.0
        %2565 = vmatprep.subr.mxu0 0.0
        %2566 = vmatpush1.msra.mxu0 0.0
        %2567 = vmatprep.subr.mxu0 0.0
        %2568 = vmatpush1.msra.mxu0 0.0
        %2569 = vmatprep.subr.mxu0 0.0
        %2570 = vmatpush1.msra.mxu0 0.0
        %2571 = vmatprep.subr.mxu0 0.0
        %2572 = vmatpush1.msra.mxu0 0.0
        %2573 = vmatprep.subr.mxu0 0.0
        %2574 = vmatpush1.msra.mxu0 0.0
        %2575 = vmatprep.subr.mxu0 0.0
        %2576 = vmatpush1.msra.mxu0 0.0
        %2577 = vmatprep.subr.mxu0 0.0
        %2578 = vmatpush1.msra.mxu0 0.0
        %2579 = vmatprep.subr.mxu0 0.0
        %2580 = vmatpush1.msra.mxu0 0.0
        %2581 = vmatprep.subr.mxu0 0.0
        %2582 = vmatpush1.msra.mxu0 0.0
        %2583 = vmatprep.subr.mxu0 0.0
        %2584 = vmatpush1.msra.mxu0 0.0
        %2585 = vmatprep.mubr.f32.mxu0 %v2519
        %2586 = vmatmul.mubr.f32.gmra.mrb[0].mxu0 %v2516
        %v2587 = vpop.f32.mrb[0].mxu0
        %v2588 = vadd.f32 0.0, %v2587
        %v2589 = vpop.f32.mrb[0].mxu0
        %2590 = vdwg.mxu0
        %v2591 = vadd.f32 %v2494, %v2588
        %s2592 = scalar_lea.vmem %s7, 432
        %v2593 = vld [vmem:[%s2592] sm:$0xff]
        %v2594 = vld [vmem:[%s2592 + $0x8] sm:$0xff]
        %v2595 = vld [vmem:[%s2592 + $0x10] sm:$0xff]
        %v2596 = vld [vmem:[%s2592 + $0x18] sm:$0xff]
        %v2597 = vld [vmem:[%s2592 + $0x20] sm:$0xff]
        %v2598 = vld [vmem:[%s2592 + $0x28] sm:$0xff]
        %v2599 = vld [vmem:[%s2592 + $0x30] sm:$0xff]
        %v2600 = vld [vmem:[%s2592 + $0x38] sm:$0xff]
        %v2601 = vld [vmem:[%s2592 + $0x40] sm:$0xff]
        %v2602 = vld [vmem:[%s2592 + $0x48] sm:$0xff]
        %v2603 = vld [vmem:[%s2592 + $0x50] sm:$0xff]
        %v2604 = vld [vmem:[%s2592 + $0x58] sm:$0xff]
        %v2605 = vld [vmem:[%s2592 + $0x60] sm:$0xff]
        %v2606 = vld [vmem:[%s2592 + $0x68] sm:$0xff]
        %v2607 = vld [vmem:[%s2592 + $0x70] sm:$0xff]
        %v2608 = vld [vmem:[%s2592 + $0x78] sm:$0xff]
        %v2609 = vld [vmem:[%s2592 + $0x80] sm:$0xff]
        %v2610 = vld [vmem:[%s2592 + $0x88] sm:$0xff]
        %v2611 = vrot.slane %v2308, 3
        %v2612 = vrot.slane %v2309, 3
        %v2614 = vsel %vm2352, %v2612, 0
        %2616 = vmatprep.subr.mxu0 0.0
        %2617 = vmatpush1.msra.mxu0 %v2593
        %2618 = vmatprep.subr.mxu0 0.0
        %2619 = vmatpush1.msra.mxu0 %v2594
        %2620 = vmatprep.subr.mxu0 0.0
        %2621 = vmatpush1.msra.mxu0 %v2595
        %2622 = vmatprep.subr.mxu0 0.0
        %2623 = vmatpush1.msra.mxu0 %v2596
        %2624 = vmatprep.subr.mxu0 0.0
        %2625 = vmatpush1.msra.mxu0 %v2597
        %2626 = vmatprep.subr.mxu0 0.0
        %2627 = vmatpush1.msra.mxu0 %v2598
        %2628 = vmatprep.subr.mxu0 0.0
        %2629 = vmatpush1.msra.mxu0 %v2599
        %2630 = vmatprep.subr.mxu0 0.0
        %2631 = vmatpush1.msra.mxu0 %v2600
        %2632 = vmatprep.subr.mxu0 0.0
        %2633 = vmatpush1.msra.mxu0 %v2601
        %2634 = vmatprep.subr.mxu0 0.0
        %2635 = vmatpush1.msra.mxu0 %v2602
        %2636 = vmatprep.subr.mxu0 0.0
        %2637 = vmatpush1.msra.mxu0 %v2603
        %2638 = vmatprep.subr.mxu0 0.0
        %2639 = vmatpush1.msra.mxu0 %v2604
        %2640 = vmatprep.subr.mxu0 0.0
        %2641 = vmatpush1.msra.mxu0 %v2605
        %2642 = vmatprep.subr.mxu0 0.0
        %2643 = vmatpush1.msra.mxu0 %v2606
        %2644 = vmatprep.subr.mxu0 0.0
        %2645 = vmatpush1.msra.mxu0 %v2607
        %2646 = vmatprep.subr.mxu0 0.0
        %2647 = vmatpush1.msra.mxu0 %v2608
        %2648 = vmatprep.subr.mxu0 0.0
        %2649 = vmatpush1.msra.mxu0 %v2609
        %2650 = vmatprep.subr.mxu0 0.0
        %2651 = vmatpush1.msra.mxu0 %v2610
        %2652 = vmatprep.subr.mxu0 0.0
        %2653 = vmatpush1.msra.mxu0 0.0
        %2654 = vmatprep.subr.mxu0 0.0
        %2655 = vmatpush1.msra.mxu0 0.0
        %2656 = vmatprep.subr.mxu0 0.0
        %2657 = vmatpush1.msra.mxu0 0.0
        %2658 = vmatprep.subr.mxu0 0.0
        %2659 = vmatpush1.msra.mxu0 0.0
        %2660 = vmatprep.subr.mxu0 0.0
        %2661 = vmatpush1.msra.mxu0 0.0
        %2662 = vmatprep.subr.mxu0 0.0
        %2663 = vmatpush1.msra.mxu0 0.0
        %2664 = vmatprep.subr.mxu0 0.0
        %2665 = vmatpush1.msra.mxu0 0.0
        %2666 = vmatprep.subr.mxu0 0.0
        %2667 = vmatpush1.msra.mxu0 0.0
        %2668 = vmatprep.subr.mxu0 0.0
        %2669 = vmatpush1.msra.mxu0 0.0
        %2670 = vmatprep.subr.mxu0 0.0
        %2671 = vmatpush1.msra.mxu0 0.0
        %2672 = vmatprep.subr.mxu0 0.0
        %2673 = vmatpush1.msra.mxu0 0.0
        %2674 = vmatprep.subr.mxu0 0.0
        %2675 = vmatpush1.msra.mxu0 0.0
        %2676 = vmatprep.subr.mxu0 0.0
        %2677 = vmatpush1.msra.mxu0 0.0
        %2678 = vmatprep.subr.mxu0 0.0
        %2679 = vmatpush1.msra.mxu0 0.0
        %2680 = vmatprep.mubr.f32.mxu0 %v2614
        %2681 = vmatmul.mubr.f32.gmra.mrb[0].mxu0 %v2611
        %v2682 = vpop.f32.mrb[0].mxu0
        %v2683 = vadd.f32 0.0, %v2682
        %v2684 = vpop.f32.mrb[0].mxu0
        %2685 = vdwg.mxu0
        %v2686 = vadd.f32 %v2591, %v2683
        %s2687 = scalar_lea.vmem %s7, 576
        %v2688 = vld [vmem:[%s2687] sm:$0xff]
        %v2689 = vld [vmem:[%s2687 + $0x8] sm:$0xff]
        %v2690 = vld [vmem:[%s2687 + $0x10] sm:$0xff]
        %v2691 = vld [vmem:[%s2687 + $0x18] sm:$0xff]
        %v2692 = vld [vmem:[%s2687 + $0x20] sm:$0xff]
        %v2693 = vld [vmem:[%s2687 + $0x28] sm:$0xff]
        %v2694 = vld [vmem:[%s2687 + $0x30] sm:$0xff]
        %v2695 = vld [vmem:[%s2687 + $0x38] sm:$0xff]
        %v2696 = vld [vmem:[%s2687 + $0x40] sm:$0xff]
        %v2697 = vld [vmem:[%s2687 + $0x48] sm:$0xff]
        %v2698 = vld [vmem:[%s2687 + $0x50] sm:$0xff]
        %v2699 = vld [vmem:[%s2687 + $0x58] sm:$0xff]
        %v2700 = vld [vmem:[%s2687 + $0x60] sm:$0xff]
        %v2701 = vld [vmem:[%s2687 + $0x68] sm:$0xff]
        %v2702 = vld [vmem:[%s2687 + $0x70] sm:$0xff]
        %v2703 = vld [vmem:[%s2687 + $0x78] sm:$0xff]
        %v2704 = vld [vmem:[%s2687 + $0x80] sm:$0xff]
        %v2705 = vld [vmem:[%s2687 + $0x88] sm:$0xff]
        %v2706 = vrot.slane %v2308, 4
        %v2707 = vrot.slane %v2309, 4
        %v2709 = vsel %vm2352, %v2707, 0
        %2711 = vmatprep.subr.mxu0 0.0
        %2712 = vmatpush1.msra.mxu0 %v2688
        %2713 = vmatprep.subr.mxu0 0.0
        %2714 = vmatpush1.msra.mxu0 %v2689
        %2715 = vmatprep.subr.mxu0 0.0
        %2716 = vmatpush1.msra.mxu0 %v2690
        %2717 = vmatprep.subr.mxu0 0.0
        %2718 = vmatpush1.msra.mxu0 %v2691
        %2719 = vmatprep.subr.mxu0 0.0
        %2720 = vmatpush1.msra.mxu0 %v2692
        %2721 = vmatprep.subr.mxu0 0.0
        %2722 = vmatpush1.msra.mxu0 %v2693
        %2723 = vmatprep.subr.mxu0 0.0
        %2724 = vmatpush1.msra.mxu0 %v2694
        %2725 = vmatprep.subr.mxu0 0.0
        %2726 = vmatpush1.msra.mxu0 %v2695
        %2727 = vmatprep.subr.mxu0 0.0
        %2728 = vmatpush1.msra.mxu0 %v2696
        %2729 = vmatprep.subr.mxu0 0.0
        %2730 = vmatpush1.msra.mxu0 %v2697
        %2731 = vmatprep.subr.mxu0 0.0
        %2732 = vmatpush1.msra.mxu0 %v2698
        %2733 = vmatprep.subr.mxu0 0.0
        %2734 = vmatpush1.msra.mxu0 %v2699
        %2735 = vmatprep.subr.mxu0 0.0
        %2736 = vmatpush1.msra.mxu0 %v2700
        %2737 = vmatprep.subr.mxu0 0.0
        %2738 = vmatpush1.msra.mxu0 %v2701
        %2739 = vmatprep.subr.mxu0 0.0
        %2740 = vmatpush1.msra.mxu0 %v2702
        %2741 = vmatprep.subr.mxu0 0.0
        %2742 = vmatpush1.msra.mxu0 %v2703
        %2743 = vmatprep.subr.mxu0 0.0
        %2744 = vmatpush1.msra.mxu0 %v2704
        %2745 = vmatprep.subr.mxu0 0.0
        %2746 = vmatpush1.msra.mxu0 %v2705
        %2747 = vmatprep.subr.mxu0 0.0
        %2748 = vmatpush1.msra.mxu0 0.0
        %2749 = vmatprep.subr.mxu0 0.0
        %2750 = vmatpush1.msra.mxu0 0.0
        %2751 = vmatprep.subr.mxu0 0.0
        %2752 = vmatpush1.msra.mxu0 0.0
        %2753 = vmatprep.subr.mxu0 0.0
        %2754 = vmatpush1.msra.mxu0 0.0
        %2755 = vmatprep.subr.mxu0 0.0
        %2756 = vmatpush1.msra.mxu0 0.0
        %2757 = vmatprep.subr.mxu0 0.0
        %2758 = vmatpush1.msra.mxu0 0.0
        %2759 = vmatprep.subr.mxu0 0.0
        %2760 = vmatpush1.msra.mxu0 0.0
        %2761 = vmatprep.subr.mxu0 0.0
        %2762 = vmatpush1.msra.mxu0 0.0
        %2763 = vmatprep.subr.mxu0 0.0
        %2764 = vmatpush1.msra.mxu0 0.0
        %2765 = vmatprep.subr.mxu0 0.0
        %2766 = vmatpush1.msra.mxu0 0.0
        %2767 = vmatprep.subr.mxu0 0.0
        %2768 = vmatpush1.msra.mxu0 0.0
        %2769 = vmatprep.subr.mxu0 0.0
        %2770 = vmatpush1.msra.mxu0 0.0
        %2771 = vmatprep.subr.mxu0 0.0
        %2772 = vmatpush1.msra.mxu0 0.0
        %2773 = vmatprep.subr.mxu0 0.0
        %2774 = vmatpush1.msra.mxu0 0.0
        %2775 = vmatprep.mubr.f32.mxu0 %v2709
        %2776 = vmatmul.mubr.f32.gmra.mrb[0].mxu0 %v2706
        %v2777 = vpop.f32.mrb[0].mxu0
        %v2778 = vadd.f32 0.0, %v2777
        %v2779 = vpop.f32.mrb[0].mxu0
        %2780 = vdwg.mxu0
        %v2781 = vadd.f32 %v2686, %v2778
        %v2782 = vld [vmem:[%s8] sm:$0x1]
        %v2784 = vlaneseq
        %v2785 = vshrl.u32 %v2784, 7
        %v2786 = vsub.s32 0, %v2785
        %v2787 = vrot.slane %v2782, %v2786
        %v2789 = vadd.f32 %v2781, %v2787
        %v2790 = vmax.f32 %v2789, 0.0
        %v2791 = vld [vmem:[%s10] sm:$0x1]
        %v2792 = vld [vmem:[%s9] sm:$0xff]
        %v2793 = vld [vmem:[%s9 + $0x8] sm:$0xff]
        %v2794 = vld [vmem:[%s9 + $0x10] sm:$0xff]
        %v2795 = vld [vmem:[%s9 + $0x18] sm:$0xff]
        %v2796 = vld [vmem:[%s9 + $0x20] sm:$0xff]
        %v2797 = vld [vmem:[%s9 + $0x28] sm:$0xff]
        %vm2798 = vcmask 392192
        %v2800 = vsel %vm2798, %v2790, 0
        %2802 = vmatprep.subr.mxu0 0.0
        %2803 = vmatpush1.msra.mxu0 %v2792
        %2804 = vmatprep.subr.mxu0 0.0
        %2805 = vmatpush1.msra.mxu0 %v2793
        %2806 = vmatprep.subr.mxu0 0.0
        %2807 = vmatpush1.msra.mxu0 %v2794
        %2808 = vmatprep.subr.mxu0 0.0
        %2809 = vmatpush1.msra.mxu0 %v2795
        %2810 = vmatprep.subr.mxu0 0.0
        %2811 = vmatpush1.msra.mxu0 %v2796
        %2812 = vmatprep.subr.mxu0 0.0
        %2813 = vmatpush1.msra.mxu0 %v2797
        %2814 = vmatprep.subr.mxu0 0.0
        %2815 = vmatpush1.msra.mxu0 0.0
        %2816 = vmatprep.subr.mxu0 0.0
        %2817 = vmatpush1.msra.mxu0 0.0
        %2818 = vmatprep.subr.mxu0 0.0
        %2819 = vmatpush1.msra.mxu0 0.0
        %2820 = vmatprep.subr.mxu0 0.0
        %2821 = vmatpush1.msra.mxu0 0.0
        %2822 = vmatprep.subr.mxu0 0.0
        %2823 = vmatpush1.msra.mxu0 0.0
        %2824 = vmatprep.subr.mxu0 0.0
        %2825 = vmatpush1.msra.mxu0 0.0
        %2826 = vmatprep.subr.mxu0 0.0
        %2827 = vmatpush1.msra.mxu0 0.0
        %2828 = vmatprep.subr.mxu0 0.0
        %2829 = vmatpush1.msra.mxu0 0.0
        %2830 = vmatprep.subr.mxu0 0.0
        %2831 = vmatpush1.msra.mxu0 0.0
        %2832 = vmatprep.subr.mxu0 0.0
        %2833 = vmatpush1.msra.mxu0 0.0
        %2834 = vmatprep.subr.mxu0 0.0
        %2835 = vmatpush1.msra.mxu0 0.0
        %2836 = vmatprep.subr.mxu0 0.0
        %2837 = vmatpush1.msra.mxu0 0.0
        %2838 = vmatprep.subr.mxu0 0.0
        %2839 = vmatpush1.msra.mxu0 0.0
        %2840 = vmatprep.subr.mxu0 0.0
        %2841 = vmatpush1.msra.mxu0 0.0
        %2842 = vmatprep.subr.mxu0 0.0
        %2843 = vmatpush1.msra.mxu0 0.0
        %2844 = vmatprep.subr.mxu0 0.0
        %2845 = vmatpush1.msra.mxu0 0.0
        %2846 = vmatprep.subr.mxu0 0.0
        %2847 = vmatpush1.msra.mxu0 0.0
        %2848 = vmatprep.subr.mxu0 0.0
        %2849 = vmatpush1.msra.mxu0 0.0
        %2850 = vmatprep.subr.mxu0 0.0
        %2851 = vmatpush1.msra.mxu0 0.0
        %2852 = vmatprep.subr.mxu0 0.0
        %2853 = vmatpush1.msra.mxu0 0.0
        %2854 = vmatprep.subr.mxu0 0.0
        %2855 = vmatpush1.msra.mxu0 0.0
        %2856 = vmatprep.subr.mxu0 0.0
        %2857 = vmatpush1.msra.mxu0 0.0
        %2858 = vmatprep.subr.mxu0 0.0
        %2859 = vmatpush1.msra.mxu0 0.0
        %2860 = vmatprep.subr.mxu0 0.0
        %2861 = vmatpush1.msra.mxu0 0.0
        %2862 = vmatprep.subr.mxu0 0.0
        %2863 = vmatpush1.msra.mxu0 0.0
        %2864 = vmatprep.subr.mxu0 0.0
        %2865 = vmatpush1.msra.mxu0 0.0
        %2866 = vmatprep.mubr.f32.mxu0 0.0
        %2867 = vmatmul.mubr.f32.gmra.mrb[0].mxu0 %v2800
        %v2868 = vpop.f32.mrb[0].mxu0
        %v2869 = vadd.f32 0.0, %v2868
        %v2870 = vpop.f32.mrb[0].mxu0
        %2871 = vdwg.mxu0
        %v2872 = vadd.f32 %v2791, %v2869
        %v2873 = vld [vmem:[%s9 + $0x30] sm:$0xff]
        %v2874 = vld [vmem:[%s9 + $0x38] sm:$0xff]
        %v2875 = vld [vmem:[%s9 + $0x40] sm:$0xff]
        %v2876 = vld [vmem:[%s9 + $0x48] sm:$0xff]
        %v2877 = vld [vmem:[%s9 + $0x50] sm:$0xff]
        %v2878 = vld [vmem:[%s9 + $0x58] sm:$0xff]
        %v2879 = vrot.slane %v2790, 1
        %v2880 = vsel %vm2798, %v2879, 0
        %2882 = vmatprep.subr.mxu0 0.0
        %2883 = vmatpush1.msra.mxu0 %v2873
        %2884 = vmatprep.subr.mxu0 0.0
        %2885 = vmatpush1.msra.mxu0 %v2874
        %2886 = vmatprep.subr.mxu0 0.0
        %2887 = vmatpush1.msra.mxu0 %v2875
        %2888 = vmatprep.subr.mxu0 0.0
        %2889 = vmatpush1.msra.mxu0 %v2876
        %2890 = vmatprep.subr.mxu0 0.0
        %2891 = vmatpush1.msra.mxu0 %v2877
        %2892 = vmatprep.subr.mxu0 0.0
        %2893 = vmatpush1.msra.mxu0 %v2878
        %2894 = vmatprep.subr.mxu0 0.0
        %2895 = vmatpush1.msra.mxu0 0.0
        %2896 = vmatprep.subr.mxu0 0.0
        %2897 = vmatpush1.msra.mxu0 0.0
        %2898 = vmatprep.subr.mxu0 0.0
        %2899 = vmatpush1.msra.mxu0 0.0
        %2900 = vmatprep.subr.mxu0 0.0
        %2901 = vmatpush1.msra.mxu0 0.0
        %2902 = vmatprep.subr.mxu0 0.0
        %2903 = vmatpush1.msra.mxu0 0.0
        %2904 = vmatprep.subr.mxu0 0.0
        %2905 = vmatpush1.msra.mxu0 0.0
        %2906 = vmatprep.subr.mxu0 0.0
        %2907 = vmatpush1.msra.mxu0 0.0
        %2908 = vmatprep.subr.mxu0 0.0
        %2909 = vmatpush1.msra.mxu0 0.0
        %2910 = vmatprep.subr.mxu0 0.0
        %2911 = vmatpush1.msra.mxu0 0.0
        %2912 = vmatprep.subr.mxu0 0.0
        %2913 = vmatpush1.msra.mxu0 0.0
        %2914 = vmatprep.subr.mxu0 0.0
        %2915 = vmatpush1.msra.mxu0 0.0
        %2916 = vmatprep.subr.mxu0 0.0
        %2917 = vmatpush1.msra.mxu0 0.0
        %2918 = vmatprep.subr.mxu0 0.0
        %2919 = vmatpush1.msra.mxu0 0.0
        %2920 = vmatprep.subr.mxu0 0.0
        %2921 = vmatpush1.msra.mxu0 0.0
        %2922 = vmatprep.subr.mxu0 0.0
        %2923 = vmatpush1.msra.mxu0 0.0
        %2924 = vmatprep.subr.mxu0 0.0
        %2925 = vmatpush1.msra.mxu0 0.0
        %2926 = vmatprep.subr.mxu0 0.0
        %2927 = vmatpush1.msra.mxu0 0.0
        %2928 = vmatprep.subr.mxu0 0.0
        %2929 = vmatpush1.msra.mxu0 0.0
        %2930 = vmatprep.subr.mxu0 0.0
        %2931 = vmatpush1.msra.mxu0 0.0
        %2932 = vmatprep.subr.mxu0 0.0
        %2933 = vmatpush1.msra.mxu0 0.0
        %2934 = vmatprep.subr.mxu0 0.0
        %2935 = vmatpush1.msra.mxu0 0.0
        %2936 = vmatprep.subr.mxu0 0.0
        %2937 = vmatpush1.msra.mxu0 0.0
        %2938 = vmatprep.subr.mxu0 0.0
        %2939 = vmatpush1.msra.mxu0 0.0
        %2940 = vmatprep.subr.mxu0 0.0
        %2941 = vmatpush1.msra.mxu0 0.0
        %2942 = vmatprep.subr.mxu0 0.0
        %2943 = vmatpush1.msra.mxu0 0.0
        %2944 = vmatprep.subr.mxu0 0.0
        %2945 = vmatpush1.msra.mxu0 0.0
        %2946 = vmatprep.mubr.f32.mxu0 0.0
        %2947 = vmatmul.mubr.f32.gmra.mrb[0].mxu0 %v2880
        %v2948 = vpop.f32.mrb[0].mxu0
        %v2949 = vadd.f32 0.0, %v2948
        %v2950 = vpop.f32.mrb[0].mxu0
        %2951 = vdwg.mxu0
        %v2952 = vadd.f32 %v2872, %v2949
        %vm2953 = vcmask 73728
        %2954 = vst.msk [vmem:[%s378] sm:$0x1] %vm2953, %v2952
        %s2955 = sand.u32 %s269, 1
        %s2956 = scalar_lea.sflag [#allocation7], %s2955
        %s2957 = sand.u32 %s269, 1
        %s2958 = scalar_lea.vmem [#allocation6], %s2957
        // Predicated region
        $region65: #{network_forward.1} parent=63 // pred_check
          %p2959 = pneg %p279
        $region66: #{network_forward.1} parent=63 // pred_check_branch
          %2961 = sbr.rel (%p2959) target = $region68
        $region67: #{network_forward.1} parent=63 // pred_region
          %s2963 = ssub.s32 16, 16
          %2964 = vsyncadd %s2956, %s2963
          %s2965 = smul.addr %s25, 16
          %s2966 = scalar_lea.hbm %s11, %s2965
          %s2968 = sshll.u32 %s2958, 4
          %s2969 = int_to_ptr.vmem [resolvable:$true] %s2968
          %2971 = dma.vmem_to_hbm [thread:$0]  %s2969, 16, %s2966, %s2956
        $region68: #{network_forward.1} parent=63 // pred_fallthru
          _
      $region64: #{network_forward.1} parent=5 // pred_fallthru
        _
      %p2972 = scmp.le.s32.totalorder 2, %s20
      // Predicated region
      $region69: #{network_forward.1} parent=5 // pred_check
        %p2973 = pneg %p2972
      $region70: #{network_forward.1} parent=5 // pred_check_branch
        %2975 = sbr.rel (%p2973) target = $region72
      $region71: #{network_forward.1} parent=5 // pred_region
        %s2976 = ssub.s32 %s20, 2
        // Predicated region
        $region73: #{network_forward.1} parent=71 // pred_check
          %p2977 = pneg %p285
        $region74: #{network_forward.1} parent=71 // pred_check_branch
          %2979 = sbr.rel (%p2977) target = $region76
        $region75: #{network_forward.1} parent=71 // pred_region
          %s2980 = sand.u32 %s270, 1
          %s2981 = scalar_lea.sflag [#allocation7], %s2980
          %s2982 = sand.u32 %s270, 1
          %s2983 = scalar_lea.vmem [#allocation6], %s2982
          %2984 = dma.done %s2981, 16
        $region76: #{network_forward.1} parent=71 // pred_fallthru
          _
      $region72: #{network_forward.1} parent=5 // pred_fallthru
        _
    $region6: #{network_forward.1} parent=1 // loop_footer
      %s24 = sadd.s32 1, %s20
    $region7: #{network_forward.1} parent=1 // loop_footer_branch
      %19 = sbr.rel target = $region3
    $region8: #{network_forward.1} parent=1 // loop_exit
      _
    %2985 = vsyncpa [#allocation7], 1
    %s2986 = scalar_lea.sflag [#allocation7], 1
    %2987 = vsyncpa %s2986, 1

</llo_original>
